<compile_context>
chip_gen: v6e
topology: v6e:2x2x1
jax: 0.10.0
libtpu: 0.0.40
codegen_flags: <defaults>
</compile_context>

<pallas_src>
import functools

import jax
import jax.numpy as jnp
from jax import lax
from jax.experimental import pallas as pl
from jax.experimental.pallas import tpu as pltpu


def _round_up(x, m):
    return ((x + m - 1) // m) * m


def _largest_aligned_divisor(n, cap):
    """Largest divisor of n that is a multiple of 8 and <= cap."""
    for d in range(min(cap, n), 7, -1):
        if n % d == 0 and d % 8 == 0:
            return d
    return min(n, cap)


def _vmem_capacity_bytes():
    try:
        info = pltpu.get_tpu_info()
        cap = getattr(info, "vmem_capacity_bytes", None)
        if cap:
            return int(cap)
    except Exception:
        pass
    return 64 * 1024 * 1024   # conservative fallback: v7x per-TC VMEM


# ---------------------------------------------------------------------------
# Kernel 0: per-batch phi / g projections of the pooled input
# ---------------------------------------------------------------------------
def _phi_g_kernel(mp_ref, wp_ref, bp_ref, wg_ref, bg_ref, phit_ref, g_ref):
    mp = mp_ref[...]                                                     # (M, Cp) bf16
    phi = jnp.dot(mp, wp_ref[...],
                  preferred_element_type=jnp.float32) + bp_ref[...]      # (M, Dp) f32
    g = jnp.dot(mp, wg_ref[...],
                preferred_element_type=jnp.float32) + bg_ref[...]        # (M, Dp) f32
    # Store phi pre-transposed so the attention matmul is a canonical
    # (TQ, Dp) @ (Dp, M) contraction (transpose paid once per batch, not per tile).
    phit_ref[...] = jnp.transpose(phi).astype(jnp.bfloat16)              # (Dp, M)
    g_ref[...] = g.astype(jnp.bfloat16)                                  # (M, Dp)


# ---------------------------------------------------------------------------
# Kernel 1: non-local attention core (theta proj + softmax attention + out conv
#           + fused BatchNorm statistics)
# ---------------------------------------------------------------------------
def _attn_kernel(x_ref, phit_ref, g_ref, wt_ref, bt_ref, wo_ref, bo_ref,
                 y_ref, s1_ref, s2_ref, *, n_valid, tq):
    q = pl.program_id(2)
    nqh = pl.num_programs(2)

    # theta projection (softmax scale dim_inner**-0.5 pre-folded into wt/bt).
    theta = jnp.dot(x_ref[...], wt_ref[...],
                    preferred_element_type=jnp.float32) + bt_ref[...]    # (TQ, Dp)

    # attn = theta @ phi^T  (phi stored pre-transposed as (Dp, M)).
    attn = jnp.dot(theta.astype(jnp.bfloat16), phit_ref[...],
                   preferred_element_type=jnp.float32)                   # (TQ, M)

    # Unnormalized softmax; exp in bf16 (bf16 EUP on v6e/v7x, correct on v5e),
    # f32 accumulation for the denominator, normalization deferred past p @ g.
    m = jnp.max(attn, axis=-1, keepdims=True)
    p = jnp.exp((attn - m).astype(jnp.bfloat16))                         # (TQ, M) bf16
    denom = jnp.sum(p, axis=-1, keepdims=True, dtype=jnp.float32)        # (TQ, 1)

    t = jnp.dot(p, g_ref[...], preferred_element_type=jnp.float32)       # (TQ, Dp)
    t = t * pl.reciprocal(denom, approx=True)

    # Output 1x1x1 conv.
    y = jnp.dot(t.astype(jnp.bfloat16), wo_ref[...],
                preferred_element_type=jnp.float32) + bo_ref[...]        # (TQ, Cp) f32
    y_ref[...] = y.astype(y_ref.dtype)

    # BatchNorm statistics accumulated in the (half, batch)-resident output
    # block across the query axis; pad query rows are masked out.
    if n_valid % tq == 0:
        yv = y
    else:
        h = pl.program_id(0)
        row0 = (h * nqh + q) * tq
        rows = row0 + lax.broadcasted_iota(jnp.int32, (tq, 1), 0)
        yv = y * (rows < n_valid).astype(jnp.float32)

    @pl.when(q == 0)
    def _():
        s1_ref[...] = jnp.zeros_like(s1_ref)
        s2_ref[...] = jnp.zeros_like(s2_ref)
    s1_ref[...] += jnp.sum(yv, axis=0, keepdims=True)
    s2_ref[...] += jnp.sum(yv * yv, axis=0, keepdims=True)


# ---------------------------------------------------------------------------
# Kernel 2: pre-folded BatchNorm affine + residual add (pure streaming)
# ---------------------------------------------------------------------------
def _bn_residual_kernel(y_ref, res_ref, a_ref, c_ref, o_ref):
    # out = gamma*(y - mean)*inv_std + beta + residual, with a = gamma*inv_std
    # and c = beta - mean*a pre-folded in the wrapper.
    o_ref[...] = (y_ref[...].astype(jnp.float32) * a_ref[...]
                  + c_ref[...] + res_ref[...])


# ---------------------------------------------------------------------------
# Wrapper
# ---------------------------------------------------------------------------
def nonlocal_block(x, params, dim_inner, eps=1e-5):
    """x: (B, C_in, T, H, W) float32. Returns (B, C_out, T, H, W) float32."""
    B, C_in, T, H, W = x.shape
    C_out = params["w_out"].shape[1]
    assert C_out == C_in, "residual add requires dim_out == dim_in"
    assert H % 2 == 0 and W % 2 == 0, "MaxPool3d((1,2,2)) requires even H, W"

    N = T * H * W
    M = T * (H // 2) * (W // 2)
    di = dim_inner
    Cp = _round_up(C_in, 128)      # lane-dense channel dims
    Dp = _round_up(di, 128)

    # --- glue ops outside Pallas: maxpool, channels-last flatten, padding ---
    # TODO(synk): keep activations channels-last in the surrounding model so
    # these full-HBM transposes / copies disappear for large T*H*W.
    mp = x.reshape(B, C_in, T, H // 2, 2, W // 2, 2).max(axis=(4, 6))
    x_flat = jnp.transpose(x, (0, 2, 3, 4, 1)).reshape(B, N, C_in)
    mp_flat = jnp.transpose(mp, (0, 2, 3, 4, 1)).reshape(B, M, C_in)

    # Query-tile size (no divisor requirement: N is padded up to TQ multiple).
    TQ = 512
    while TQ > 128 and TQ * M * 6 > 6 * 1024 * 1024:
        TQ //= 2
    Np = _round_up(max(N, TQ), TQ)
    nq = Np // TQ
    # Guarantee megacore coverage when B == 1 by splitting the query range.
    nh = 2 if (B == 1 and nq >= 2 and nq % 2 == 0) else 1
    nqh = nq // nh

    x_res = jnp.pad(x_flat, ((0, 0), (0, Np - N), (0, Cp - C_in)))   # f32 residual
    x_bf = x_res.astype(jnp.bfloat16)                                # MXU operand
    mp_bf = jnp.pad(mp_flat, ((0, 0), (0, 0), (0, Cp - C_in))).astype(jnp.bfloat16)

    scale = float(di) ** (-0.5)
    pad_w = lambda w, r, c: jnp.pad(w, ((0, r - w.shape[0]), (0, c - w.shape[1])))
    pad_b = lambda b_, c: jnp.pad(b_, ((0, 0), (0, c - b_.shape[1])))
    wt = pad_w(params["w_theta"] * scale, Cp, Dp).astype(jnp.bfloat16)  # scale folded
    bt = pad_b(params["b_theta"] * scale, Dp)
    wp = pad_w(params["w_phi"], Cp, Dp).astype(jnp.bfloat16)
    bp = pad_b(params["b_phi"], Dp)
    wg = pad_w(params["w_g"], Cp, Dp).astype(jnp.bfloat16)
    bg = pad_b(params["b_g"], Dp)
    wo = pad_w(params["w_out"], Dp, Cp).astype(jnp.bfloat16)
    bo = pad_b(params["b_out"], Cp)

    # VMEM limit: rough double-buffered estimate * 2 headroom, gen-gated to at
    # most ~3/4 of physical VMEM (128 MiB on v5e/v6e, 64 MiB on v7x).
    est = (4 * TQ * Cp * 2                      # x + y tiles (bf16, double-buffered)
           + 4 * M * Dp * 2                     # phi^T + g blocks
           + 4 * Cp * Dp * 2 + 8 * Cp * 4       # weights + biases
           + TQ * M * 6                         # attn f32 + p bf16
           + 4 * TQ * max(Dp, Cp) * 4           # theta / t / y intermediates
           + M * Cp * 4)                        # kernel-0 slack
    vmem_limit = int(min(_vmem_capacity_bytes() * 3 // 4,
                         max(32 * 1024 * 1024, 2 * est)))

    # ---- Kernel 0: per-batch phi / g projections of the pooled input ----
    phit, g = pl.pallas_call(
        _phi_g_kernel,
        out_shape=(jax.ShapeDtypeStruct((B, Dp, M), jnp.bfloat16),
                   jax.ShapeDtypeStruct((B, M, Dp), jnp.bfloat16)),
        grid_spec=pltpu.PrefetchScalarGridSpec(
            num_scalar_prefetch=0,
            grid=(B,),
            in_specs=[
                pl.BlockSpec((None, M, Cp), lambda b: (b, 0, 0)),   # pooled input
                pl.BlockSpec((Cp, Dp), lambda b: (0, 0)),           # phi w
                pl.BlockSpec((1, Dp), lambda b: (0, 0)),            # phi b
                pl.BlockSpec((Cp, Dp), lambda b: (0, 0)),           # g   w
                pl.BlockSpec((1, Dp), lambda b: (0, 0)),            # g   b
            ],
            out_specs=(pl.BlockSpec((None, Dp, M), lambda b: (b, 0, 0)),
                       pl.BlockSpec((None, M, Dp), lambda b: (b, 0, 0))),
        ),
        compiler_params=pltpu.CompilerParams(
            dimension_semantics=("parallel",),
            vmem_limit_bytes=vmem_limit,
        ),
    )(mp_bf, wp, bp, wg, bg)

    # ---- Kernel 1: attention core + fused BN statistics ----
    grid = (nh, B, nqh)
    x_spec = pl.BlockSpec((None, TQ, Cp), lambda h, b, q: (b, h * nqh + q, 0))
    const2 = lambda shape: pl.BlockSpec(shape, lambda h, b, q: (0, 0))
    stat_spec = pl.BlockSpec((None, 1, Cp), lambda h, b, q: (h * B + b, 0, 0))

    y, s1, s2 = pl.pallas_call(
        functools.partial(_attn_kernel, n_valid=N, tq=TQ),
        out_shape=(
            jax.ShapeDtypeStruct((B, Np, Cp), jnp.bfloat16),
            jax.ShapeDtypeStruct((nh * B, 1, Cp), jnp.float32),
            jax.ShapeDtypeStruct((nh * B, 1, Cp), jnp.float32),
        ),
        grid_spec=pltpu.PrefetchScalarGridSpec(
            num_scalar_prefetch=0,
            grid=grid,
            in_specs=[
                x_spec,                                                     # x tile
                pl.BlockSpec((None, Dp, M), lambda h, b, q: (b, 0, 0)),     # phi^T
                pl.BlockSpec((None, M, Dp), lambda h, b, q: (b, 0, 0)),     # g
                const2((Cp, Dp)), const2((1, Dp)),                          # theta w, b
                const2((Dp, Cp)), const2((1, Cp)),                          # out   w, b
            ],
            out_specs=(x_spec, stat_spec, stat_spec),
        ),
        compiler_params=pltpu.CompilerParams(
            dimension_semantics=("parallel", "parallel", "arbitrary"),
            vmem_limit_bytes=vmem_limit,
        ),
    )(x_bf, phit, g, wt, bt, wo, bo)

    # BatchNorm3d (training-mode batch stats, biased variance) from the fused
    # per-(half,batch) sums; only a tiny (nh*B, Cp) reduction in plain JAX.
    count = float(B * N)
    sum_y = jnp.sum(s1[:, 0, :], axis=0)
    sum_sq = jnp.sum(s2[:, 0, :], axis=0)
    mean = sum_y / count
    var = jnp.maximum(sum_sq / count - mean * mean, 0.0)
    inv_std = lax.rsqrt(var + eps)

    gamma = jnp.pad(params["gamma"], ((0, 0), (0, Cp - C_out)))
    beta = jnp.pad(params["beta"], ((0, 0), (0, Cp - C_out)))
    a_vec = gamma * inv_std[None, :]              # (1, Cp) folded BN scale
    c_vec = beta - mean[None, :] * a_vec          # (1, Cp) folded BN shift

    # ---- Kernel 2: streaming BN affine + residual over flattened rows ----
    rows = B * Np
    TR = _largest_aligned_divisor(rows, 1024)
    y2 = y.reshape(rows, Cp)
    r2 = x_res.reshape(rows, Cp)
    row_spec = pl.BlockSpec((TR, Cp), lambda i: (i, 0))
    vec_spec = pl.BlockSpec((1, Cp), lambda i: (0, 0))

    out_flat = pl.pallas_call(
        _bn_residual_kernel,
        out_shape=jax.ShapeDtypeStruct((rows, Cp), jnp.float32),
        grid_spec=pltpu.PrefetchScalarGridSpec(
            num_scalar_prefetch=0,
            grid=(rows // TR,),
            in_specs=[row_spec, row_spec, vec_spec, vec_spec],
            out_specs=row_spec,
        ),
        compiler_params=pltpu.CompilerParams(
            dimension_semantics=("parallel",),
            vmem_limit_bytes=vmem_limit,
        ),
        input_output_aliases={1: 0},   # reuse the f32 residual's HBM buffer
    )(y2, r2, a_vec, c_vec)

    out = out_flat.reshape(B, Np, Cp)[:, :N, :C_out]
    return jnp.transpose(out.reshape(B, T, H, W, C_out), (0, 4, 1, 2, 3))


# ---------------------------------------------------------------------------
# Pure-JAX (f32) reference with the same math, for a correctness check
# ---------------------------------------------------------------------------
def nonlocal_block_ref(x, params, dim_inner, eps=1e-5):
    B, C_in, T, H, W = x.shape
    C_out = params["w_out"].shape[1]
    mp = x.reshape(B, C_in, T, H // 2, 2, W // 2, 2).max(axis=(4, 6))
    xf = jnp.transpose(x, (0, 2, 3, 4, 1)).reshape(B, -1, C_in)
    mf = jnp.transpose(mp, (0, 2, 3, 4, 1)).reshape(B, -1, C_in)
    theta = xf @ params["w_theta"] + params["b_theta"]
    phi = mf @ params["w_phi"] + params["b_phi"]
    g = mf @ params["w_g"] + params["b_g"]
    attn = jnp.einsum("bnd,bmd->bnm", theta, phi) * (dim_inner ** -0.5)
    p = jax.nn.softmax(attn, axis=-1)
    t = jnp.einsum("bnm,bmd->bnd", p, g)
    y = t @ params["w_out"] + params["b_out"]
    mean = y.mean(axis=(0, 1))
    var = ((y - mean) ** 2).mean(axis=(0, 1))
    yn = (y - mean) / jnp.sqrt(var + eps) * params["gamma"] + params["beta"] + xf
    return jnp.transpose(yn.reshape(B, T, H, W, C_out), (0, 4, 1, 2, 3))


if __name__ == "__main__":
    # Small shapes: B=2, dim_in=dim_out=8, dim_inner=4, T=2, H=W=16
    # (N = 512 query positions, M = 128 pooled positions).
    B, C_in, T, H, W = 2, 8, 2, 16, 16
    dim_inner, dim_out = 4, 8   # dim_out must equal dim_in for the residual

    key = jax.random.PRNGKey(0)
    ks = jax.random.split(key, 10)
    x = jax.random.normal(ks[0], (B, C_in, T, H, W), dtype=jnp.float32)

    def winit(k, ci, co):
        return jax.random.normal(k, (ci, co), dtype=jnp.float32) * 0.4

    params = {
        "w_theta": winit(ks[1], C_in, dim_inner),
        "b_theta": jax.random.normal(ks[2], (1, dim_inner), jnp.float32) * 0.1,
        "w_phi":   winit(ks[3], C_in, dim_inner),
        "b_phi":   jax.random.normal(ks[4], (1, dim_inner), jnp.float32) * 0.1,
        "w_g":     winit(ks[5], C_in, dim_inner),
        "b_g":     jax.random.normal(ks[6], (1, dim_inner), jnp.float32) * 0.1,
        "w_out":   winit(ks[7], dim_inner, dim_out),
        "b_out":   jax.random.normal(ks[8], (1, dim_out), jnp.float32) * 0.1,
        # BatchNorm3d default init: weight=1, bias=0 (training-mode batch stats)
        "gamma":   jnp.ones((1, dim_out), dtype=jnp.float32),
        "beta":    jnp.zeros((1, dim_out), dtype=jnp.float32),
    }

    fwd = jax.jit(nonlocal_block, static_argnums=(2,))
    out = jax.block_until_ready(fwd(x, params, dim_inner))
    ref = jax.block_until_ready(nonlocal_block_ref(x, params, dim_inner))

    assert out.shape == (B, dim_out, T, H, W)
    max_err = float(jnp.max(jnp.abs(out - ref)))
    # bf16 MXU operands, bf16 exp/y and the approx reciprocal amplify rounding
    # -> loose tolerance against the pure-f32 reference.
    assert jnp.allclose(out, ref, rtol=1e-1, atol=1e-1), (
        f"mismatch vs f32 reference (max abs err = {max_err:.4f})")

    print("KERNEL_OK")
</pallas_src>

<mosaic_0001>
module attributes {stable_mosaic.version = 11 : i64} {
  func.func @_phi_g_kernel(%arg0: i32, %arg1: memref<1x128x128xbf16, #tpu.memory_space<vmem>>, %arg2: memref<128x128xbf16, #tpu.memory_space<vmem>>, %arg3: memref<1x128xf32, #tpu.memory_space<vmem>>, %arg4: memref<128x128xbf16, #tpu.memory_space<vmem>>, %arg5: memref<1x128xf32, #tpu.memory_space<vmem>>, %arg6: memref<1x128x128xbf16, #tpu.memory_space<vmem>>, %arg7: memref<1x128x128xbf16, #tpu.memory_space<vmem>>) attributes {dimension_semantics = [#tpu.dimension_semantics<parallel>], iteration_bounds = array<i64: 2>, scalar_prefetch = 0 : i64, scratch_operands = 0 : i64, tpu.core_type = #tpu.core_type<tc>, window_params = [{transform_indices = @transform_0, window_bounds = array<i64: 1, 128, 128>}, {pipeline_mode = #tpu.pipeline_mode<synchronous>, transform_indices = @transform_1, window_bounds = array<i64: 128, 128>}, {pipeline_mode = #tpu.pipeline_mode<synchronous>, transform_indices = @transform_2, window_bounds = array<i64: 1, 128>}, {pipeline_mode = #tpu.pipeline_mode<synchronous>, transform_indices = @transform_3, window_bounds = array<i64: 128, 128>}, {pipeline_mode = #tpu.pipeline_mode<synchronous>, transform_indices = @transform_4, window_bounds = array<i64: 1, 128>}, {transform_indices = @transform_5, window_bounds = array<i64: 1, 128, 128>}, {transform_indices = @transform_6, window_bounds = array<i64: 1, 128, 128>}]} {
    %c0 = arith.constant 0 : index
    %c0_0 = arith.constant 0 : index
    %c0_1 = arith.constant 0 : index
    %0 = vector.load %arg1[%c0, %c0_0, %c0_1] : memref<1x128x128xbf16, #tpu.memory_space<vmem>>, vector<1x128x128xbf16>
    %1 = vector.shape_cast %0 : vector<1x128x128xbf16> to vector<128x128xbf16>
    %c0_2 = arith.constant 0 : index
    %c0_3 = arith.constant 0 : index
    %2 = vector.load %arg2[%c0_2, %c0_3] : memref<128x128xbf16, #tpu.memory_space<vmem>>, vector<128x128xbf16>
    %cst = arith.constant dense<0.000000e+00> : vector<128x128xf32>
    %3 = tpu.matmul %1, %2, %cst {dimension_numbers = #tpu.dot_dimension_numbers<[1], [0], [0], [1], [0, 0, 1, 1], [], []>} : vector<128x128xbf16>, vector<128x128xbf16>, vector<128x128xf32> -> vector<128x128xf32>
    %c0_4 = arith.constant 0 : index
    %c0_5 = arith.constant 0 : index
    %4 = vector.load %arg3[%c0_4, %c0_5] : memref<1x128xf32, #tpu.memory_space<vmem>>, vector<1x128xf32>
    %5 = vector.broadcast %4 : vector<1x128xf32> to vector<128x128xf32>
    %6 = arith.addf %3, %5 : vector<128x128xf32>
    %c0_6 = arith.constant 0 : index
    %c0_7 = arith.constant 0 : index
    %7 = vector.load %arg4[%c0_6, %c0_7] : memref<128x128xbf16, #tpu.memory_space<vmem>>, vector<128x128xbf16>
    %cst_8 = arith.constant dense<0.000000e+00> : vector<128x128xf32>
    %8 = tpu.matmul %1, %7, %cst_8 {dimension_numbers = #tpu.dot_dimension_numbers<[1], [0], [0], [1], [0, 0, 1, 1], [], []>} : vector<128x128xbf16>, vector<128x128xbf16>, vector<128x128xf32> -> vector<128x128xf32>
    %c0_9 = arith.constant 0 : index
    %c0_10 = arith.constant 0 : index
    %9 = vector.load %arg5[%c0_9, %c0_10] : memref<1x128xf32, #tpu.memory_space<vmem>>, vector<1x128xf32>
    %10 = vector.broadcast %9 : vector<1x128xf32> to vector<128x128xf32>
    %11 = arith.addf %8, %10 : vector<128x128xf32>
    %12 = tpu.transpose %6, [1, 0] : vector<128x128xf32> -> vector<128x128xf32>
    %13 = arith.truncf %12 : vector<128x128xf32> to vector<128x128xbf16>
    %c0_11 = arith.constant 0 : index
    %c0_12 = arith.constant 0 : index
    %c0_13 = arith.constant 0 : index
    %14 = vector.load %arg6[%c0_11, %c0_12, %c0_13] : memref<1x128x128xbf16, #tpu.memory_space<vmem>>, vector<1x128x128xbf16>
    %15 = vector.shape_cast %14 : vector<1x128x128xbf16> to vector<128x128xbf16>
    %16 = vector.shape_cast %13 : vector<128x128xbf16> to vector<1x128x128xbf16>
    tpu.vector_store %arg6[%c0_11, %c0_12, %c0_13], %16 {strides = array<i32>} : memref<1x128x128xbf16, #tpu.memory_space<vmem>>, vector<1x128x128xbf16>,
    %17 = arith.truncf %11 : vector<128x128xf32> to vector<128x128xbf16>
    %c0_14 = arith.constant 0 : index
    %c0_15 = arith.constant 0 : index
    %c0_16 = arith.constant 0 : index
    %18 = vector.load %arg7[%c0_14, %c0_15, %c0_16] : memref<1x128x128xbf16, #tpu.memory_space<vmem>>, vector<1x128x128xbf16>
    %19 = vector.shape_cast %18 : vector<1x128x128xbf16> to vector<128x128xbf16>
    %20 = vector.shape_cast %17 : vector<128x128xbf16> to vector<1x128x128xbf16>
    tpu.vector_store %arg7[%c0_14, %c0_15, %c0_16], %20 {strides = array<i32>} : memref<1x128x128xbf16, #tpu.memory_space<vmem>>, vector<1x128x128xbf16>,
    return
  }
  func.func @transform_0(%arg0: i32) -> (i32, i32, i32) {
    %c0_i32 = arith.constant 0 : i32
    %c0_i32_0 = arith.constant 0 : i32
    %c0_i32_1 = arith.constant 0 : i32
    return %arg0, %c0_i32, %c0_i32_0 : i32, i32, i32
  }
  func.func @transform_1(%arg0: i32) -> (i32, i32) {
    %c0_i32 = arith.constant 0 : i32
    %c0_i32_0 = arith.constant 0 : i32
    %c0_i32_1 = arith.constant 0 : i32
    return %c0_i32, %c0_i32_0 : i32, i32
  }
  func.func @transform_2(%arg0: i32) -> (i32, i32) {
    %c0_i32 = arith.constant 0 : i32
    %c0_i32_0 = arith.constant 0 : i32
    %c0_i32_1 = arith.constant 0 : i32
    return %c0_i32, %c0_i32_0 : i32, i32
  }
  func.func @transform_3(%arg0: i32) -> (i32, i32) {
    %c0_i32 = arith.constant 0 : i32
    %c0_i32_0 = arith.constant 0 : i32
    %c0_i32_1 = arith.constant 0 : i32
    return %c0_i32, %c0_i32_0 : i32, i32
  }
  func.func @transform_4(%arg0: i32) -> (i32, i32) {
    %c0_i32 = arith.constant 0 : i32
    %c0_i32_0 = arith.constant 0 : i32
    %c0_i32_1 = arith.constant 0 : i32
    return %c0_i32, %c0_i32_0 : i32, i32
  }
  func.func @transform_5(%arg0: i32) -> (i32, i32, i32) {
    %c0_i32 = arith.constant 0 : i32
    %c0_i32_0 = arith.constant 0 : i32
    %c0_i32_1 = arith.constant 0 : i32
    return %arg0, %c0_i32, %c0_i32_0 : i32, i32, i32
  }
  func.func @transform_6(%arg0: i32) -> (i32, i32, i32) {
    %c0_i32 = arith.constant 0 : i32
    %c0_i32_0 = arith.constant 0 : i32
    %c0_i32_1 = arith.constant 0 : i32
    return %arg0, %c0_i32, %c0_i32_0 : i32, i32, i32
  }
}

module attributes {stable_mosaic.version = 11 : i64} {
  func.func @_attn_kernel(%arg0: i32, %arg1: i32, %arg2: i32, %arg3: memref<1x512x128xbf16, #tpu.memory_space<vmem>>, %arg4: memref<1x128x128xbf16, #tpu.memory_space<vmem>>, %arg5: memref<1x128x128xbf16, #tpu.memory_space<vmem>>, %arg6: memref<128x128xbf16, #tpu.memory_space<vmem>>, %arg7: memref<1x128xf32, #tpu.memory_space<vmem>>, %arg8: memref<128x128xbf16, #tpu.memory_space<vmem>>, %arg9: memref<1x128xf32, #tpu.memory_space<vmem>>, %arg10: memref<1x512x128xbf16, #tpu.memory_space<vmem>>, %arg11: memref<1x1x128xf32, #tpu.memory_space<vmem>>, %arg12: memref<1x1x128xf32, #tpu.memory_space<vmem>>) attributes {dimension_semantics = [#tpu.dimension_semantics<parallel>, #tpu.dimension_semantics<parallel>, #tpu.dimension_semantics<arbitrary>], iteration_bounds = array<i64: 1, 2, 1>, scalar_prefetch = 0 : i64, scratch_operands = 0 : i64, tpu.core_type = #tpu.core_type<tc>, window_params = [{transform_indices = @transform_0, window_bounds = array<i64: 1, 512, 128>}, {transform_indices = @transform_1, window_bounds = array<i64: 1, 128, 128>}, {transform_indices = @transform_2, window_bounds = array<i64: 1, 128, 128>}, {pipeline_mode = #tpu.pipeline_mode<synchronous>, transform_indices = @transform_3, window_bounds = array<i64: 128, 128>}, {pipeline_mode = #tpu.pipeline_mode<synchronous>, transform_indices = @transform_4, window_bounds = array<i64: 1, 128>}, {pipeline_mode = #tpu.pipeline_mode<synchronous>, transform_indices = @transform_5, window_bounds = array<i64: 128, 128>}, {pipeline_mode = #tpu.pipeline_mode<synchronous>, transform_indices = @transform_6, window_bounds = array<i64: 1, 128>}, {transform_indices = @transform_7, window_bounds = array<i64: 1, 512, 128>}, {transform_indices = @transform_8, window_bounds = array<i64: 1, 1, 128>}, {transform_indices = @transform_9, window_bounds = array<i64: 1, 1, 128>}]} {
    %c0 = arith.constant 0 : index
    %c0_0 = arith.constant 0 : index
    %c0_1 = arith.constant 0 : index
    %0 = vector.load %arg3[%c0, %c0_0, %c0_1] : memref<1x512x128xbf16, #tpu.memory_space<vmem>>, vector<1x512x128xbf16>
    %1 = vector.shape_cast %0 : vector<1x512x128xbf16> to vector<512x128xbf16>
    %c0_2 = arith.constant 0 : index
    %c0_3 = arith.constant 0 : index
    %2 = vector.load %arg6[%c0_2, %c0_3] : memref<128x128xbf16, #tpu.memory_space<vmem>>, vector<128x128xbf16>
    %cst = arith.constant dense<0.000000e+00> : vector<512x128xf32>
    %3 = tpu.matmul %1, %2, %cst {dimension_numbers = #tpu.dot_dimension_numbers<[1], [0], [0], [1], [0, 0, 1, 1], [], []>} : vector<512x128xbf16>, vector<128x128xbf16>, vector<512x128xf32> -> vector<512x128xf32>
    %c0_4 = arith.constant 0 : index
    %c0_5 = arith.constant 0 : index
    %4 = vector.load %arg7[%c0_4, %c0_5] : memref<1x128xf32, #tpu.memory_space<vmem>>, vector<1x128xf32>
    %5 = vector.broadcast %4 : vector<1x128xf32> to vector<512x128xf32>
    %6 = arith.addf %3, %5 : vector<512x128xf32>
    %7 = arith.truncf %6 : vector<512x128xf32> to vector<512x128xbf16>
    %c0_6 = arith.constant 0 : index
    %c0_7 = arith.constant 0 : index
    %c0_8 = arith.constant 0 : index
    %8 = vector.load %arg4[%c0_6, %c0_7, %c0_8] : memref<1x128x128xbf16, #tpu.memory_space<vmem>>, vector<1x128x128xbf16>
    %9 = vector.shape_cast %8 : vector<1x128x128xbf16> to vector<128x128xbf16>
    %cst_9 = arith.constant dense<0.000000e+00> : vector<512x128xf32>
    %10 = tpu.matmul %7, %9, %cst_9 {dimension_numbers = #tpu.dot_dimension_numbers<[1], [0], [0], [1], [0, 0, 1, 1], [], []>} : vector<512x128xbf16>, vector<128x128xbf16>, vector<512x128xf32> -> vector<512x128xf32>
    %cst_10 = arith.constant dense<0xFF800000> : vector<512xf32>
    %11 = vector.multi_reduction <maximumf>, %10, %cst_10 [1] : vector<512x128xf32> to vector<512xf32>
    %12 = vector.shape_cast %11 : vector<512xf32> to vector<512x1xf32>
    %13 = vector.broadcast %12 : vector<512x1xf32> to vector<512x128xf32>
    %14 = arith.subf %10, %13 : vector<512x128xf32>
    %15 = arith.truncf %14 : vector<512x128xf32> to vector<512x128xbf16>
    %16 = math.exp %15 : vector<512x128xbf16>
    %17 = arith.extf %16 : vector<512x128xbf16> to vector<512x128xf32>
    %cst_11 = arith.constant dense<0.000000e+00> : vector<512xf32>
    %18 = vector.multi_reduction <add>, %17, %cst_11 [1] : vector<512x128xf32> to vector<512xf32>
    %19 = vector.shape_cast %18 : vector<512xf32> to vector<512x1xf32>
    %c0_12 = arith.constant 0 : index
    %c0_13 = arith.constant 0 : index
    %c0_14 = arith.constant 0 : index
    %20 = vector.load %arg5[%c0_12, %c0_13, %c0_14] : memref<1x128x128xbf16, #tpu.memory_space<vmem>>, vector<1x128x128xbf16>
    %21 = vector.shape_cast %20 : vector<1x128x128xbf16> to vector<128x128xbf16>
    %cst_15 = arith.constant dense<0.000000e+00> : vector<512x128xf32>
    %22 = tpu.matmul %16, %21, %cst_15 {dimension_numbers = #tpu.dot_dimension_numbers<[1], [0], [0], [1], [0, 0, 1, 1], [], []>} : vector<512x128xbf16>, vector<128x128xbf16>, vector<512x128xf32> -> vector<512x128xf32>
    %23 = tpu.reciprocal %19 {approx = true} : vector<512x1xf32> -> vector<512x1xf32>
    %24 = vector.broadcast %23 : vector<512x1xf32> to vector<512x128xf32>
    %25 = arith.mulf %22, %24 : vector<512x128xf32>
    %26 = arith.truncf %25 : vector<512x128xf32> to vector<512x128xbf16>
    %c0_16 = arith.constant 0 : index
    %c0_17 = arith.constant 0 : index
    %27 = vector.load %arg8[%c0_16, %c0_17] : memref<128x128xbf16, #tpu.memory_space<vmem>>, vector<128x128xbf16>
    %cst_18 = arith.constant dense<0.000000e+00> : vector<512x128xf32>
    %28 = tpu.matmul %26, %27, %cst_18 {dimension_numbers = #tpu.dot_dimension_numbers<[1], [0], [0], [1], [0, 0, 1, 1], [], []>} : vector<512x128xbf16>, vector<128x128xbf16>, vector<512x128xf32> -> vector<512x128xf32>
    %c0_19 = arith.constant 0 : index
    %c0_20 = arith.constant 0 : index
    %29 = vector.load %arg9[%c0_19, %c0_20] : memref<1x128xf32, #tpu.memory_space<vmem>>, vector<1x128xf32>
    %30 = vector.broadcast %29 : vector<1x128xf32> to vector<512x128xf32>
    %31 = arith.addf %28, %30 : vector<512x128xf32>
    %32 = arith.truncf %31 : vector<512x128xf32> to vector<512x128xbf16>
    %c0_21 = arith.constant 0 : index
    %c0_22 = arith.constant 0 : index
    %c0_23 = arith.constant 0 : index
    %33 = vector.load %arg10[%c0_21, %c0_22, %c0_23] : memref<1x512x128xbf16, #tpu.memory_space<vmem>>, vector<1x512x128xbf16>
    %34 = vector.shape_cast %33 : vector<1x512x128xbf16> to vector<512x128xbf16>
    %35 = vector.shape_cast %32 : vector<512x128xbf16> to vector<1x512x128xbf16>
    tpu.vector_store %arg10[%c0_21, %c0_22, %c0_23], %35 {strides = array<i32>} : memref<1x512x128xbf16, #tpu.memory_space<vmem>>, vector<1x512x128xbf16>,
    %c0_i32 = arith.constant 0 : i32
    %36 = arith.cmpi eq, %arg2, %c0_i32 : i32
    %37 = arith.extui %36 : i1 to i32
    %c0_i32_24 = arith.constant 0 : i32
    %38 = arith.cmpi ne, %37, %c0_i32_24 : i32
    scf.if %38 {
      %cst_39 = arith.constant 0.000000e+00 : f32
      %56 = vector.broadcast %cst_39 : f32 to vector<1x128xf32>
      %c0_40 = arith.constant 0 : index
      %c0_41 = arith.constant 0 : index
      %c0_42 = arith.constant 0 : index
      %57 = vector.load %arg11[%c0_40, %c0_41, %c0_42] : memref<1x1x128xf32, #tpu.memory_space<vmem>>, vector<1x1x128xf32>
      %58 = vector.shape_cast %57 : vector<1x1x128xf32> to vector<1x128xf32>
      %59 = vector.shape_cast %56 : vector<1x128xf32> to vector<1x1x128xf32>
      tpu.vector_store %arg11[%c0_40, %c0_41, %c0_42], %59 {strides = array<i32>} : memref<1x1x128xf32, #tpu.memory_space<vmem>>, vector<1x1x128xf32>,
      %cst_43 = arith.constant 0.000000e+00 : f32
      %60 = vector.broadcast %cst_43 : f32 to vector<1x128xf32>
      %c0_44 = arith.constant 0 : index
      %c0_45 = arith.constant 0 : index
      %c0_46 = arith.constant 0 : index
      %61 = vector.load %arg12[%c0_44, %c0_45, %c0_46] : memref<1x1x128xf32, #tpu.memory_space<vmem>>, vector<1x1x128xf32>
      %62 = vector.shape_cast %61 : vector<1x1x128xf32> to vector<1x128xf32>
      %63 = vector.shape_cast %60 : vector<1x128xf32> to vector<1x1x128xf32>
      tpu.vector_store %arg12[%c0_44, %c0_45, %c0_46], %63 {strides = array<i32>} : memref<1x1x128xf32, #tpu.memory_space<vmem>>, vector<1x1x128xf32>,
    } else {
    }
    %c0_25 = arith.constant 0 : index
    %c0_26 = arith.constant 0 : index
    %c0_27 = arith.constant 0 : index
    %39 = vector.load %arg11[%c0_25, %c0_26, %c0_27] : memref<1x1x128xf32, #tpu.memory_space<vmem>>, vector<1x1x128xf32>
    %40 = vector.shape_cast %39 : vector<1x1x128xf32> to vector<1x128xf32>
    %cst_28 = arith.constant dense<0.000000e+00> : vector<128xf32>
    %41 = vector.multi_reduction <add>, %31, %cst_28 [0] : vector<512x128xf32> to vector<128xf32>
    %42 = vector.shape_cast %41 : vector<128xf32> to vector<1x128xf32>
    %43 = arith.addf %40, %42 : vector<1x128xf32>
    %c0_29 = arith.constant 0 : index
    %c0_30 = arith.constant 0 : index
    %c0_31 = arith.constant 0 : index
    %44 = vector.load %arg11[%c0_29, %c0_30, %c0_31] : memref<1x1x128xf32, #tpu.memory_space<vmem>>, vector<1x1x128xf32>
    %45 = vector.shape_cast %44 : vector<1x1x128xf32> to vector<1x128xf32>
    %46 = vector.shape_cast %43 : vector<1x128xf32> to vector<1x1x128xf32>
    tpu.vector_store %arg11[%c0_29, %c0_30, %c0_31], %46 {strides = array<i32>} : memref<1x1x128xf32, #tpu.memory_space<vmem>>, vector<1x1x128xf32>,
    %c0_32 = arith.constant 0 : index
    %c0_33 = arith.constant 0 : index
    %c0_34 = arith.constant 0 : index
    %47 = vector.load %arg12[%c0_32, %c0_33, %c0_34] : memref<1x1x128xf32, #tpu.memory_space<vmem>>, vector<1x1x128xf32>
    %48 = vector.shape_cast %47 : vector<1x1x128xf32> to vector<1x128xf32>
    %49 = arith.mulf %31, %31 : vector<512x128xf32>
    %cst_35 = arith.constant dense<0.000000e+00> : vector<128xf32>
    %50 = vector.multi_reduction <add>, %49, %cst_35 [0] : vector<512x128xf32> to vector<128xf32>
    %51 = vector.shape_cast %50 : vector<128xf32> to vector<1x128xf32>
    %52 = arith.addf %48, %51 : vector<1x128xf32>
    %c0_36 = arith.constant 0 : index
    %c0_37 = arith.constant 0 : index
    %c0_38 = arith.constant 0 : index
    %53 = vector.load %arg12[%c0_36, %c0_37, %c0_38] : memref<1x1x128xf32, #tpu.memory_space<vmem>>, vector<1x1x128xf32>
    %54 = vector.shape_cast %53 : vector<1x1x128xf32> to vector<1x128xf32>
    %55 = vector.shape_cast %52 : vector<1x128xf32> to vector<1x1x128xf32>
    tpu.vector_store %arg12[%c0_36, %c0_37, %c0_38], %55 {strides = array<i32>} : memref<1x1x128xf32, #tpu.memory_space<vmem>>, vector<1x1x128xf32>,
    return
  }
  func.func @transform_0(%arg0: i32, %arg1: i32, %arg2: i32) -> (i32, i32, i32) {
    %c1_i32 = arith.constant 1 : i32
    %0 = arith.muli %arg0, %c1_i32 : i32
    %1 = arith.addi %0, %arg2 : i32
    %c0_i32 = arith.constant 0 : i32
    %c0_i32_0 = arith.constant 0 : i32
    return %arg1, %1, %c0_i32 : i32, i32, i32
  }
  func.func @transform_1(%arg0: i32, %arg1: i32, %arg2: i32) -> (i32, i32, i32) {
    %c0_i32 = arith.constant 0 : i32
    %c0_i32_0 = arith.constant 0 : i32
    %c0_i32_1 = arith.constant 0 : i32
    return %arg1, %c0_i32, %c0_i32_0 : i32, i32, i32
  }
  func.func @transform_2(%arg0: i32, %arg1: i32, %arg2: i32) -> (i32, i32, i32) {
    %c0_i32 = arith.constant 0 : i32
    %c0_i32_0 = arith.constant 0 : i32
    %c0_i32_1 = arith.constant 0 : i32
    return %arg1, %c0_i32, %c0_i32_0 : i32, i32, i32
  }
  func.func @transform_3(%arg0: i32, %arg1: i32, %arg2: i32) -> (i32, i32) {
    %c0_i32 = arith.constant 0 : i32
    %c0_i32_0 = arith.constant 0 : i32
    %c0_i32_1 = arith.constant 0 : i32
    return %c0_i32, %c0_i32_0 : i32, i32
  }
  func.func @transform_4(%arg0: i32, %arg1: i32, %arg2: i32) -> (i32, i32) {
    %c0_i32 = arith.constant 0 : i32
    %c0_i32_0 = arith.constant 0 : i32
    %c0_i32_1 = arith.constant 0 : i32
    return %c0_i32, %c0_i32_0 : i32, i32
  }
  func.func @transform_5(%arg0: i32, %arg1: i32, %arg2: i32) -> (i32, i32) {
    %c0_i32 = arith.constant 0 : i32
    %c0_i32_0 = arith.constant 0 : i32
    %c0_i32_1 = arith.constant 0 : i32
    return %c0_i32, %c0_i32_0 : i32, i32
  }
  func.func @transform_6(%arg0: i32, %arg1: i32, %arg2: i32) -> (i32, i32) {
    %c0_i32 = arith.constant 0 : i32
    %c0_i32_0 = arith.constant 0 : i32
    %c0_i32_1 = arith.constant 0 : i32
    return %c0_i32, %c0_i32_0 : i32, i32
  }
  func.func @transform_7(%arg0: i32, %arg1: i32, %arg2: i32) -> (i32, i32, i32) {
    %c1_i32 = arith.constant 1 : i32
    %0 = arith.muli %arg0, %c1_i32 : i32
    %1 = arith.addi %0, %arg2 : i32
    %c0_i32 = arith.constant 0 : i32
    %c0_i32_0 = arith.constant 0 : i32
    return %arg1, %1, %c0_i32 : i32, i32, i32
  }
  func.func @transform_8(%arg0: i32, %arg1: i32, %arg2: i32) -> (i32, i32, i32) {
    %c2_i32 = arith.constant 2 : i32
    %0 = arith.muli %arg0, %c2_i32 : i32
    %1 = arith.addi %0, %arg1 : i32
    %c0_i32 = arith.constant 0 : i32
    %c0_i32_0 = arith.constant 0 : i32
    %c0_i32_1 = arith.constant 0 : i32
    return %1, %c0_i32, %c0_i32_0 : i32, i32, i32
  }
  func.func @transform_9(%arg0: i32, %arg1: i32, %arg2: i32) -> (i32, i32, i32) {
    %c2_i32 = arith.constant 2 : i32
    %0 = arith.muli %arg0, %c2_i32 : i32
    %1 = arith.addi %0, %arg1 : i32
    %c0_i32 = arith.constant 0 : i32
    %c0_i32_0 = arith.constant 0 : i32
    %c0_i32_1 = arith.constant 0 : i32
    return %1, %c0_i32, %c0_i32_0 : i32, i32, i32
  }
}

module attributes {stable_mosaic.version = 11 : i64} {
  func.func @_bn_residual_kernel(%arg0: i32, %arg1: memref<1024x128xbf16, #tpu.memory_space<vmem>>, %arg2: memref<1024x128xf32, #tpu.memory_space<vmem>>, %arg3: memref<1x128xf32, #tpu.memory_space<vmem>>, %arg4: memref<1x128xf32, #tpu.memory_space<vmem>>, %arg5: memref<1024x128xf32, #tpu.memory_space<vmem>>) attributes {dimension_semantics = [#tpu.dimension_semantics<parallel>], iteration_bounds = array<i64: 1>, scalar_prefetch = 0 : i64, scratch_operands = 0 : i64, tpu.core_type = #tpu.core_type<tc>, window_params = [{transform_indices = @transform_0, window_bounds = array<i64: 1024, 128>}, {transform_indices = @transform_1, window_bounds = array<i64: 1024, 128>}, {pipeline_mode = #tpu.pipeline_mode<synchronous>, transform_indices = @transform_2, window_bounds = array<i64: 1, 128>}, {pipeline_mode = #tpu.pipeline_mode<synchronous>, transform_indices = @transform_3, window_bounds = array<i64: 1, 128>}, {transform_indices = @transform_4, window_bounds = array<i64: 1024, 128>}]} {
    %c0 = arith.constant 0 : index
    %c0_0 = arith.constant 0 : index
    %0 = vector.load %arg1[%c0, %c0_0] : memref<1024x128xbf16, #tpu.memory_space<vmem>>, vector<1024x128xbf16>
    %1 = arith.extf %0 : vector<1024x128xbf16> to vector<1024x128xf32>
    %c0_1 = arith.constant 0 : index
    %c0_2 = arith.constant 0 : index
    %2 = vector.load %arg3[%c0_1, %c0_2] : memref<1x128xf32, #tpu.memory_space<vmem>>, vector<1x128xf32>
    %3 = vector.broadcast %2 : vector<1x128xf32> to vector<1024x128xf32>
    %4 = arith.mulf %1, %3 : vector<1024x128xf32>
    %c0_3 = arith.constant 0 : index
    %c0_4 = arith.constant 0 : index
    %5 = vector.load %arg4[%c0_3, %c0_4] : memref<1x128xf32, #tpu.memory_space<vmem>>, vector<1x128xf32>
    %6 = vector.broadcast %5 : vector<1x128xf32> to vector<1024x128xf32>
    %7 = arith.addf %4, %6 : vector<1024x128xf32>
    %c0_5 = arith.constant 0 : index
    %c0_6 = arith.constant 0 : index
    %8 = vector.load %arg2[%c0_5, %c0_6] : memref<1024x128xf32, #tpu.memory_space<vmem>>, vector<1024x128xf32>
    %9 = arith.addf %7, %8 : vector<1024x128xf32>
    %c0_7 = arith.constant 0 : index
    %c0_8 = arith.constant 0 : index
    %10 = vector.load %arg5[%c0_7, %c0_8] : memref<1024x128xf32, #tpu.memory_space<vmem>>, vector<1024x128xf32>
    tpu.vector_store %arg5[%c0_7, %c0_8], %9 {strides = array<i32>} : memref<1024x128xf32, #tpu.memory_space<vmem>>, vector<1024x128xf32>,
    return
  }
  func.func @transform_0(%arg0: i32) -> (i32, i32) {
    %c0_i32 = arith.constant 0 : i32
    %c0_i32_0 = arith.constant 0 : i32
    return %arg0, %c0_i32 : i32, i32
  }
  func.func @transform_1(%arg0: i32) -> (i32, i32) {
    %c0_i32 = arith.constant 0 : i32
    %c0_i32_0 = arith.constant 0 : i32
    return %arg0, %c0_i32 : i32, i32
  }
  func.func @transform_2(%arg0: i32) -> (i32, i32) {
    %c0_i32 = arith.constant 0 : i32
    %c0_i32_0 = arith.constant 0 : i32
    %c0_i32_1 = arith.constant 0 : i32
    return %c0_i32, %c0_i32_0 : i32, i32
  }
  func.func @transform_3(%arg0: i32) -> (i32, i32) {
    %c0_i32 = arith.constant 0 : i32
    %c0_i32_0 = arith.constant 0 : i32
    %c0_i32_1 = arith.constant 0 : i32
    return %c0_i32, %c0_i32_0 : i32, i32
  }
  func.func @transform_4(%arg0: i32) -> (i32, i32) {
    %c0_i32 = arith.constant 0 : i32
    %c0_i32_0 = arith.constant 0 : i32
    return %arg0, %c0_i32 : i32, i32
  }
}

</mosaic_0001>

<llo_original>
// kernel: nonlocal_block.3
$region0: #{nonlocal_block.3}
  #allocation0 [shape = 'u32[]', space=smem, size = 0x4, offset = 0x4, fixed_abs, tag = 'smem constant byte address 0x4 - core index']
  #allocation1 [shape = 'u32[144,128]{1,0:T(1,128)}', space=vmem, size = 0x12000, scoped, tag = 'internal scratch']
  %s0 = inlined_call_operand.vmem [shape: bf16[2,128,128], index: 0, kind: input, shape index: {}]
  %s1 = inlined_call_operand.vmem [shape: bf16[128,128], index: 1, kind: input, shape index: {}]
  %s2 = inlined_call_operand.vmem [shape: f32[1,128], index: 2, kind: input, shape index: {}]
  %s3 = inlined_call_operand.vmem [shape: bf16[128,128], index: 3, kind: input, shape index: {}]
  %s4 = inlined_call_operand.vmem [shape: f32[1,128], index: 4, kind: input, shape index: {}]
  %s5 = inlined_call_operand.vmem [shape: bf16[2,128,128], index: 5, kind: output, shape index: {0}]
  %s6 = inlined_call_operand.vmem [shape: bf16[2,128,128], index: 6, kind: output, shape index: {1}]
  %7 = xla_tuple %s5, %s6
  %s8 = sld [smem:[#allocation0]]
  $region61: #{nonlocal_block.3} parent=0
    _
  %s10 = ssub.s32 1, %s8
  %s11 = scalar_select 0, %s10, %s8
  loop: start=0, step=1, limit=4
  $region2: #{nonlocal_block.3} parent=0 // loop_pre_header
    _
  $region3: #{nonlocal_block.3} parent=0 // loop_header
    %s13 = sphi 0, %s17
    %p14 = scmp.ge.s32.totalorder %s13, 4
    %s23 = sphi 0, %s25
    %s26 = sphi 0, %s23
    %s27 = sphi 0, %s26
    %s43 = sphi 0, %s27
    %s47 = sphi 0, %s47
    %s49 = sphi 0, %s47
    %s50 = sphi 0, %s49
    %s64 = sphi 0, %s50
    %s68 = sphi 0, %s68
    %s70 = sphi 0, %s68
    %s71 = sphi 0, %s70
    %s85 = sphi 0, %s71
    %s89 = sphi 0, %s89
    %s91 = sphi 0, %s89
    %s92 = sphi 0, %s91
    %s106 = sphi 0, %s92
    %s110 = sphi 0, %s110
    %s112 = sphi 0, %s110
    %s113 = sphi 0, %s112
    %s127 = sphi 0, %s113
    %s133 = sphi 0, %s135
    %s136 = sphi 0, %s133
    %s137 = sphi 0, %s136
    %s153 = sphi 0, %s137
    %s159 = sphi 0, %s161
    %s162 = sphi 0, %s159
    %s163 = sphi 0, %s162
    %s179 = sphi 0, %s163
  $region4: #{nonlocal_block.3} parent=0 // loop_header_branch
    %16 = sbr.rel (%p14) target = $region8
  $region5: #{nonlocal_block.3} parent=0 // loop_body
    %s18 = ssub.s32 %s13, 1
    %s19 = ssub.s32 %s13, 2
    %s20 = sadd.s32 %s13, 1
    %s21 = ssub.s32 %s13, %s20
    %p22 = scmp.eq.s32.totalorder %s21, 0
    %s24 = sadd.s32 %s23, 1
    %s25 = scalar_select %p22, %s23, %s24
    %p28 = pneg %p22
    %p29 = scmp.eq.s32.totalorder %s13, 1
    %p30 = por %p28, %p29
    %p31 = scmp.ne.s32.totalorder %s23, %s26
    %p32 = scmp.eq.s32.totalorder %s13, 0
    %p33 = por %p31, %p32
    %p34 = scmp.ne.s32.totalorder %s23, %s26
    %p35 = scmp.eq.s32.totalorder %s18, 1
    %p36 = por %p34, %p35
    %p37 = scmp.ne.s32.totalorder %s26, %s27
    %p38 = scmp.eq.s32.totalorder %s18, 0
    %p39 = por %p37, %p38
    %p40 = scmp.ne.s32.totalorder %s26, %s27
    %p41 = scmp.eq.s32.totalorder %s19, 1
    %p42 = por %p40, %p41
    %p44 = scmp.ne.s32.totalorder %s27, %s43
    %p45 = scmp.eq.s32.totalorder %s19, 0
    %p46 = por %p44, %p45
    %s48 = sadd.s32 %s47, 1
    %p51 = scmp.eq.s32.totalorder %s13, 1
    %p52 = scmp.ne.s32.totalorder %s47, %s49
    %p53 = scmp.eq.s32.totalorder %s13, 0
    %p54 = por %p52, %p53
    %p55 = scmp.ne.s32.totalorder %s47, %s49
    %p56 = scmp.eq.s32.totalorder %s18, 1
    %p57 = por %p55, %p56
    %p58 = scmp.ne.s32.totalorder %s49, %s50
    %p59 = scmp.eq.s32.totalorder %s18, 0
    %p60 = por %p58, %p59
    %p61 = scmp.ne.s32.totalorder %s49, %s50
    %p62 = scmp.eq.s32.totalorder %s19, 1
    %p63 = por %p61, %p62
    %p65 = scmp.ne.s32.totalorder %s50, %s64
    %p66 = scmp.eq.s32.totalorder %s19, 0
    %p67 = por %p65, %p66
    %s69 = sadd.s32 %s68, 1
    %p72 = scmp.eq.s32.totalorder %s13, 1
    %p73 = scmp.ne.s32.totalorder %s68, %s70
    %p74 = scmp.eq.s32.totalorder %s13, 0
    %p75 = por %p73, %p74
    %p76 = scmp.ne.s32.totalorder %s68, %s70
    %p77 = scmp.eq.s32.totalorder %s18, 1
    %p78 = por %p76, %p77
    %p79 = scmp.ne.s32.totalorder %s70, %s71
    %p80 = scmp.eq.s32.totalorder %s18, 0
    %p81 = por %p79, %p80
    %p82 = scmp.ne.s32.totalorder %s70, %s71
    %p83 = scmp.eq.s32.totalorder %s19, 1
    %p84 = por %p82, %p83
    %p86 = scmp.ne.s32.totalorder %s71, %s85
    %p87 = scmp.eq.s32.totalorder %s19, 0
    %p88 = por %p86, %p87
    %s90 = sadd.s32 %s89, 1
    %p93 = scmp.eq.s32.totalorder %s13, 1
    %p94 = scmp.ne.s32.totalorder %s89, %s91
    %p95 = scmp.eq.s32.totalorder %s13, 0
    %p96 = por %p94, %p95
    %p97 = scmp.ne.s32.totalorder %s89, %s91
    %p98 = scmp.eq.s32.totalorder %s18, 1
    %p99 = por %p97, %p98
    %p100 = scmp.ne.s32.totalorder %s91, %s92
    %p101 = scmp.eq.s32.totalorder %s18, 0
    %p102 = por %p100, %p101
    %p103 = scmp.ne.s32.totalorder %s91, %s92
    %p104 = scmp.eq.s32.totalorder %s19, 1
    %p105 = por %p103, %p104
    %p107 = scmp.ne.s32.totalorder %s92, %s106
    %p108 = scmp.eq.s32.totalorder %s19, 0
    %p109 = por %p107, %p108
    %s111 = sadd.s32 %s110, 1
    %p114 = scmp.eq.s32.totalorder %s13, 1
    %p115 = scmp.ne.s32.totalorder %s110, %s112
    %p116 = scmp.eq.s32.totalorder %s13, 0
    %p117 = por %p115, %p116
    %p118 = scmp.ne.s32.totalorder %s110, %s112
    %p119 = scmp.eq.s32.totalorder %s18, 1
    %p120 = por %p118, %p119
    %p121 = scmp.ne.s32.totalorder %s112, %s113
    %p122 = scmp.eq.s32.totalorder %s18, 0
    %p123 = por %p121, %p122
    %p124 = scmp.ne.s32.totalorder %s112, %s113
    %p125 = scmp.eq.s32.totalorder %s19, 1
    %p126 = por %p124, %p125
    %p128 = scmp.ne.s32.totalorder %s113, %s127
    %p129 = scmp.eq.s32.totalorder %s19, 0
    %p130 = por %p128, %p129
    %s131 = ssub.s32 %s13, %s20
    %p132 = scmp.eq.s32.totalorder %s131, 0
    %s134 = sadd.s32 %s133, 1
    %s135 = scalar_select %p132, %s133, %s134
    %p138 = pneg %p132
    %p139 = scmp.eq.s32.totalorder %s13, 1
    %p140 = por %p138, %p139
    %p141 = scmp.ne.s32.totalorder %s133, %s136
    %p142 = scmp.eq.s32.totalorder %s13, 0
    %p143 = por %p141, %p142
    %p144 = scmp.ne.s32.totalorder %s133, %s136
    %p145 = scmp.eq.s32.totalorder %s18, 1
    %p146 = por %p144, %p145
    %p147 = scmp.ne.s32.totalorder %s136, %s137
    %p148 = scmp.eq.s32.totalorder %s18, 0
    %p149 = por %p147, %p148
    %p150 = scmp.ne.s32.totalorder %s136, %s137
    %p151 = scmp.eq.s32.totalorder %s19, 1
    %p152 = por %p150, %p151
    %p154 = scmp.ne.s32.totalorder %s137, %s153
    %p155 = scmp.eq.s32.totalorder %s19, 0
    %p156 = por %p154, %p155
    %s157 = ssub.s32 %s13, %s20
    %p158 = scmp.eq.s32.totalorder %s157, 0
    %s160 = sadd.s32 %s159, 1
    %s161 = scalar_select %p158, %s159, %s160
    %p164 = pneg %p158
    %p165 = scmp.eq.s32.totalorder %s13, 1
    %p166 = por %p164, %p165
    %p167 = scmp.ne.s32.totalorder %s159, %s162
    %p168 = scmp.eq.s32.totalorder %s13, 0
    %p169 = por %p167, %p168
    %p170 = scmp.ne.s32.totalorder %s159, %s162
    %p171 = scmp.eq.s32.totalorder %s18, 1
    %p172 = por %p170, %p171
    %p173 = scmp.ne.s32.totalorder %s162, %s163
    %p174 = scmp.eq.s32.totalorder %s18, 0
    %p175 = por %p173, %p174
    %p176 = scmp.ne.s32.totalorder %s162, %s163
    %p177 = scmp.eq.s32.totalorder %s19, 1
    %p178 = por %p176, %p177
    %p180 = scmp.ne.s32.totalorder %s163, %s179
    %p181 = scmp.eq.s32.totalorder %s19, 0
    %p182 = por %p180, %p181
    %p183 = scmp.le.s32.totalorder 1, %s13
    %p184 = scmp.lt.s32.totalorder %s13, 3
    %p185 = pnand %p183, %p184
    %p186 = pneg %p185
    // Predicated region
    $region9: #{nonlocal_block.3} parent=5 // pred_check
      _
    $region10: #{nonlocal_block.3} parent=5 // pred_check_branch
      %188 = sbr.rel (%p185) target = $region12
    $region11: #{nonlocal_block.3} parent=5 // pred_region
      %s189 = ssub.s32 %s13, 1
      // Predicated region
      $region13: #{nonlocal_block.3} parent=11 // pred_check
        %p190 = pneg %p60
      $region14: #{nonlocal_block.3} parent=11 // pred_check_branch
        %192 = sbr.rel (%p190) target = $region16
      $region15: #{nonlocal_block.3} parent=11 // pred_region
        _
      $region16: #{nonlocal_block.3} parent=11 // pred_fallthru
        _
      // Predicated region
      $region17: #{nonlocal_block.3} parent=11 // pred_check
        %p193 = pneg %p81
      $region18: #{nonlocal_block.3} parent=11 // pred_check_branch
        %195 = sbr.rel (%p193) target = $region20
      $region19: #{nonlocal_block.3} parent=11 // pred_region
        _
      $region20: #{nonlocal_block.3} parent=11 // pred_fallthru
        _
      // Predicated region
      $region21: #{nonlocal_block.3} parent=11 // pred_check
        %p196 = pneg %p102
      $region22: #{nonlocal_block.3} parent=11 // pred_check_branch
        %198 = sbr.rel (%p196) target = $region24
      $region23: #{nonlocal_block.3} parent=11 // pred_region
        _
      $region24: #{nonlocal_block.3} parent=11 // pred_fallthru
        _
      // Predicated region
      $region25: #{nonlocal_block.3} parent=11 // pred_check
        %p199 = pneg %p123
      $region26: #{nonlocal_block.3} parent=11 // pred_check_branch
        %201 = sbr.rel (%p199) target = $region28
      $region27: #{nonlocal_block.3} parent=11 // pred_region
        _
      $region28: #{nonlocal_block.3} parent=11 // pred_fallthru
        _
    $region12: #{nonlocal_block.3} parent=5 // pred_fallthru
      _
    %p202 = scmp.lt.s32.totalorder %s13, 2
    // Predicated region
    $region29: #{nonlocal_block.3} parent=5 // pred_check
      %p203 = pneg %p202
    $region30: #{nonlocal_block.3} parent=5 // pred_check_branch
      %205 = sbr.rel (%p203) target = $region32
    $region31: #{nonlocal_block.3} parent=5 // pred_region
      // Predicated region
      $region33: #{nonlocal_block.3} parent=31 // pred_check
        %p206 = pneg %p33
      $region34: #{nonlocal_block.3} parent=31 // pred_check_branch
        %208 = sbr.rel (%p206) target = $region36
      $region35: #{nonlocal_block.3} parent=31 // pred_region
        %p209 = scmp.lt.s32.totalorder %s13, 1
        %s210 = scalar_select %p209, %s13, 1
        %s211 = smul.addr %s210, 16
        %s212 = smul.addr %s211, 4
        %s213 = scalar_lea.vmem %s0, %s212
      $region36: #{nonlocal_block.3} parent=31 // pred_fallthru
        _
    $region32: #{nonlocal_block.3} parent=5 // pred_fallthru
      _
    %p214 = scmp.le.s32.totalorder 1, %s13
    %p215 = scmp.lt.s32.totalorder %s13, 3
    %p216 = pnand %p214, %p215
    %p217 = pneg %p216
    // Predicated region
    $region37: #{nonlocal_block.3} parent=5 // pred_check
      _
    $region38: #{nonlocal_block.3} parent=5 // pred_check_branch
      %219 = sbr.rel (%p216) target = $region40
    $region39: #{nonlocal_block.3} parent=5 // pred_region
      %s220 = ssub.s32 %s13, 1
      %p221 = scmp.lt.s32.totalorder %s18, 1
      %s222 = scalar_select %p221, %s18, 1
      %s223 = smul.addr %s222, 16
      %s224 = smul.addr %s223, 4
      %s225 = scalar_lea.vmem %s0, %s224
      %p226 = pneg %p39
      %p227 = pneg %p36
      %p228 = pneg %p60
      %p229 = pneg %p57
      %p230 = pneg %p81
      %p231 = pneg %p78
      %p232 = pneg %p102
      %p233 = pneg %p99
      %p234 = pneg %p123
      %p235 = pneg %p120
      %p236 = pneg %p149
      %p237 = pneg %p146
      %p238 = scmp.lt.s32.totalorder %s18, 1
      %s239 = scalar_select %p238, %s18, 1
      %s240 = smul.addr %s239, 16
      %s241 = smul.addr %s240, 4
      %s242 = scalar_lea.vmem %s5, %s241
      %p243 = pneg %p175
      %p244 = pneg %p172
      %p245 = scmp.lt.s32.totalorder %s18, 1
      %s246 = scalar_select %p245, %s18, 1
      %s247 = smul.addr %s246, 16
      %s248 = smul.addr %s247, 4
      %s249 = scalar_lea.vmem %s6, %s248
      %p250 = scmp.lt.s32.totalorder %s18, 1
      %s251 = scalar_select %p250, %s18, 1
      %s252 = smul.addr %s251, 16
      %s253 = smul.addr %s252, 4
      %s254 = scalar_lea.vmem %s0, %s253
      %p255 = scmp.lt.s32.totalorder %s18, 1
      %s256 = scalar_select %p255, %s18, 1
      %s257 = smul.addr %s256, 16
      %s258 = smul.addr %s257, 4
      %s259 = scalar_lea.vmem %s5, %s258
      %p260 = scmp.lt.s32.totalorder %s18, 1
      %s261 = scalar_select %p260, %s18, 1
      %s262 = smul.addr %s261, 16
      %s263 = smul.addr %s262, 4
      %s264 = scalar_lea.vmem %s6, %s263
      %v266 = vld [vmem:[%s254] sm:$0xf]
      %v267 = vld [vmem:[%s254 + $0x4] sm:$0xf]
      %v268 = vld [vmem:[%s254 + $0x8] sm:$0xf]
      %v269 = vld [vmem:[%s254 + $0xc] sm:$0xf]
      %v270 = vld [vmem:[%s254 + $0x10] sm:$0xf]
      %v271 = vld [vmem:[%s254 + $0x14] sm:$0xf]
      %v272 = vld [vmem:[%s254 + $0x18] sm:$0xf]
      %v273 = vld [vmem:[%s254 + $0x1c] sm:$0xf]
      %v274 = vld [vmem:[%s254 + $0x20] sm:$0xf]
      %v275 = vld [vmem:[%s254 + $0x24] sm:$0xf]
      %v276 = vld [vmem:[%s254 + $0x28] sm:$0xf]
      %v277 = vld [vmem:[%s254 + $0x2c] sm:$0xf]
      %v278 = vld [vmem:[%s254 + $0x30] sm:$0xf]
      %v279 = vld [vmem:[%s254 + $0x34] sm:$0xf]
      %v280 = vld [vmem:[%s254 + $0x38] sm:$0xf]
      %v281 = vld [vmem:[%s254 + $0x3c] sm:$0xf]
      %v282 = vld [vmem:[%s1] sm:$0xf]
      %v283 = vld [vmem:[%s1 + $0x4] sm:$0xf]
      %v284 = vld [vmem:[%s1 + $0x8] sm:$0xf]
      %v285 = vld [vmem:[%s1 + $0xc] sm:$0xf]
      %v286 = vld [vmem:[%s1 + $0x10] sm:$0xf]
      %v287 = vld [vmem:[%s1 + $0x14] sm:$0xf]
      %v288 = vld [vmem:[%s1 + $0x18] sm:$0xf]
      %v289 = vld [vmem:[%s1 + $0x1c] sm:$0xf]
      %v290 = vld [vmem:[%s1 + $0x20] sm:$0xf]
      %v291 = vld [vmem:[%s1 + $0x24] sm:$0xf]
      %v292 = vld [vmem:[%s1 + $0x28] sm:$0xf]
      %v293 = vld [vmem:[%s1 + $0x2c] sm:$0xf]
      %v294 = vld [vmem:[%s1 + $0x30] sm:$0xf]
      %v295 = vld [vmem:[%s1 + $0x34] sm:$0xf]
      %v296 = vld [vmem:[%s1 + $0x38] sm:$0xf]
      %v297 = vld [vmem:[%s1 + $0x3c] sm:$0xf]
      %v298 = vld [vmem:[%s2] sm:$0x1]
      %v300 = vlaneseq
      %v301 = vshrl.u32 %v300, 7
      %v302 = vsub.s32 0, %v301
      %v303 = vrot.slane %v298, %v302
      %v321 = vunpack.c.l.b16 %v266
      %v322 = vunpack.c.l.b16 %v267
      %v323 = vunpack.c.l.b16 %v268
      %v324 = vunpack.c.l.b16 %v269
      %v325 = vunpack.c.l.b16 %v270
      %v326 = vunpack.c.l.b16 %v271
      %v327 = vunpack.c.l.b16 %v272
      %v328 = vunpack.c.l.b16 %v273
      %v329 = vunpack.c.l.b16 %v274
      %v330 = vunpack.c.l.b16 %v275
      %v331 = vunpack.c.l.b16 %v276
      %v332 = vunpack.c.l.b16 %v277
      %v333 = vunpack.c.l.b16 %v278
      %v334 = vunpack.c.l.b16 %v279
      %v335 = vunpack.c.l.b16 %v280
      %v336 = vunpack.c.l.b16 %v281
      %v337 = vpack.c.b16 %v322, %v321
      %v338 = vpack.c.b16 %v324, %v323
      %v339 = vpack.c.b16 %v326, %v325
      %v340 = vpack.c.b16 %v328, %v327
      %v341 = vpack.c.b16 %v330, %v329
      %v342 = vpack.c.b16 %v332, %v331
      %v343 = vpack.c.b16 %v334, %v333
      %v344 = vpack.c.b16 %v336, %v335
      %v369 = vunpack.c.l.b16 %v282
      %v370 = vunpack.c.l.b16 %v283
      %v371 = vunpack.c.l.b16 %v284
      %v372 = vunpack.c.l.b16 %v285
      %v373 = vunpack.c.l.b16 %v286
      %v374 = vunpack.c.l.b16 %v287
      %v375 = vunpack.c.l.b16 %v288
      %v376 = vunpack.c.l.b16 %v289
      %v377 = vunpack.c.l.b16 %v290
      %v378 = vunpack.c.l.b16 %v291
      %v379 = vunpack.c.l.b16 %v292
      %v380 = vunpack.c.l.b16 %v293
      %v381 = vunpack.c.l.b16 %v294
      %v382 = vunpack.c.l.b16 %v295
      %v383 = vunpack.c.l.b16 %v296
      %v384 = vunpack.c.l.b16 %v297
      %v385 = vpack.c.b16 %v370, %v369
      %v386 = vpack.c.b16 %v372, %v371
      %v387 = vpack.c.b16 %v374, %v373
      %v388 = vpack.c.b16 %v376, %v375
      %v389 = vpack.c.b16 %v378, %v377
      %v390 = vpack.c.b16 %v380, %v379
      %v391 = vpack.c.b16 %v382, %v381
      %v392 = vpack.c.b16 %v384, %v383
      %401 = vmatprep.subr.bf16.mxu0 0
      %402 = vmatpush1.bf16.msra.mxu0 %v392
      %403 = vmatprep.subr.bf16.mxu0 0
      %404 = vmatpush1.bf16.msra.mxu0 %v391
      %405 = vmatprep.subr.bf16.mxu0 0
      %406 = vmatpush1.bf16.msra.mxu0 %v390
      %407 = vmatprep.subr.bf16.mxu0 0
      %408 = vmatpush1.bf16.msra.mxu0 %v389
      %409 = vmatprep.subr.bf16.mxu0 0
      %410 = vmatpush1.bf16.msra.mxu0 %v388
      %411 = vmatprep.subr.bf16.mxu0 0
      %412 = vmatpush1.bf16.msra.mxu0 %v387
      %413 = vmatprep.subr.bf16.mxu0 0
      %414 = vmatpush1.bf16.msra.mxu0 %v386
      %415 = vmatprep.subr.bf16.mxu0 0
      %416 = vmatpush1.bf16.msra.mxu0 %v385
      %417 = vmatprep.subr.bf16.mxu0 0
      %418 = vmatpush2.bf16.msra.mxu0 0
      %419 = vmatprep.subr.bf16.mxu0 0
      %420 = vmatpush2.bf16.msra.mxu0 0
      %421 = vmatprep.subr.bf16.mxu0 0
      %422 = vmatpush2.bf16.msra.mxu0 0
      %423 = vmatprep.subr.bf16.mxu0 0
      %424 = vmatpush2.bf16.msra.mxu0 0
      %425 = vmatprep.subr.bf16.mxu0 0
      %426 = vmatpush2.bf16.msra.mxu0 0
      %427 = vmatprep.subr.bf16.mxu0 0
      %428 = vmatpush2.bf16.msra.mxu0 0
      %429 = vmatprep.subr.bf16.mxu0 0
      %430 = vmatpush2.bf16.msra.mxu0 0
      %431 = vmatprep.subr.bf16.mxu0 0
      %432 = vmatpush2.bf16.msra.mxu0 0
      %433 = vmatprep.mubr.bf16.mxu0 0
      %434 = vmatmul.mubr.bf16.gmra.mxu0 %v337
      %v435 = vpop.f32.mrf.mxu0
      %v436 = vadd.f32 %v303, %v435
      %v437 = vpop.f32.mrf.mxu0
      %v438 = vpop.f32.mrf.mxu0
      %v439 = vadd.f32 %v303, %v438
      %v440 = vpop.f32.mrf.mxu0
      %441 = vmatprep.mubr.bf16.mxu0 0
      %442 = vmatmul.mubr.bf16.gmra.mxu0 %v338
      %v443 = vpop.f32.mrf.mxu0
      %v444 = vadd.f32 %v303, %v443
      %v445 = vpop.f32.mrf.mxu0
      %v446 = vpop.f32.mrf.mxu0
      %v447 = vadd.f32 %v303, %v446
      %v448 = vpop.f32.mrf.mxu0
      %449 = vmatprep.mubr.bf16.mxu0 0
      %450 = vmatmul.mubr.bf16.gmra.mxu0 %v339
      %v451 = vpop.f32.mrf.mxu0
      %v452 = vadd.f32 %v303, %v451
      %v453 = vpop.f32.mrf.mxu0
      %v454 = vpop.f32.mrf.mxu0
      %v455 = vadd.f32 %v303, %v454
      %v456 = vpop.f32.mrf.mxu0
      %457 = vmatprep.mubr.bf16.mxu0 0
      %458 = vmatmul.mubr.bf16.gmra.mxu0 %v340
      %v459 = vpop.f32.mrf.mxu0
      %v460 = vadd.f32 %v303, %v459
      %v461 = vpop.f32.mrf.mxu0
      %v462 = vpop.f32.mrf.mxu0
      %v463 = vadd.f32 %v303, %v462
      %v464 = vpop.f32.mrf.mxu0
      %465 = vmatprep.mubr.bf16.mxu0 0
      %466 = vmatmul.mubr.bf16.gmra.mxu0 %v341
      %v467 = vpop.f32.mrf.mxu0
      %v468 = vadd.f32 %v303, %v467
      %v469 = vpop.f32.mrf.mxu0
      %v470 = vpop.f32.mrf.mxu0
      %v471 = vadd.f32 %v303, %v470
      %v472 = vpop.f32.mrf.mxu0
      %473 = vmatprep.mubr.bf16.mxu0 0
      %474 = vmatmul.mubr.bf16.gmra.mxu0 %v342
      %v475 = vpop.f32.mrf.mxu0
      %v476 = vadd.f32 %v303, %v475
      %v477 = vpop.f32.mrf.mxu0
      %v478 = vpop.f32.mrf.mxu0
      %v479 = vadd.f32 %v303, %v478
      %v480 = vpop.f32.mrf.mxu0
      %481 = vmatprep.mubr.bf16.mxu0 0
      %482 = vmatmul.mubr.bf16.gmra.mxu0 %v343
      %v483 = vpop.f32.mrf.mxu0
      %v484 = vadd.f32 %v303, %v483
      %v485 = vpop.f32.mrf.mxu0
      %v486 = vpop.f32.mrf.mxu0
      %v487 = vadd.f32 %v303, %v486
      %v488 = vpop.f32.mrf.mxu0
      %489 = vmatprep.mubr.bf16.mxu0 0
      %490 = vmatmul.mubr.bf16.gmra.mxu0 %v344
      %v491 = vpop.f32.mrf.mxu0
      %v492 = vadd.f32 %v303, %v491
      %v493 = vpop.f32.mrf.mxu0
      %v494 = vpop.f32.mrf.mxu0
      %v495 = vadd.f32 %v303, %v494
      %v496 = vpop.f32.mrf.mxu0
      %497 = vdwg.mxu0
      %v498 = vld [vmem:[%s3] sm:$0xf]
      %v499 = vld [vmem:[%s3 + $0x4] sm:$0xf]
      %v500 = vld [vmem:[%s3 + $0x8] sm:$0xf]
      %v501 = vld [vmem:[%s3 + $0xc] sm:$0xf]
      %v502 = vld [vmem:[%s3 + $0x10] sm:$0xf]
      %v503 = vld [vmem:[%s3 + $0x14] sm:$0xf]
      %v504 = vld [vmem:[%s3 + $0x18] sm:$0xf]
      %v505 = vld [vmem:[%s3 + $0x1c] sm:$0xf]
      %v506 = vld [vmem:[%s3 + $0x20] sm:$0xf]
      %v507 = vld [vmem:[%s3 + $0x24] sm:$0xf]
      %v508 = vld [vmem:[%s3 + $0x28] sm:$0xf]
      %v509 = vld [vmem:[%s3 + $0x2c] sm:$0xf]
      %v510 = vld [vmem:[%s3 + $0x30] sm:$0xf]
      %v511 = vld [vmem:[%s3 + $0x34] sm:$0xf]
      %v512 = vld [vmem:[%s3 + $0x38] sm:$0xf]
      %v513 = vld [vmem:[%s3 + $0x3c] sm:$0xf]
      %v514 = vld [vmem:[%s4] sm:$0x1]
      %v516 = vlaneseq
      %v517 = vshrl.u32 %v516, 7
      %v518 = vsub.s32 0, %v517
      %v519 = vrot.slane %v514, %v518
      %v537 = vunpack.c.l.b16 %v498
      %v538 = vunpack.c.l.b16 %v499
      %v539 = vunpack.c.l.b16 %v500
      %v540 = vunpack.c.l.b16 %v501
      %v541 = vunpack.c.l.b16 %v502
      %v542 = vunpack.c.l.b16 %v503
      %v543 = vunpack.c.l.b16 %v504
      %v544 = vunpack.c.l.b16 %v505
      %v545 = vunpack.c.l.b16 %v506
      %v546 = vunpack.c.l.b16 %v507
      %v547 = vunpack.c.l.b16 %v508
      %v548 = vunpack.c.l.b16 %v509
      %v549 = vunpack.c.l.b16 %v510
      %v550 = vunpack.c.l.b16 %v511
      %v551 = vunpack.c.l.b16 %v512
      %v552 = vunpack.c.l.b16 %v513
      %v553 = vpack.c.b16 %v538, %v537
      %v554 = vpack.c.b16 %v540, %v539
      %v555 = vpack.c.b16 %v542, %v541
      %v556 = vpack.c.b16 %v544, %v543
      %v557 = vpack.c.b16 %v546, %v545
      %v558 = vpack.c.b16 %v548, %v547
      %v559 = vpack.c.b16 %v550, %v549
      %v560 = vpack.c.b16 %v552, %v551
      %569 = vmatprep.subr.bf16.mxu0 0
      %570 = vmatpush1.bf16.msra.mxu0 %v560
      %571 = vmatprep.subr.bf16.mxu0 0
      %572 = vmatpush1.bf16.msra.mxu0 %v559
      %573 = vmatprep.subr.bf16.mxu0 0
      %574 = vmatpush1.bf16.msra.mxu0 %v558
      %575 = vmatprep.subr.bf16.mxu0 0
      %576 = vmatpush1.bf16.msra.mxu0 %v557
      %577 = vmatprep.subr.bf16.mxu0 0
      %578 = vmatpush1.bf16.msra.mxu0 %v556
      %579 = vmatprep.subr.bf16.mxu0 0
      %580 = vmatpush1.bf16.msra.mxu0 %v555
      %581 = vmatprep.subr.bf16.mxu0 0
      %582 = vmatpush1.bf16.msra.mxu0 %v554
      %583 = vmatprep.subr.bf16.mxu0 0
      %584 = vmatpush1.bf16.msra.mxu0 %v553
      %585 = vmatprep.subr.bf16.mxu0 0
      %586 = vmatpush2.bf16.msra.mxu0 0
      %587 = vmatprep.subr.bf16.mxu0 0
      %588 = vmatpush2.bf16.msra.mxu0 0
      %589 = vmatprep.subr.bf16.mxu0 0
      %590 = vmatpush2.bf16.msra.mxu0 0
      %591 = vmatprep.subr.bf16.mxu0 0
      %592 = vmatpush2.bf16.msra.mxu0 0
      %593 = vmatprep.subr.bf16.mxu0 0
      %594 = vmatpush2.bf16.msra.mxu0 0
      %595 = vmatprep.subr.bf16.mxu0 0
      %596 = vmatpush2.bf16.msra.mxu0 0
      %597 = vmatprep.subr.bf16.mxu0 0
      %598 = vmatpush2.bf16.msra.mxu0 0
      %599 = vmatprep.subr.bf16.mxu0 0
      %600 = vmatpush2.bf16.msra.mxu0 0
      %601 = vmatprep.mubr.bf16.mxu0 0
      %602 = vmatmul.mubr.bf16.gmra.mxu0 %v337
      %v603 = vpop.f32.mrf.mxu0
      %v604 = vadd.f32 %v519, %v603
      %v605 = vpop.f32.mrf.mxu0
      %v606 = vpop.f32.mrf.mxu0
      %v607 = vadd.f32 %v519, %v606
      %v608 = vpop.f32.mrf.mxu0
      %609 = vmatprep.mubr.bf16.mxu0 0
      %610 = vmatmul.mubr.bf16.gmra.mxu0 %v338
      %v611 = vpop.f32.mrf.mxu0
      %v612 = vadd.f32 %v519, %v611
      %v613 = vpop.f32.mrf.mxu0
      %v614 = vpop.f32.mrf.mxu0
      %v615 = vadd.f32 %v519, %v614
      %v616 = vpop.f32.mrf.mxu0
      %617 = vmatprep.mubr.bf16.mxu0 0
      %618 = vmatmul.mubr.bf16.gmra.mxu0 %v339
      %v619 = vpop.f32.mrf.mxu0
      %v620 = vadd.f32 %v519, %v619
      %v621 = vpop.f32.mrf.mxu0
      %v622 = vpop.f32.mrf.mxu0
      %v623 = vadd.f32 %v519, %v622
      %v624 = vpop.f32.mrf.mxu0
      %625 = vmatprep.mubr.bf16.mxu0 0
      %626 = vmatmul.mubr.bf16.gmra.mxu0 %v340
      %v627 = vpop.f32.mrf.mxu0
      %v628 = vadd.f32 %v519, %v627
      %v629 = vpop.f32.mrf.mxu0
      %v630 = vpop.f32.mrf.mxu0
      %v631 = vadd.f32 %v519, %v630
      %v632 = vpop.f32.mrf.mxu0
      %633 = vmatprep.mubr.bf16.mxu0 0
      %634 = vmatmul.mubr.bf16.gmra.mxu0 %v341
      %v635 = vpop.f32.mrf.mxu0
      %v636 = vadd.f32 %v519, %v635
      %v637 = vpop.f32.mrf.mxu0
      %v638 = vpop.f32.mrf.mxu0
      %v639 = vadd.f32 %v519, %v638
      %v640 = vpop.f32.mrf.mxu0
      %641 = vmatprep.mubr.bf16.mxu0 0
      %642 = vmatmul.mubr.bf16.gmra.mxu0 %v342
      %v643 = vpop.f32.mrf.mxu0
      %v644 = vadd.f32 %v519, %v643
      %v645 = vpop.f32.mrf.mxu0
      %v646 = vpop.f32.mrf.mxu0
      %v647 = vadd.f32 %v519, %v646
      %v648 = vpop.f32.mrf.mxu0
      %649 = vmatprep.mubr.bf16.mxu0 0
      %650 = vmatmul.mubr.bf16.gmra.mxu0 %v343
      %v651 = vpop.f32.mrf.mxu0
      %v652 = vadd.f32 %v519, %v651
      %v653 = vpop.f32.mrf.mxu0
      %v654 = vpop.f32.mrf.mxu0
      %v655 = vadd.f32 %v519, %v654
      %v656 = vpop.f32.mrf.mxu0
      %657 = vmatprep.mubr.bf16.mxu0 0
      %658 = vmatmul.mubr.bf16.gmra.mxu0 %v344
      %v659 = vpop.f32.mrf.mxu0
      %v660 = vadd.f32 %v519, %v659
      %v661 = vpop.f32.mrf.mxu0
      %v662 = vpop.f32.mrf.mxu0
      %v663 = vadd.f32 %v519, %v662
      %v664 = vpop.f32.mrf.mxu0
      %665 = vdwg.mxu0
      %666 = vxpose.xlu0.b32.start [1/16] %v436, 128
      %667 = vxpose.xlu0.b32.cont [2/16] %v439, 128
      %668 = vxpose.xlu0.b32.cont [3/16] %v444, 128
      %669 = vxpose.xlu0.b32.cont [4/16] %v447, 128
      %670 = vxpose.xlu0.b32.cont [5/16] %v452, 128
      %671 = vxpose.xlu0.b32.cont [6/16] %v455, 128
      %672 = vxpose.xlu0.b32.cont [7/16] %v460, 128
      %673 = vxpose.xlu0.b32.cont [8/16] %v463, 128
      %674 = vxpose.xlu0.b32.cont [9/16] %v468, 128
      %675 = vxpose.xlu0.b32.cont [10/16] %v471, 128
      %676 = vxpose.xlu0.b32.cont [11/16] %v476, 128
      %677 = vxpose.xlu0.b32.cont [12/16] %v479, 128
      %678 = vxpose.xlu0.b32.cont [13/16] %v484, 128
      %679 = vxpose.xlu0.b32.cont [14/16] %v487, 128
      %680 = vxpose.xlu0.b32.cont [15/16] %v492, 128
      %681 = vxpose.xlu0.b32.end [16/16] %v495, 128
      %v682 = vpop.trf.xlu0
      %v683 = vpop.trf.xlu0
      %v684 = vpop.trf.xlu0
      %v685 = vpop.trf.xlu0
      %v686 = vpop.trf.xlu0
      %v687 = vpop.trf.xlu0
      %v688 = vpop.trf.xlu0
      %v689 = vpop.trf.xlu0
      %v690 = vpop.trf.xlu0
      %v691 = vpop.trf.xlu0
      %v692 = vpop.trf.xlu0
      %v693 = vpop.trf.xlu0
      %v694 = vpop.trf.xlu0
      %v695 = vpop.trf.xlu0
      %v696 = vpop.trf.xlu0
      %v697 = vpop.trf.xlu0
      %v698 = vpack.c.bf16 %v683, %v682
      %v699 = vpack.c.bf16 %v685, %v684
      %v700 = vpack.c.bf16 %v687, %v686
      %v701 = vpack.c.bf16 %v689, %v688
      %v702 = vpack.c.bf16 %v691, %v690
      %v703 = vpack.c.bf16 %v693, %v692
      %v704 = vpack.c.bf16 %v695, %v694
      %v705 = vpack.c.bf16 %v697, %v696
      %v714 = vunpack.c.l.b16 %v698
      %v715 = vunpack.c.h.b16 %v698
      %v716 = vunpack.c.l.b16 %v699
      %v717 = vunpack.c.h.b16 %v699
      %v718 = vunpack.c.l.b16 %v700
      %v719 = vunpack.c.h.b16 %v700
      %v720 = vunpack.c.l.b16 %v701
      %v721 = vunpack.c.h.b16 %v701
      %v722 = vunpack.c.l.b16 %v702
      %v723 = vunpack.c.h.b16 %v702
      %v724 = vunpack.c.l.b16 %v703
      %v725 = vunpack.c.h.b16 %v703
      %v726 = vunpack.c.l.b16 %v704
      %v727 = vunpack.c.h.b16 %v704
      %v728 = vunpack.c.l.b16 %v705
      %v729 = vunpack.c.h.b16 %v705
      %v730 = vpack.c.b16 %v714, %v714
      %v731 = vpack.c.b16 %v715, %v715
      %v732 = vpack.c.b16 %v716, %v716
      %v733 = vpack.c.b16 %v717, %v717
      %v734 = vpack.c.b16 %v718, %v718
      %v735 = vpack.c.b16 %v719, %v719
      %v736 = vpack.c.b16 %v720, %v720
      %v737 = vpack.c.b16 %v721, %v721
      %v738 = vpack.c.b16 %v722, %v722
      %v739 = vpack.c.b16 %v723, %v723
      %v740 = vpack.c.b16 %v724, %v724
      %v741 = vpack.c.b16 %v725, %v725
      %v742 = vpack.c.b16 %v726, %v726
      %v743 = vpack.c.b16 %v727, %v727
      %v744 = vpack.c.b16 %v728, %v728
      %v745 = vpack.c.b16 %v729, %v729
      %762 = vst [vmem:[%s259] sm:$0xf] %v730
      %763 = vst [vmem:[%s259 + $0x4] sm:$0xf] %v731
      %764 = vst [vmem:[%s259 + $0x8] sm:$0xf] %v732
      %765 = vst [vmem:[%s259 + $0xc] sm:$0xf] %v733
      %766 = vst [vmem:[%s259 + $0x10] sm:$0xf] %v734
      %767 = vst [vmem:[%s259 + $0x14] sm:$0xf] %v735
      %768 = vst [vmem:[%s259 + $0x18] sm:$0xf] %v736
      %769 = vst [vmem:[%s259 + $0x1c] sm:$0xf] %v737
      %770 = vst [vmem:[%s259 + $0x20] sm:$0xf] %v738
      %771 = vst [vmem:[%s259 + $0x24] sm:$0xf] %v739
      %772 = vst [vmem:[%s259 + $0x28] sm:$0xf] %v740
      %773 = vst [vmem:[%s259 + $0x2c] sm:$0xf] %v741
      %774 = vst [vmem:[%s259 + $0x30] sm:$0xf] %v742
      %775 = vst [vmem:[%s259 + $0x34] sm:$0xf] %v743
      %776 = vst [vmem:[%s259 + $0x38] sm:$0xf] %v744
      %777 = vst [vmem:[%s259 + $0x3c] sm:$0xf] %v745
      %v778 = vpack.c.bf16 %v607, %v604
      %v779 = vpack.c.bf16 %v615, %v612
      %v780 = vpack.c.bf16 %v623, %v620
      %v781 = vpack.c.bf16 %v631, %v628
      %v782 = vpack.c.bf16 %v639, %v636
      %v783 = vpack.c.bf16 %v647, %v644
      %v784 = vpack.c.bf16 %v655, %v652
      %v785 = vpack.c.bf16 %v663, %v660
      %v794 = vunpack.c.l.b16 %v778
      %v795 = vunpack.c.h.b16 %v778
      %v796 = vunpack.c.l.b16 %v779
      %v797 = vunpack.c.h.b16 %v779
      %v798 = vunpack.c.l.b16 %v780
      %v799 = vunpack.c.h.b16 %v780
      %v800 = vunpack.c.l.b16 %v781
      %v801 = vunpack.c.h.b16 %v781
      %v802 = vunpack.c.l.b16 %v782
      %v803 = vunpack.c.h.b16 %v782
      %v804 = vunpack.c.l.b16 %v783
      %v805 = vunpack.c.h.b16 %v783
      %v806 = vunpack.c.l.b16 %v784
      %v807 = vunpack.c.h.b16 %v784
      %v808 = vunpack.c.l.b16 %v785
      %v809 = vunpack.c.h.b16 %v785
      %v810 = vpack.c.b16 %v794, %v794
      %v811 = vpack.c.b16 %v795, %v795
      %v812 = vpack.c.b16 %v796, %v796
      %v813 = vpack.c.b16 %v797, %v797
      %v814 = vpack.c.b16 %v798, %v798
      %v815 = vpack.c.b16 %v799, %v799
      %v816 = vpack.c.b16 %v800, %v800
      %v817 = vpack.c.b16 %v801, %v801
      %v818 = vpack.c.b16 %v802, %v802
      %v819 = vpack.c.b16 %v803, %v803
      %v820 = vpack.c.b16 %v804, %v804
      %v821 = vpack.c.b16 %v805, %v805
      %v822 = vpack.c.b16 %v806, %v806
      %v823 = vpack.c.b16 %v807, %v807
      %v824 = vpack.c.b16 %v808, %v808
      %v825 = vpack.c.b16 %v809, %v809
      %842 = vst [vmem:[%s264] sm:$0xf] %v810
      %843 = vst [vmem:[%s264 + $0x4] sm:$0xf] %v811
      %844 = vst [vmem:[%s264 + $0x8] sm:$0xf] %v812
      %845 = vst [vmem:[%s264 + $0xc] sm:$0xf] %v813
      %846 = vst [vmem:[%s264 + $0x10] sm:$0xf] %v814
      %847 = vst [vmem:[%s264 + $0x14] sm:$0xf] %v815
      %848 = vst [vmem:[%s264 + $0x18] sm:$0xf] %v816
      %849 = vst [vmem:[%s264 + $0x1c] sm:$0xf] %v817
      %850 = vst [vmem:[%s264 + $0x20] sm:$0xf] %v818
      %851 = vst [vmem:[%s264 + $0x24] sm:$0xf] %v819
      %852 = vst [vmem:[%s264 + $0x28] sm:$0xf] %v820
      %853 = vst [vmem:[%s264 + $0x2c] sm:$0xf] %v821
      %854 = vst [vmem:[%s264 + $0x30] sm:$0xf] %v822
      %855 = vst [vmem:[%s264 + $0x34] sm:$0xf] %v823
      %856 = vst [vmem:[%s264 + $0x38] sm:$0xf] %v824
      %857 = vst [vmem:[%s264 + $0x3c] sm:$0xf] %v825
      %p858 = scmp.lt.s32.totalorder %s18, 1
      %s859 = scalar_select %p858, %s18, 1
      %s860 = smul.addr %s859, 16
      %s861 = smul.addr %s860, 4
      %s862 = scalar_lea.vmem %s5, %s861
      %p863 = scmp.lt.s32.totalorder %s18, 1
      %s864 = scalar_select %p863, %s18, 1
      %s865 = smul.addr %s864, 16
      %s866 = smul.addr %s865, 4
      %s867 = scalar_lea.vmem %s6, %s866
      // Predicated region
      $region41: #{nonlocal_block.3} parent=39 // pred_check
        %p868 = pneg %p146
      $region42: #{nonlocal_block.3} parent=39 // pred_check_branch
        %870 = sbr.rel (%p868) target = $region44
      $region43: #{nonlocal_block.3} parent=39 // pred_region
        _
      $region44: #{nonlocal_block.3} parent=39 // pred_fallthru
        _
      // Predicated region
      $region45: #{nonlocal_block.3} parent=39 // pred_check
        %p871 = pneg %p172
      $region46: #{nonlocal_block.3} parent=39 // pred_check_branch
        %873 = sbr.rel (%p871) target = $region48
      $region47: #{nonlocal_block.3} parent=39 // pred_region
        _
      $region48: #{nonlocal_block.3} parent=39 // pred_fallthru
        _
    $region40: #{nonlocal_block.3} parent=5 // pred_fallthru
      _
    %p874 = scmp.le.s32.totalorder 2, %s13
    // Predicated region
    $region49: #{nonlocal_block.3} parent=5 // pred_check
      %p875 = pneg %p874
    $region50: #{nonlocal_block.3} parent=5 // pred_check_branch
      %877 = sbr.rel (%p875) target = $region52
    $region51: #{nonlocal_block.3} parent=5 // pred_region
      %s878 = ssub.s32 %s13, 2
      // Predicated region
      $region53: #{nonlocal_block.3} parent=51 // pred_check
        %p879 = pneg %p152
      $region54: #{nonlocal_block.3} parent=51 // pred_check_branch
        %881 = sbr.rel (%p879) target = $region56
      $region55: #{nonlocal_block.3} parent=51 // pred_region
        %p882 = scmp.lt.s32.totalorder %s19, 1
        %s883 = scalar_select %p882, %s19, 1
        %s884 = smul.addr %s883, 16
        %s885 = smul.addr %s884, 4
        %s886 = scalar_lea.vmem %s5, %s885
      $region56: #{nonlocal_block.3} parent=51 // pred_fallthru
        _
      // Predicated region
      $region57: #{nonlocal_block.3} parent=51 // pred_check
        %p887 = pneg %p178
      $region58: #{nonlocal_block.3} parent=51 // pred_check_branch
        %889 = sbr.rel (%p887) target = $region60
      $region59: #{nonlocal_block.3} parent=51 // pred_region
        %p890 = scmp.lt.s32.totalorder %s19, 1
        %s891 = scalar_select %p890, %s19, 1
        %s892 = smul.addr %s891, 16
        %s893 = smul.addr %s892, 4
        %s894 = scalar_lea.vmem %s6, %s893
      $region60: #{nonlocal_block.3} parent=51 // pred_fallthru
        _
    $region52: #{nonlocal_block.3} parent=5 // pred_fallthru
      _
  $region6: #{nonlocal_block.3} parent=0 // loop_footer
    %s17 = sadd.s32 1, %s13
  $region7: #{nonlocal_block.3} parent=0 // loop_footer_branch
    %12 = sbr.rel target = $region3
  $region8: #{nonlocal_block.3} parent=0 // loop_exit
    _

// kernel: nonlocal_block.5
$region0: #{nonlocal_block.5}
  #allocation0 [shape = 'u32[]', space=smem, size = 0x4, offset = 0x4, fixed_abs, tag = 'smem constant byte address 0x4 - core index']
  #allocation1 [shape = 'u32[144,128]{1,0:T(1,128)}', space=vmem, size = 0x12000, scoped, tag = 'internal scratch']
  %s0 = inlined_call_operand.vmem [shape: bf16[1024,128], index: 0, kind: input, shape index: {}]
  %s1 = inlined_call_operand.vmem [shape: f32[1024,128], index: 1, kind: input, shape index: {}, may-alias: {1,4}]
  %s2 = inlined_call_operand.vmem [shape: f32[1,128], index: 2, kind: input, shape index: {}]
  %s3 = inlined_call_operand.vmem [shape: f32[1,128], index: 3, kind: input, shape index: {}]
  %s4 = inlined_call_operand.vmem [shape: f32[1024,128], index: 4, kind: output, shape index: {}, may-alias: {1,4}]
  %s5 = sld [smem:[#allocation0]]
  $region26: #{nonlocal_block.5} parent=0
    _
  %s7 = ssub.s32 1, %s5
  %s8 = scalar_select 0, %s7, %s5
  // Predicated region
  $region2: #{nonlocal_block.5} parent=0 // pred_check
    _
  $region3: #{nonlocal_block.5} parent=0 // pred_check_branch
    %10 = sbr.rel (0) target = $region5
  $region4: #{nonlocal_block.5} parent=0 // pred_region
    _
  $region5: #{nonlocal_block.5} parent=0 // pred_fallthru
    _
  // Predicated region
  $region6: #{nonlocal_block.5} parent=0 // pred_check
    _
  $region7: #{nonlocal_block.5} parent=0 // pred_check_branch
    %12 = sbr.rel (0) target = $region9
  $region8: #{nonlocal_block.5} parent=0 // pred_region
    _
  $region9: #{nonlocal_block.5} parent=0 // pred_fallthru
    _
  // Predicated region
  $region10: #{nonlocal_block.5} parent=0 // pred_check
    _
  $region11: #{nonlocal_block.5} parent=0 // pred_check_branch
    %14 = sbr.rel (0) target = $region13
  $region12: #{nonlocal_block.5} parent=0 // pred_region
    _
  $region13: #{nonlocal_block.5} parent=0 // pred_fallthru
    _
  // Predicated region
  $region14: #{nonlocal_block.5} parent=0 // pred_check
    _
  $region15: #{nonlocal_block.5} parent=0 // pred_check_branch
    %16 = sbr.rel (0) target = $region17
  $region16: #{nonlocal_block.5} parent=0 // pred_region
    _
  $region17: #{nonlocal_block.5} parent=0 // pred_fallthru
    _
  %v17 = vld [vmem:[%s0] sm:$0xf]
  %v18 = vld [vmem:[%s0 + $0x4] sm:$0xf]
  %v19 = vld [vmem:[%s0 + $0x8] sm:$0xf]
  %v20 = vld [vmem:[%s0 + $0xc] sm:$0xf]
  %v21 = vld [vmem:[%s0 + $0x10] sm:$0xf]
  %v22 = vld [vmem:[%s0 + $0x14] sm:$0xf]
  %v23 = vld [vmem:[%s0 + $0x18] sm:$0xf]
  %v24 = vld [vmem:[%s0 + $0x1c] sm:$0xf]
  %v25 = vld [vmem:[%s0 + $0x20] sm:$0xf]
  %v26 = vld [vmem:[%s0 + $0x24] sm:$0xf]
  %v27 = vld [vmem:[%s0 + $0x28] sm:$0xf]
  %v28 = vld [vmem:[%s0 + $0x2c] sm:$0xf]
  %v29 = vld [vmem:[%s0 + $0x30] sm:$0xf]
  %v30 = vld [vmem:[%s0 + $0x34] sm:$0xf]
  %v31 = vld [vmem:[%s0 + $0x38] sm:$0xf]
  %v32 = vld [vmem:[%s0 + $0x3c] sm:$0xf]
  %v33 = vld [vmem:[%s0 + $0x40] sm:$0xf]
  %v34 = vld [vmem:[%s0 + $0x44] sm:$0xf]
  %v35 = vld [vmem:[%s0 + $0x48] sm:$0xf]
  %v36 = vld [vmem:[%s0 + $0x4c] sm:$0xf]
  %v37 = vld [vmem:[%s0 + $0x50] sm:$0xf]
  %v38 = vld [vmem:[%s0 + $0x54] sm:$0xf]
  %v39 = vld [vmem:[%s0 + $0x58] sm:$0xf]
  %v40 = vld [vmem:[%s0 + $0x5c] sm:$0xf]
  %v41 = vld [vmem:[%s0 + $0x60] sm:$0xf]
  %v42 = vld [vmem:[%s0 + $0x64] sm:$0xf]
  %v43 = vld [vmem:[%s0 + $0x68] sm:$0xf]
  %v44 = vld [vmem:[%s0 + $0x6c] sm:$0xf]
  %v45 = vld [vmem:[%s0 + $0x70] sm:$0xf]
  %v46 = vld [vmem:[%s0 + $0x74] sm:$0xf]
  %v47 = vld [vmem:[%s0 + $0x78] sm:$0xf]
  %v48 = vld [vmem:[%s0 + $0x7c] sm:$0xf]
  %v49 = vld [vmem:[%s0 + $0x80] sm:$0xf]
  %v50 = vld [vmem:[%s0 + $0x84] sm:$0xf]
  %v51 = vld [vmem:[%s0 + $0x88] sm:$0xf]
  %v52 = vld [vmem:[%s0 + $0x8c] sm:$0xf]
  %v53 = vld [vmem:[%s0 + $0x90] sm:$0xf]
  %v54 = vld [vmem:[%s0 + $0x94] sm:$0xf]
  %v55 = vld [vmem:[%s0 + $0x98] sm:$0xf]
  %v56 = vld [vmem:[%s0 + $0x9c] sm:$0xf]
  %v57 = vld [vmem:[%s0 + $0xa0] sm:$0xf]
  %v58 = vld [vmem:[%s0 + $0xa4] sm:$0xf]
  %v59 = vld [vmem:[%s0 + $0xa8] sm:$0xf]
  %v60 = vld [vmem:[%s0 + $0xac] sm:$0xf]
  %v61 = vld [vmem:[%s0 + $0xb0] sm:$0xf]
  %v62 = vld [vmem:[%s0 + $0xb4] sm:$0xf]
  %v63 = vld [vmem:[%s0 + $0xb8] sm:$0xf]
  %v64 = vld [vmem:[%s0 + $0xbc] sm:$0xf]
  %v65 = vld [vmem:[%s0 + $0xc0] sm:$0xf]
  %v66 = vld [vmem:[%s0 + $0xc4] sm:$0xf]
  %v67 = vld [vmem:[%s0 + $0xc8] sm:$0xf]
  %v68 = vld [vmem:[%s0 + $0xcc] sm:$0xf]
  %v69 = vld [vmem:[%s0 + $0xd0] sm:$0xf]
  %v70 = vld [vmem:[%s0 + $0xd4] sm:$0xf]
  %v71 = vld [vmem:[%s0 + $0xd8] sm:$0xf]
  %v72 = vld [vmem:[%s0 + $0xdc] sm:$0xf]
  %v73 = vld [vmem:[%s0 + $0xe0] sm:$0xf]
  %v74 = vld [vmem:[%s0 + $0xe4] sm:$0xf]
  %v75 = vld [vmem:[%s0 + $0xe8] sm:$0xf]
  %v76 = vld [vmem:[%s0 + $0xec] sm:$0xf]
  %v77 = vld [vmem:[%s0 + $0xf0] sm:$0xf]
  %v78 = vld [vmem:[%s0 + $0xf4] sm:$0xf]
  %v79 = vld [vmem:[%s0 + $0xf8] sm:$0xf]
  %v80 = vld [vmem:[%s0 + $0xfc] sm:$0xf]
  %v81 = vld [vmem:[%s0 + $0x100] sm:$0xf]
  %v82 = vld [vmem:[%s0 + $0x104] sm:$0xf]
  %v83 = vld [vmem:[%s0 + $0x108] sm:$0xf]
  %v84 = vld [vmem:[%s0 + $0x10c] sm:$0xf]
  %v85 = vld [vmem:[%s0 + $0x110] sm:$0xf]
  %v86 = vld [vmem:[%s0 + $0x114] sm:$0xf]
  %v87 = vld [vmem:[%s0 + $0x118] sm:$0xf]
  %v88 = vld [vmem:[%s0 + $0x11c] sm:$0xf]
  %v89 = vld [vmem:[%s0 + $0x120] sm:$0xf]
  %v90 = vld [vmem:[%s0 + $0x124] sm:$0xf]
  %v91 = vld [vmem:[%s0 + $0x128] sm:$0xf]
  %v92 = vld [vmem:[%s0 + $0x12c] sm:$0xf]
  %v93 = vld [vmem:[%s0 + $0x130] sm:$0xf]
  %v94 = vld [vmem:[%s0 + $0x134] sm:$0xf]
  %v95 = vld [vmem:[%s0 + $0x138] sm:$0xf]
  %v96 = vld [vmem:[%s0 + $0x13c] sm:$0xf]
  %v97 = vld [vmem:[%s0 + $0x140] sm:$0xf]
  %v98 = vld [vmem:[%s0 + $0x144] sm:$0xf]
  %v99 = vld [vmem:[%s0 + $0x148] sm:$0xf]
  %v100 = vld [vmem:[%s0 + $0x14c] sm:$0xf]
  %v101 = vld [vmem:[%s0 + $0x150] sm:$0xf]
  %v102 = vld [vmem:[%s0 + $0x154] sm:$0xf]
  %v103 = vld [vmem:[%s0 + $0x158] sm:$0xf]
  %v104 = vld [vmem:[%s0 + $0x15c] sm:$0xf]
  %v105 = vld [vmem:[%s0 + $0x160] sm:$0xf]
  %v106 = vld [vmem:[%s0 + $0x164] sm:$0xf]
  %v107 = vld [vmem:[%s0 + $0x168] sm:$0xf]
  %v108 = vld [vmem:[%s0 + $0x16c] sm:$0xf]
  %v109 = vld [vmem:[%s0 + $0x170] sm:$0xf]
  %v110 = vld [vmem:[%s0 + $0x174] sm:$0xf]
  %v111 = vld [vmem:[%s0 + $0x178] sm:$0xf]
  %v112 = vld [vmem:[%s0 + $0x17c] sm:$0xf]
  %v113 = vld [vmem:[%s0 + $0x180] sm:$0xf]
  %v114 = vld [vmem:[%s0 + $0x184] sm:$0xf]
  %v115 = vld [vmem:[%s0 + $0x188] sm:$0xf]
  %v116 = vld [vmem:[%s0 + $0x18c] sm:$0xf]
  %v117 = vld [vmem:[%s0 + $0x190] sm:$0xf]
  %v118 = vld [vmem:[%s0 + $0x194] sm:$0xf]
  %v119 = vld [vmem:[%s0 + $0x198] sm:$0xf]
  %v120 = vld [vmem:[%s0 + $0x19c] sm:$0xf]
  %v121 = vld [vmem:[%s0 + $0x1a0] sm:$0xf]
  %v122 = vld [vmem:[%s0 + $0x1a4] sm:$0xf]
  %v123 = vld [vmem:[%s0 + $0x1a8] sm:$0xf]
  %v124 = vld [vmem:[%s0 + $0x1ac] sm:$0xf]
  %v125 = vld [vmem:[%s0 + $0x1b0] sm:$0xf]
  %v126 = vld [vmem:[%s0 + $0x1b4] sm:$0xf]
  %v127 = vld [vmem:[%s0 + $0x1b8] sm:$0xf]
  %v128 = vld [vmem:[%s0 + $0x1bc] sm:$0xf]
  %v129 = vld [vmem:[%s0 + $0x1c0] sm:$0xf]
  %v130 = vld [vmem:[%s0 + $0x1c4] sm:$0xf]
  %v131 = vld [vmem:[%s0 + $0x1c8] sm:$0xf]
  %v132 = vld [vmem:[%s0 + $0x1cc] sm:$0xf]
  %v133 = vld [vmem:[%s0 + $0x1d0] sm:$0xf]
  %v134 = vld [vmem:[%s0 + $0x1d4] sm:$0xf]
  %v135 = vld [vmem:[%s0 + $0x1d8] sm:$0xf]
  %v136 = vld [vmem:[%s0 + $0x1dc] sm:$0xf]
  %v137 = vld [vmem:[%s0 + $0x1e0] sm:$0xf]
  %v138 = vld [vmem:[%s0 + $0x1e4] sm:$0xf]
  %v139 = vld [vmem:[%s0 + $0x1e8] sm:$0xf]
  %v140 = vld [vmem:[%s0 + $0x1ec] sm:$0xf]
  %v141 = vld [vmem:[%s0 + $0x1f0] sm:$0xf]
  %v142 = vld [vmem:[%s0 + $0x1f4] sm:$0xf]
  %v143 = vld [vmem:[%s0 + $0x1f8] sm:$0xf]
  %v144 = vld [vmem:[%s0 + $0x1fc] sm:$0xf]
  %v145 = vunpack.c.l.bf16 %v17
  %v146 = vunpack.c.l.bf16 %v18
  %v147 = vunpack.c.l.bf16 %v19
  %v148 = vunpack.c.l.bf16 %v20
  %v149 = vunpack.c.l.bf16 %v21
  %v150 = vunpack.c.l.bf16 %v22
  %v151 = vunpack.c.l.bf16 %v23
  %v152 = vunpack.c.l.bf16 %v24
  %v153 = vunpack.c.l.bf16 %v25
  %v154 = vunpack.c.l.bf16 %v26
  %v155 = vunpack.c.l.bf16 %v27
  %v156 = vunpack.c.l.bf16 %v28
  %v157 = vunpack.c.l.bf16 %v29
  %v158 = vunpack.c.l.bf16 %v30
  %v159 = vunpack.c.l.bf16 %v31
  %v160 = vunpack.c.l.bf16 %v32
  %v161 = vunpack.c.l.bf16 %v33
  %v162 = vunpack.c.l.bf16 %v34
  %v163 = vunpack.c.l.bf16 %v35
  %v164 = vunpack.c.l.bf16 %v36
  %v165 = vunpack.c.l.bf16 %v37
  %v166 = vunpack.c.l.bf16 %v38
  %v167 = vunpack.c.l.bf16 %v39
  %v168 = vunpack.c.l.bf16 %v40
  %v169 = vunpack.c.l.bf16 %v41
  %v170 = vunpack.c.l.bf16 %v42
  %v171 = vunpack.c.l.bf16 %v43
  %v172 = vunpack.c.l.bf16 %v44
  %v173 = vunpack.c.l.bf16 %v45
  %v174 = vunpack.c.l.bf16 %v46
  %v175 = vunpack.c.l.bf16 %v47
  %v176 = vunpack.c.l.bf16 %v48
  %v177 = vunpack.c.l.bf16 %v49
  %v178 = vunpack.c.l.bf16 %v50
  %v179 = vunpack.c.l.bf16 %v51
  %v180 = vunpack.c.l.bf16 %v52
  %v181 = vunpack.c.l.bf16 %v53
  %v182 = vunpack.c.l.bf16 %v54
  %v183 = vunpack.c.l.bf16 %v55
  %v184 = vunpack.c.l.bf16 %v56
  %v185 = vunpack.c.l.bf16 %v57
  %v186 = vunpack.c.l.bf16 %v58
  %v187 = vunpack.c.l.bf16 %v59
  %v188 = vunpack.c.l.bf16 %v60
  %v189 = vunpack.c.l.bf16 %v61
  %v190 = vunpack.c.l.bf16 %v62
  %v191 = vunpack.c.l.bf16 %v63
  %v192 = vunpack.c.l.bf16 %v64
  %v193 = vunpack.c.l.bf16 %v65
  %v194 = vunpack.c.l.bf16 %v66
  %v195 = vunpack.c.l.bf16 %v67
  %v196 = vunpack.c.l.bf16 %v68
  %v197 = vunpack.c.l.bf16 %v69
  %v198 = vunpack.c.l.bf16 %v70
  %v199 = vunpack.c.l.bf16 %v71
  %v200 = vunpack.c.l.bf16 %v72
  %v201 = vunpack.c.l.bf16 %v73
  %v202 = vunpack.c.l.bf16 %v74
  %v203 = vunpack.c.l.bf16 %v75
  %v204 = vunpack.c.l.bf16 %v76
  %v205 = vunpack.c.l.bf16 %v77
  %v206 = vunpack.c.l.bf16 %v78
  %v207 = vunpack.c.l.bf16 %v79
  %v208 = vunpack.c.l.bf16 %v80
  %v209 = vunpack.c.l.bf16 %v81
  %v210 = vunpack.c.l.bf16 %v82
  %v211 = vunpack.c.l.bf16 %v83
  %v212 = vunpack.c.l.bf16 %v84
  %v213 = vunpack.c.l.bf16 %v85
  %v214 = vunpack.c.l.bf16 %v86
  %v215 = vunpack.c.l.bf16 %v87
  %v216 = vunpack.c.l.bf16 %v88
  %v217 = vunpack.c.l.bf16 %v89
  %v218 = vunpack.c.l.bf16 %v90
  %v219 = vunpack.c.l.bf16 %v91
  %v220 = vunpack.c.l.bf16 %v92
  %v221 = vunpack.c.l.bf16 %v93
  %v222 = vunpack.c.l.bf16 %v94
  %v223 = vunpack.c.l.bf16 %v95
  %v224 = vunpack.c.l.bf16 %v96
  %v225 = vunpack.c.l.bf16 %v97
  %v226 = vunpack.c.l.bf16 %v98
  %v227 = vunpack.c.l.bf16 %v99
  %v228 = vunpack.c.l.bf16 %v100
  %v229 = vunpack.c.l.bf16 %v101
  %v230 = vunpack.c.l.bf16 %v102
  %v231 = vunpack.c.l.bf16 %v103
  %v232 = vunpack.c.l.bf16 %v104
  %v233 = vunpack.c.l.bf16 %v105
  %v234 = vunpack.c.l.bf16 %v106
  %v235 = vunpack.c.l.bf16 %v107
  %v236 = vunpack.c.l.bf16 %v108
  %v237 = vunpack.c.l.bf16 %v109
  %v238 = vunpack.c.l.bf16 %v110
  %v239 = vunpack.c.l.bf16 %v111
  %v240 = vunpack.c.l.bf16 %v112
  %v241 = vunpack.c.l.bf16 %v113
  %v242 = vunpack.c.l.bf16 %v114
  %v243 = vunpack.c.l.bf16 %v115
  %v244 = vunpack.c.l.bf16 %v116
  %v245 = vunpack.c.l.bf16 %v117
  %v246 = vunpack.c.l.bf16 %v118
  %v247 = vunpack.c.l.bf16 %v119
  %v248 = vunpack.c.l.bf16 %v120
  %v249 = vunpack.c.l.bf16 %v121
  %v250 = vunpack.c.l.bf16 %v122
  %v251 = vunpack.c.l.bf16 %v123
  %v252 = vunpack.c.l.bf16 %v124
  %v253 = vunpack.c.l.bf16 %v125
  %v254 = vunpack.c.l.bf16 %v126
  %v255 = vunpack.c.l.bf16 %v127
  %v256 = vunpack.c.l.bf16 %v128
  %v257 = vunpack.c.l.bf16 %v129
  %v258 = vunpack.c.l.bf16 %v130
  %v259 = vunpack.c.l.bf16 %v131
  %v260 = vunpack.c.l.bf16 %v132
  %v261 = vunpack.c.l.bf16 %v133
  %v262 = vunpack.c.l.bf16 %v134
  %v263 = vunpack.c.l.bf16 %v135
  %v264 = vunpack.c.l.bf16 %v136
  %v265 = vunpack.c.l.bf16 %v137
  %v266 = vunpack.c.l.bf16 %v138
  %v267 = vunpack.c.l.bf16 %v139
  %v268 = vunpack.c.l.bf16 %v140
  %v269 = vunpack.c.l.bf16 %v141
  %v270 = vunpack.c.l.bf16 %v142
  %v271 = vunpack.c.l.bf16 %v143
  %v272 = vunpack.c.l.bf16 %v144
  %v273 = vld [vmem:[%s2] sm:$0x1]
  %v275 = vlaneseq
  %v276 = vshrl.u32 %v275, 7
  %v277 = vsub.s32 0, %v276
  %v278 = vrot.slane %v273, %v277
  %v280 = vmul.f32 %v145, %v278
  %v281 = vmul.f32 %v146, %v278
  %v282 = vmul.f32 %v147, %v278
  %v283 = vmul.f32 %v148, %v278
  %v284 = vmul.f32 %v149, %v278
  %v285 = vmul.f32 %v150, %v278
  %v286 = vmul.f32 %v151, %v278
  %v287 = vmul.f32 %v152, %v278
  %v288 = vmul.f32 %v153, %v278
  %v289 = vmul.f32 %v154, %v278
  %v290 = vmul.f32 %v155, %v278
  %v291 = vmul.f32 %v156, %v278
  %v292 = vmul.f32 %v157, %v278
  %v293 = vmul.f32 %v158, %v278
  %v294 = vmul.f32 %v159, %v278
  %v295 = vmul.f32 %v160, %v278
  %v296 = vmul.f32 %v161, %v278
  %v297 = vmul.f32 %v162, %v278
  %v298 = vmul.f32 %v163, %v278
  %v299 = vmul.f32 %v164, %v278
  %v300 = vmul.f32 %v165, %v278
  %v301 = vmul.f32 %v166, %v278
  %v302 = vmul.f32 %v167, %v278
  %v303 = vmul.f32 %v168, %v278
  %v304 = vmul.f32 %v169, %v278
  %v305 = vmul.f32 %v170, %v278
  %v306 = vmul.f32 %v171, %v278
  %v307 = vmul.f32 %v172, %v278
  %v308 = vmul.f32 %v173, %v278
  %v309 = vmul.f32 %v174, %v278
  %v310 = vmul.f32 %v175, %v278
  %v311 = vmul.f32 %v176, %v278
  %v312 = vmul.f32 %v177, %v278
  %v313 = vmul.f32 %v178, %v278
  %v314 = vmul.f32 %v179, %v278
  %v315 = vmul.f32 %v180, %v278
  %v316 = vmul.f32 %v181, %v278
  %v317 = vmul.f32 %v182, %v278
  %v318 = vmul.f32 %v183, %v278
  %v319 = vmul.f32 %v184, %v278
  %v320 = vmul.f32 %v185, %v278
  %v321 = vmul.f32 %v186, %v278
  %v322 = vmul.f32 %v187, %v278
  %v323 = vmul.f32 %v188, %v278
  %v324 = vmul.f32 %v189, %v278
  %v325 = vmul.f32 %v190, %v278
  %v326 = vmul.f32 %v191, %v278
  %v327 = vmul.f32 %v192, %v278
  %v328 = vmul.f32 %v193, %v278
  %v329 = vmul.f32 %v194, %v278
  %v330 = vmul.f32 %v195, %v278
  %v331 = vmul.f32 %v196, %v278
  %v332 = vmul.f32 %v197, %v278
  %v333 = vmul.f32 %v198, %v278
  %v334 = vmul.f32 %v199, %v278
  %v335 = vmul.f32 %v200, %v278
  %v336 = vmul.f32 %v201, %v278
  %v337 = vmul.f32 %v202, %v278
  %v338 = vmul.f32 %v203, %v278
  %v339 = vmul.f32 %v204, %v278
  %v340 = vmul.f32 %v205, %v278
  %v341 = vmul.f32 %v206, %v278
  %v342 = vmul.f32 %v207, %v278
  %v343 = vmul.f32 %v208, %v278
  %v344 = vmul.f32 %v209, %v278
  %v345 = vmul.f32 %v210, %v278
  %v346 = vmul.f32 %v211, %v278
  %v347 = vmul.f32 %v212, %v278
  %v348 = vmul.f32 %v213, %v278
  %v349 = vmul.f32 %v214, %v278
  %v350 = vmul.f32 %v215, %v278
  %v351 = vmul.f32 %v216, %v278
  %v352 = vmul.f32 %v217, %v278
  %v353 = vmul.f32 %v218, %v278
  %v354 = vmul.f32 %v219, %v278
  %v355 = vmul.f32 %v220, %v278
  %v356 = vmul.f32 %v221, %v278
  %v357 = vmul.f32 %v222, %v278
  %v358 = vmul.f32 %v223, %v278
  %v359 = vmul.f32 %v224, %v278
  %v360 = vmul.f32 %v225, %v278
  %v361 = vmul.f32 %v226, %v278
  %v362 = vmul.f32 %v227, %v278
  %v363 = vmul.f32 %v228, %v278
  %v364 = vmul.f32 %v229, %v278
  %v365 = vmul.f32 %v230, %v278
  %v366 = vmul.f32 %v231, %v278
  %v367 = vmul.f32 %v232, %v278
  %v368 = vmul.f32 %v233, %v278
  %v369 = vmul.f32 %v234, %v278
  %v370 = vmul.f32 %v235, %v278
  %v371 = vmul.f32 %v236, %v278
  %v372 = vmul.f32 %v237, %v278
  %v373 = vmul.f32 %v238, %v278
  %v374 = vmul.f32 %v239, %v278
  %v375 = vmul.f32 %v240, %v278
  %v376 = vmul.f32 %v241, %v278
  %v377 = vmul.f32 %v242, %v278
  %v378 = vmul.f32 %v243, %v278
  %v379 = vmul.f32 %v244, %v278
  %v380 = vmul.f32 %v245, %v278
  %v381 = vmul.f32 %v246, %v278
  %v382 = vmul.f32 %v247, %v278
  %v383 = vmul.f32 %v248, %v278
  %v384 = vmul.f32 %v249, %v278
  %v385 = vmul.f32 %v250, %v278
  %v386 = vmul.f32 %v251, %v278
  %v387 = vmul.f32 %v252, %v278
  %v388 = vmul.f32 %v253, %v278
  %v389 = vmul.f32 %v254, %v278
  %v390 = vmul.f32 %v255, %v278
  %v391 = vmul.f32 %v256, %v278
  %v392 = vmul.f32 %v257, %v278
  %v393 = vmul.f32 %v258, %v278
  %v394 = vmul.f32 %v259, %v278
  %v395 = vmul.f32 %v260, %v278
  %v396 = vmul.f32 %v261, %v278
  %v397 = vmul.f32 %v262, %v278
  %v398 = vmul.f32 %v263, %v278
  %v399 = vmul.f32 %v264, %v278
  %v400 = vmul.f32 %v265, %v278
  %v401 = vmul.f32 %v266, %v278
  %v402 = vmul.f32 %v267, %v278
  %v403 = vmul.f32 %v268, %v278
  %v404 = vmul.f32 %v269, %v278
  %v405 = vmul.f32 %v270, %v278
  %v406 = vmul.f32 %v271, %v278
  %v407 = vmul.f32 %v272, %v278
  %v408 = vld [vmem:[%s3] sm:$0x1]
  %v410 = vlaneseq
  %v411 = vshrl.u32 %v410, 7
  %v412 = vsub.s32 0, %v411
  %v413 = vrot.slane %v408, %v412
  %v415 = vadd.f32 %v280, %v413
  %v416 = vadd.f32 %v281, %v413
  %v417 = vadd.f32 %v282, %v413
  %v418 = vadd.f32 %v283, %v413
  %v419 = vadd.f32 %v284, %v413
  %v420 = vadd.f32 %v285, %v413
  %v421 = vadd.f32 %v286, %v413
  %v422 = vadd.f32 %v287, %v413
  %v423 = vadd.f32 %v288, %v413
  %v424 = vadd.f32 %v289, %v413
  %v425 = vadd.f32 %v290, %v413
  %v426 = vadd.f32 %v291, %v413
  %v427 = vadd.f32 %v292, %v413
  %v428 = vadd.f32 %v293, %v413
  %v429 = vadd.f32 %v294, %v413
  %v430 = vadd.f32 %v295, %v413
  %v431 = vadd.f32 %v296, %v413
  %v432 = vadd.f32 %v297, %v413
  %v433 = vadd.f32 %v298, %v413
  %v434 = vadd.f32 %v299, %v413
  %v435 = vadd.f32 %v300, %v413
  %v436 = vadd.f32 %v301, %v413
  %v437 = vadd.f32 %v302, %v413
  %v438 = vadd.f32 %v303, %v413
  %v439 = vadd.f32 %v304, %v413
  %v440 = vadd.f32 %v305, %v413
  %v441 = vadd.f32 %v306, %v413
  %v442 = vadd.f32 %v307, %v413
  %v443 = vadd.f32 %v308, %v413
  %v444 = vadd.f32 %v309, %v413
  %v445 = vadd.f32 %v310, %v413
  %v446 = vadd.f32 %v311, %v413
  %v447 = vadd.f32 %v312, %v413
  %v448 = vadd.f32 %v313, %v413
  %v449 = vadd.f32 %v314, %v413
  %v450 = vadd.f32 %v315, %v413
  %v451 = vadd.f32 %v316, %v413
  %v452 = vadd.f32 %v317, %v413
  %v453 = vadd.f32 %v318, %v413
  %v454 = vadd.f32 %v319, %v413
  %v455 = vadd.f32 %v320, %v413
  %v456 = vadd.f32 %v321, %v413
  %v457 = vadd.f32 %v322, %v413
  %v458 = vadd.f32 %v323, %v413
  %v459 = vadd.f32 %v324, %v413
  %v460 = vadd.f32 %v325, %v413
  %v461 = vadd.f32 %v326, %v413
  %v462 = vadd.f32 %v327, %v413
  %v463 = vadd.f32 %v328, %v413
  %v464 = vadd.f32 %v329, %v413
  %v465 = vadd.f32 %v330, %v413
  %v466 = vadd.f32 %v331, %v413
  %v467 = vadd.f32 %v332, %v413
  %v468 = vadd.f32 %v333, %v413
  %v469 = vadd.f32 %v334, %v413
  %v470 = vadd.f32 %v335, %v413
  %v471 = vadd.f32 %v336, %v413
  %v472 = vadd.f32 %v337, %v413
  %v473 = vadd.f32 %v338, %v413
  %v474 = vadd.f32 %v339, %v413
  %v475 = vadd.f32 %v340, %v413
  %v476 = vadd.f32 %v341, %v413
  %v477 = vadd.f32 %v342, %v413
  %v478 = vadd.f32 %v343, %v413
  %v479 = vadd.f32 %v344, %v413
  %v480 = vadd.f32 %v345, %v413
  %v481 = vadd.f32 %v346, %v413
  %v482 = vadd.f32 %v347, %v413
  %v483 = vadd.f32 %v348, %v413
  %v484 = vadd.f32 %v349, %v413
  %v485 = vadd.f32 %v350, %v413
  %v486 = vadd.f32 %v351, %v413
  %v487 = vadd.f32 %v352, %v413
  %v488 = vadd.f32 %v353, %v413
  %v489 = vadd.f32 %v354, %v413
  %v490 = vadd.f32 %v355, %v413
  %v491 = vadd.f32 %v356, %v413
  %v492 = vadd.f32 %v357, %v413
  %v493 = vadd.f32 %v358, %v413
  %v494 = vadd.f32 %v359, %v413
  %v495 = vadd.f32 %v360, %v413
  %v496 = vadd.f32 %v361, %v413
  %v497 = vadd.f32 %v362, %v413
  %v498 = vadd.f32 %v363, %v413
  %v499 = vadd.f32 %v364, %v413
  %v500 = vadd.f32 %v365, %v413
  %v501 = vadd.f32 %v366, %v413
  %v502 = vadd.f32 %v367, %v413
  %v503 = vadd.f32 %v368, %v413
  %v504 = vadd.f32 %v369, %v413
  %v505 = vadd.f32 %v370, %v413
  %v506 = vadd.f32 %v371, %v413
  %v507 = vadd.f32 %v372, %v413
  %v508 = vadd.f32 %v373, %v413
  %v509 = vadd.f32 %v374, %v413
  %v510 = vadd.f32 %v375, %v413
  %v511 = vadd.f32 %v376, %v413
  %v512 = vadd.f32 %v377, %v413
  %v513 = vadd.f32 %v378, %v413
  %v514 = vadd.f32 %v379, %v413
  %v515 = vadd.f32 %v380, %v413
  %v516 = vadd.f32 %v381, %v413
  %v517 = vadd.f32 %v382, %v413
  %v518 = vadd.f32 %v383, %v413
  %v519 = vadd.f32 %v384, %v413
  %v520 = vadd.f32 %v385, %v413
  %v521 = vadd.f32 %v386, %v413
  %v522 = vadd.f32 %v387, %v413
  %v523 = vadd.f32 %v388, %v413
  %v524 = vadd.f32 %v389, %v413
  %v525 = vadd.f32 %v390, %v413
  %v526 = vadd.f32 %v391, %v413
  %v527 = vadd.f32 %v392, %v413
  %v528 = vadd.f32 %v393, %v413
  %v529 = vadd.f32 %v394, %v413
  %v530 = vadd.f32 %v395, %v413
  %v531 = vadd.f32 %v396, %v413
  %v532 = vadd.f32 %v397, %v413
  %v533 = vadd.f32 %v398, %v413
  %v534 = vadd.f32 %v399, %v413
  %v535 = vadd.f32 %v400, %v413
  %v536 = vadd.f32 %v401, %v413
  %v537 = vadd.f32 %v402, %v413
  %v538 = vadd.f32 %v403, %v413
  %v539 = vadd.f32 %v404, %v413
  %v540 = vadd.f32 %v405, %v413
  %v541 = vadd.f32 %v406, %v413
  %v542 = vadd.f32 %v407, %v413
  %v543 = vld [vmem:[%s1] sm:$0xff]
  %v544 = vld [vmem:[%s1 + $0x8] sm:$0xff]
  %v545 = vld [vmem:[%s1 + $0x10] sm:$0xff]
  %v546 = vld [vmem:[%s1 + $0x18] sm:$0xff]
  %v547 = vld [vmem:[%s1 + $0x20] sm:$0xff]
  %v548 = vld [vmem:[%s1 + $0x28] sm:$0xff]
  %v549 = vld [vmem:[%s1 + $0x30] sm:$0xff]
  %v550 = vld [vmem:[%s1 + $0x38] sm:$0xff]
  %v551 = vld [vmem:[%s1 + $0x40] sm:$0xff]
  %v552 = vld [vmem:[%s1 + $0x48] sm:$0xff]
  %v553 = vld [vmem:[%s1 + $0x50] sm:$0xff]
  %v554 = vld [vmem:[%s1 + $0x58] sm:$0xff]
  %v555 = vld [vmem:[%s1 + $0x60] sm:$0xff]
  %v556 = vld [vmem:[%s1 + $0x68] sm:$0xff]
  %v557 = vld [vmem:[%s1 + $0x70] sm:$0xff]
  %v558 = vld [vmem:[%s1 + $0x78] sm:$0xff]
  %v559 = vld [vmem:[%s1 + $0x80] sm:$0xff]
  %v560 = vld [vmem:[%s1 + $0x88] sm:$0xff]
  %v561 = vld [vmem:[%s1 + $0x90] sm:$0xff]
  %v562 = vld [vmem:[%s1 + $0x98] sm:$0xff]
  %v563 = vld [vmem:[%s1 + $0xa0] sm:$0xff]
  %v564 = vld [vmem:[%s1 + $0xa8] sm:$0xff]
  %v565 = vld [vmem:[%s1 + $0xb0] sm:$0xff]
  %v566 = vld [vmem:[%s1 + $0xb8] sm:$0xff]
  %v567 = vld [vmem:[%s1 + $0xc0] sm:$0xff]
  %v568 = vld [vmem:[%s1 + $0xc8] sm:$0xff]
  %v569 = vld [vmem:[%s1 + $0xd0] sm:$0xff]
  %v570 = vld [vmem:[%s1 + $0xd8] sm:$0xff]
  %v571 = vld [vmem:[%s1 + $0xe0] sm:$0xff]
  %v572 = vld [vmem:[%s1 + $0xe8] sm:$0xff]
  %v573 = vld [vmem:[%s1 + $0xf0] sm:$0xff]
  %v574 = vld [vmem:[%s1 + $0xf8] sm:$0xff]
  %v575 = vld [vmem:[%s1 + $0x100] sm:$0xff]
  %v576 = vld [vmem:[%s1 + $0x108] sm:$0xff]
  %v577 = vld [vmem:[%s1 + $0x110] sm:$0xff]
  %v578 = vld [vmem:[%s1 + $0x118] sm:$0xff]
  %v579 = vld [vmem:[%s1 + $0x120] sm:$0xff]
  %v580 = vld [vmem:[%s1 + $0x128] sm:$0xff]
  %v581 = vld [vmem:[%s1 + $0x130] sm:$0xff]
  %v582 = vld [vmem:[%s1 + $0x138] sm:$0xff]
  %v583 = vld [vmem:[%s1 + $0x140] sm:$0xff]
  %v584 = vld [vmem:[%s1 + $0x148] sm:$0xff]
  %v585 = vld [vmem:[%s1 + $0x150] sm:$0xff]
  %v586 = vld [vmem:[%s1 + $0x158] sm:$0xff]
  %v587 = vld [vmem:[%s1 + $0x160] sm:$0xff]
  %v588 = vld [vmem:[%s1 + $0x168] sm:$0xff]
  %v589 = vld [vmem:[%s1 + $0x170] sm:$0xff]
  %v590 = vld [vmem:[%s1 + $0x178] sm:$0xff]
  %v591 = vld [vmem:[%s1 + $0x180] sm:$0xff]
  %v592 = vld [vmem:[%s1 + $0x188] sm:$0xff]
  %v593 = vld [vmem:[%s1 + $0x190] sm:$0xff]
  %v594 = vld [vmem:[%s1 + $0x198] sm:$0xff]
  %v595 = vld [vmem:[%s1 + $0x1a0] sm:$0xff]
  %v596 = vld [vmem:[%s1 + $0x1a8] sm:$0xff]
  %v597 = vld [vmem:[%s1 + $0x1b0] sm:$0xff]
  %v598 = vld [vmem:[%s1 + $0x1b8] sm:$0xff]
  %v599 = vld [vmem:[%s1 + $0x1c0] sm:$0xff]
  %v600 = vld [vmem:[%s1 + $0x1c8] sm:$0xff]
  %v601 = vld [vmem:[%s1 + $0x1d0] sm:$0xff]
  %v602 = vld [vmem:[%s1 + $0x1d8] sm:$0xff]
  %v603 = vld [vmem:[%s1 + $0x1e0] sm:$0xff]
  %v604 = vld [vmem:[%s1 + $0x1e8] sm:$0xff]
  %v605 = vld [vmem:[%s1 + $0x1f0] sm:$0xff]
  %v606 = vld [vmem:[%s1 + $0x1f8] sm:$0xff]
  %v607 = vld [vmem:[%s1 + $0x200] sm:$0xff]
  %v608 = vld [vmem:[%s1 + $0x208] sm:$0xff]
  %v609 = vld [vmem:[%s1 + $0x210] sm:$0xff]
  %v610 = vld [vmem:[%s1 + $0x218] sm:$0xff]
  %v611 = vld [vmem:[%s1 + $0x220] sm:$0xff]
  %v612 = vld [vmem:[%s1 + $0x228] sm:$0xff]
  %v613 = vld [vmem:[%s1 + $0x230] sm:$0xff]
  %v614 = vld [vmem:[%s1 + $0x238] sm:$0xff]
  %v615 = vld [vmem:[%s1 + $0x240] sm:$0xff]
  %v616 = vld [vmem:[%s1 + $0x248] sm:$0xff]
  %v617 = vld [vmem:[%s1 + $0x250] sm:$0xff]
  %v618 = vld [vmem:[%s1 + $0x258] sm:$0xff]
  %v619 = vld [vmem:[%s1 + $0x260] sm:$0xff]
  %v620 = vld [vmem:[%s1 + $0x268] sm:$0xff]
  %v621 = vld [vmem:[%s1 + $0x270] sm:$0xff]
  %v622 = vld [vmem:[%s1 + $0x278] sm:$0xff]
  %v623 = vld [vmem:[%s1 + $0x280] sm:$0xff]
  %v624 = vld [vmem:[%s1 + $0x288] sm:$0xff]
  %v625 = vld [vmem:[%s1 + $0x290] sm:$0xff]
  %v626 = vld [vmem:[%s1 + $0x298] sm:$0xff]
  %v627 = vld [vmem:[%s1 + $0x2a0] sm:$0xff]
  %v628 = vld [vmem:[%s1 + $0x2a8] sm:$0xff]
  %v629 = vld [vmem:[%s1 + $0x2b0] sm:$0xff]
  %v630 = vld [vmem:[%s1 + $0x2b8] sm:$0xff]
  %v631 = vld [vmem:[%s1 + $0x2c0] sm:$0xff]
  %v632 = vld [vmem:[%s1 + $0x2c8] sm:$0xff]
  %v633 = vld [vmem:[%s1 + $0x2d0] sm:$0xff]
  %v634 = vld [vmem:[%s1 + $0x2d8] sm:$0xff]
  %v635 = vld [vmem:[%s1 + $0x2e0] sm:$0xff]
  %v636 = vld [vmem:[%s1 + $0x2e8] sm:$0xff]
  %v637 = vld [vmem:[%s1 + $0x2f0] sm:$0xff]
  %v638 = vld [vmem:[%s1 + $0x2f8] sm:$0xff]
  %v639 = vld [vmem:[%s1 + $0x300] sm:$0xff]
  %v640 = vld [vmem:[%s1 + $0x308] sm:$0xff]
  %v641 = vld [vmem:[%s1 + $0x310] sm:$0xff]
  %v642 = vld [vmem:[%s1 + $0x318] sm:$0xff]
  %v643 = vld [vmem:[%s1 + $0x320] sm:$0xff]
  %v644 = vld [vmem:[%s1 + $0x328] sm:$0xff]
  %v645 = vld [vmem:[%s1 + $0x330] sm:$0xff]
  %v646 = vld [vmem:[%s1 + $0x338] sm:$0xff]
  %v647 = vld [vmem:[%s1 + $0x340] sm:$0xff]
  %v648 = vld [vmem:[%s1 + $0x348] sm:$0xff]
  %v649 = vld [vmem:[%s1 + $0x350] sm:$0xff]
  %v650 = vld [vmem:[%s1 + $0x358] sm:$0xff]
  %v651 = vld [vmem:[%s1 + $0x360] sm:$0xff]
  %v652 = vld [vmem:[%s1 + $0x368] sm:$0xff]
  %v653 = vld [vmem:[%s1 + $0x370] sm:$0xff]
  %v654 = vld [vmem:[%s1 + $0x378] sm:$0xff]
  %v655 = vld [vmem:[%s1 + $0x380] sm:$0xff]
  %v656 = vld [vmem:[%s1 + $0x388] sm:$0xff]
  %v657 = vld [vmem:[%s1 + $0x390] sm:$0xff]
  %v658 = vld [vmem:[%s1 + $0x398] sm:$0xff]
  %v659 = vld [vmem:[%s1 + $0x3a0] sm:$0xff]
  %v660 = vld [vmem:[%s1 + $0x3a8] sm:$0xff]
  %v661 = vld [vmem:[%s1 + $0x3b0] sm:$0xff]
  %v662 = vld [vmem:[%s1 + $0x3b8] sm:$0xff]
  %v663 = vld [vmem:[%s1 + $0x3c0] sm:$0xff]
  %v664 = vld [vmem:[%s1 + $0x3c8] sm:$0xff]
  %v665 = vld [vmem:[%s1 + $0x3d0] sm:$0xff]
  %v666 = vld [vmem:[%s1 + $0x3d8] sm:$0xff]
  %v667 = vld [vmem:[%s1 + $0x3e0] sm:$0xff]
  %v668 = vld [vmem:[%s1 + $0x3e8] sm:$0xff]
  %v669 = vld [vmem:[%s1 + $0x3f0] sm:$0xff]
  %v670 = vld [vmem:[%s1 + $0x3f8] sm:$0xff]
  %v671 = vadd.f32 %v415, %v543
  %v672 = vadd.f32 %v416, %v544
  %v673 = vadd.f32 %v417, %v545
  %v674 = vadd.f32 %v418, %v546
  %v675 = vadd.f32 %v419, %v547
  %v676 = vadd.f32 %v420, %v548
  %v677 = vadd.f32 %v421, %v549
  %v678 = vadd.f32 %v422, %v550
  %v679 = vadd.f32 %v423, %v551
  %v680 = vadd.f32 %v424, %v552
  %v681 = vadd.f32 %v425, %v553
  %v682 = vadd.f32 %v426, %v554
  %v683 = vadd.f32 %v427, %v555
  %v684 = vadd.f32 %v428, %v556
  %v685 = vadd.f32 %v429, %v557
  %v686 = vadd.f32 %v430, %v558
  %v687 = vadd.f32 %v431, %v559
  %v688 = vadd.f32 %v432, %v560
  %v689 = vadd.f32 %v433, %v561
  %v690 = vadd.f32 %v434, %v562
  %v691 = vadd.f32 %v435, %v563
  %v692 = vadd.f32 %v436, %v564
  %v693 = vadd.f32 %v437, %v565
  %v694 = vadd.f32 %v438, %v566
  %v695 = vadd.f32 %v439, %v567
  %v696 = vadd.f32 %v440, %v568
  %v697 = vadd.f32 %v441, %v569
  %v698 = vadd.f32 %v442, %v570
  %v699 = vadd.f32 %v443, %v571
  %v700 = vadd.f32 %v444, %v572
  %v701 = vadd.f32 %v445, %v573
  %v702 = vadd.f32 %v446, %v574
  %v703 = vadd.f32 %v447, %v575
  %v704 = vadd.f32 %v448, %v576
  %v705 = vadd.f32 %v449, %v577
  %v706 = vadd.f32 %v450, %v578
  %v707 = vadd.f32 %v451, %v579
  %v708 = vadd.f32 %v452, %v580
  %v709 = vadd.f32 %v453, %v581
  %v710 = vadd.f32 %v454, %v582
  %v711 = vadd.f32 %v455, %v583
  %v712 = vadd.f32 %v456, %v584
  %v713 = vadd.f32 %v457, %v585
  %v714 = vadd.f32 %v458, %v586
  %v715 = vadd.f32 %v459, %v587
  %v716 = vadd.f32 %v460, %v588
  %v717 = vadd.f32 %v461, %v589
  %v718 = vadd.f32 %v462, %v590
  %v719 = vadd.f32 %v463, %v591
  %v720 = vadd.f32 %v464, %v592
  %v721 = vadd.f32 %v465, %v593
  %v722 = vadd.f32 %v466, %v594
  %v723 = vadd.f32 %v467, %v595
  %v724 = vadd.f32 %v468, %v596
  %v725 = vadd.f32 %v469, %v597
  %v726 = vadd.f32 %v470, %v598
  %v727 = vadd.f32 %v471, %v599
  %v728 = vadd.f32 %v472, %v600
  %v729 = vadd.f32 %v473, %v601
  %v730 = vadd.f32 %v474, %v602
  %v731 = vadd.f32 %v475, %v603
  %v732 = vadd.f32 %v476, %v604
  %v733 = vadd.f32 %v477, %v605
  %v734 = vadd.f32 %v478, %v606
  %v735 = vadd.f32 %v479, %v607
  %v736 = vadd.f32 %v480, %v608
  %v737 = vadd.f32 %v481, %v609
  %v738 = vadd.f32 %v482, %v610
  %v739 = vadd.f32 %v483, %v611
  %v740 = vadd.f32 %v484, %v612
  %v741 = vadd.f32 %v485, %v613
  %v742 = vadd.f32 %v486, %v614
  %v743 = vadd.f32 %v487, %v615
  %v744 = vadd.f32 %v488, %v616
  %v745 = vadd.f32 %v489, %v617
  %v746 = vadd.f32 %v490, %v618
  %v747 = vadd.f32 %v491, %v619
  %v748 = vadd.f32 %v492, %v620
  %v749 = vadd.f32 %v493, %v621
  %v750 = vadd.f32 %v494, %v622
  %v751 = vadd.f32 %v495, %v623
  %v752 = vadd.f32 %v496, %v624
  %v753 = vadd.f32 %v497, %v625
  %v754 = vadd.f32 %v498, %v626
  %v755 = vadd.f32 %v499, %v627
  %v756 = vadd.f32 %v500, %v628
  %v757 = vadd.f32 %v501, %v629
  %v758 = vadd.f32 %v502, %v630
  %v759 = vadd.f32 %v503, %v631
  %v760 = vadd.f32 %v504, %v632
  %v761 = vadd.f32 %v505, %v633
  %v762 = vadd.f32 %v506, %v634
  %v763 = vadd.f32 %v507, %v635
  %v764 = vadd.f32 %v508, %v636
  %v765 = vadd.f32 %v509, %v637
  %v766 = vadd.f32 %v510, %v638
  %v767 = vadd.f32 %v511, %v639
  %v768 = vadd.f32 %v512, %v640
  %v769 = vadd.f32 %v513, %v641
  %v770 = vadd.f32 %v514, %v642
  %v771 = vadd.f32 %v515, %v643
  %v772 = vadd.f32 %v516, %v644
  %v773 = vadd.f32 %v517, %v645
  %v774 = vadd.f32 %v518, %v646
  %v775 = vadd.f32 %v519, %v647
  %v776 = vadd.f32 %v520, %v648
  %v777 = vadd.f32 %v521, %v649
  %v778 = vadd.f32 %v522, %v650
  %v779 = vadd.f32 %v523, %v651
  %v780 = vadd.f32 %v524, %v652
  %v781 = vadd.f32 %v525, %v653
  %v782 = vadd.f32 %v526, %v654
  %v783 = vadd.f32 %v527, %v655
  %v784 = vadd.f32 %v528, %v656
  %v785 = vadd.f32 %v529, %v657
  %v786 = vadd.f32 %v530, %v658
  %v787 = vadd.f32 %v531, %v659
  %v788 = vadd.f32 %v532, %v660
  %v789 = vadd.f32 %v533, %v661
  %v790 = vadd.f32 %v534, %v662
  %v791 = vadd.f32 %v535, %v663
  %v792 = vadd.f32 %v536, %v664
  %v793 = vadd.f32 %v537, %v665
  %v794 = vadd.f32 %v538, %v666
  %v795 = vadd.f32 %v539, %v667
  %v796 = vadd.f32 %v540, %v668
  %v797 = vadd.f32 %v541, %v669
  %v798 = vadd.f32 %v542, %v670
  %799 = vst [vmem:[%s4] sm:$0xff] %v671
  %800 = vst [vmem:[%s4 + $0x8] sm:$0xff] %v672
  %801 = vst [vmem:[%s4 + $0x10] sm:$0xff] %v673
  %802 = vst [vmem:[%s4 + $0x18] sm:$0xff] %v674
  %803 = vst [vmem:[%s4 + $0x20] sm:$0xff] %v675
  %804 = vst [vmem:[%s4 + $0x28] sm:$0xff] %v676
  %805 = vst [vmem:[%s4 + $0x30] sm:$0xff] %v677
  %806 = vst [vmem:[%s4 + $0x38] sm:$0xff] %v678
  %807 = vst [vmem:[%s4 + $0x40] sm:$0xff] %v679
  %808 = vst [vmem:[%s4 + $0x48] sm:$0xff] %v680
  %809 = vst [vmem:[%s4 + $0x50] sm:$0xff] %v681
  %810 = vst [vmem:[%s4 + $0x58] sm:$0xff] %v682
  %811 = vst [vmem:[%s4 + $0x60] sm:$0xff] %v683
  %812 = vst [vmem:[%s4 + $0x68] sm:$0xff] %v684
  %813 = vst [vmem:[%s4 + $0x70] sm:$0xff] %v685
  %814 = vst [vmem:[%s4 + $0x78] sm:$0xff] %v686
  %815 = vst [vmem:[%s4 + $0x80] sm:$0xff] %v687
  %816 = vst [vmem:[%s4 + $0x88] sm:$0xff] %v688
  %817 = vst [vmem:[%s4 + $0x90] sm:$0xff] %v689
  %818 = vst [vmem:[%s4 + $0x98] sm:$0xff] %v690
  %819 = vst [vmem:[%s4 + $0xa0] sm:$0xff] %v691
  %820 = vst [vmem:[%s4 + $0xa8] sm:$0xff] %v692
  %821 = vst [vmem:[%s4 + $0xb0] sm:$0xff] %v693
  %822 = vst [vmem:[%s4 + $0xb8] sm:$0xff] %v694
  %823 = vst [vmem:[%s4 + $0xc0] sm:$0xff] %v695
  %824 = vst [vmem:[%s4 + $0xc8] sm:$0xff] %v696
  %825 = vst [vmem:[%s4 + $0xd0] sm:$0xff] %v697
  %826 = vst [vmem:[%s4 + $0xd8] sm:$0xff] %v698
  %827 = vst [vmem:[%s4 + $0xe0] sm:$0xff] %v699
  %828 = vst [vmem:[%s4 + $0xe8] sm:$0xff] %v700
  %829 = vst [vmem:[%s4 + $0xf0] sm:$0xff] %v701
  %830 = vst [vmem:[%s4 + $0xf8] sm:$0xff] %v702
  %831 = vst [vmem:[%s4 + $0x100] sm:$0xff] %v703
  %832 = vst [vmem:[%s4 + $0x108] sm:$0xff] %v704
  %833 = vst [vmem:[%s4 + $0x110] sm:$0xff] %v705
  %834 = vst [vmem:[%s4 + $0x118] sm:$0xff] %v706
  %835 = vst [vmem:[%s4 + $0x120] sm:$0xff] %v707
  %836 = vst [vmem:[%s4 + $0x128] sm:$0xff] %v708
  %837 = vst [vmem:[%s4 + $0x130] sm:$0xff] %v709
  %838 = vst [vmem:[%s4 + $0x138] sm:$0xff] %v710
  %839 = vst [vmem:[%s4 + $0x140] sm:$0xff] %v711
  %840 = vst [vmem:[%s4 + $0x148] sm:$0xff] %v712
  %841 = vst [vmem:[%s4 + $0x150] sm:$0xff] %v713
  %842 = vst [vmem:[%s4 + $0x158] sm:$0xff] %v714
  %843 = vst [vmem:[%s4 + $0x160] sm:$0xff] %v715
  %844 = vst [vmem:[%s4 + $0x168] sm:$0xff] %v716
  %845 = vst [vmem:[%s4 + $0x170] sm:$0xff] %v717
  %846 = vst [vmem:[%s4 + $0x178] sm:$0xff] %v718
  %847 = vst [vmem:[%s4 + $0x180] sm:$0xff] %v719
  %848 = vst [vmem:[%s4 + $0x188] sm:$0xff] %v720
  %849 = vst [vmem:[%s4 + $0x190] sm:$0xff] %v721
  %850 = vst [vmem:[%s4 + $0x198] sm:$0xff] %v722
  %851 = vst [vmem:[%s4 + $0x1a0] sm:$0xff] %v723
  %852 = vst [vmem:[%s4 + $0x1a8] sm:$0xff] %v724
  %853 = vst [vmem:[%s4 + $0x1b0] sm:$0xff] %v725
  %854 = vst [vmem:[%s4 + $0x1b8] sm:$0xff] %v726
  %855 = vst [vmem:[%s4 + $0x1c0] sm:$0xff] %v727
  %856 = vst [vmem:[%s4 + $0x1c8] sm:$0xff] %v728
  %857 = vst [vmem:[%s4 + $0x1d0] sm:$0xff] %v729
  %858 = vst [vmem:[%s4 + $0x1d8] sm:$0xff] %v730
  %859 = vst [vmem:[%s4 + $0x1e0] sm:$0xff] %v731
  %860 = vst [vmem:[%s4 + $0x1e8] sm:$0xff] %v732
  %861 = vst [vmem:[%s4 + $0x1f0] sm:$0xff] %v733
  %862 = vst [vmem:[%s4 + $0x1f8] sm:$0xff] %v734
  %863 = vst [vmem:[%s4 + $0x200] sm:$0xff] %v735
  %864 = vst [vmem:[%s4 + $0x208] sm:$0xff] %v736
  %865 = vst [vmem:[%s4 + $0x210] sm:$0xff] %v737
  %866 = vst [vmem:[%s4 + $0x218] sm:$0xff] %v738
  %867 = vst [vmem:[%s4 + $0x220] sm:$0xff] %v739
  %868 = vst [vmem:[%s4 + $0x228] sm:$0xff] %v740
  %869 = vst [vmem:[%s4 + $0x230] sm:$0xff] %v741
  %870 = vst [vmem:[%s4 + $0x238] sm:$0xff] %v742
  %871 = vst [vmem:[%s4 + $0x240] sm:$0xff] %v743
  %872 = vst [vmem:[%s4 + $0x248] sm:$0xff] %v744
  %873 = vst [vmem:[%s4 + $0x250] sm:$0xff] %v745
  %874 = vst [vmem:[%s4 + $0x258] sm:$0xff] %v746
  %875 = vst [vmem:[%s4 + $0x260] sm:$0xff] %v747
  %876 = vst [vmem:[%s4 + $0x268] sm:$0xff] %v748
  %877 = vst [vmem:[%s4 + $0x270] sm:$0xff] %v749
  %878 = vst [vmem:[%s4 + $0x278] sm:$0xff] %v750
  %879 = vst [vmem:[%s4 + $0x280] sm:$0xff] %v751
  %880 = vst [vmem:[%s4 + $0x288] sm:$0xff] %v752
  %881 = vst [vmem:[%s4 + $0x290] sm:$0xff] %v753
  %882 = vst [vmem:[%s4 + $0x298] sm:$0xff] %v754
  %883 = vst [vmem:[%s4 + $0x2a0] sm:$0xff] %v755
  %884 = vst [vmem:[%s4 + $0x2a8] sm:$0xff] %v756
  %885 = vst [vmem:[%s4 + $0x2b0] sm:$0xff] %v757
  %886 = vst [vmem:[%s4 + $0x2b8] sm:$0xff] %v758
  %887 = vst [vmem:[%s4 + $0x2c0] sm:$0xff] %v759
  %888 = vst [vmem:[%s4 + $0x2c8] sm:$0xff] %v760
  %889 = vst [vmem:[%s4 + $0x2d0] sm:$0xff] %v761
  %890 = vst [vmem:[%s4 + $0x2d8] sm:$0xff] %v762
  %891 = vst [vmem:[%s4 + $0x2e0] sm:$0xff] %v763
  %892 = vst [vmem:[%s4 + $0x2e8] sm:$0xff] %v764
  %893 = vst [vmem:[%s4 + $0x2f0] sm:$0xff] %v765
  %894 = vst [vmem:[%s4 + $0x2f8] sm:$0xff] %v766
  %895 = vst [vmem:[%s4 + $0x300] sm:$0xff] %v767
  %896 = vst [vmem:[%s4 + $0x308] sm:$0xff] %v768
  %897 = vst [vmem:[%s4 + $0x310] sm:$0xff] %v769
  %898 = vst [vmem:[%s4 + $0x318] sm:$0xff] %v770
  %899 = vst [vmem:[%s4 + $0x320] sm:$0xff] %v771
  %900 = vst [vmem:[%s4 + $0x328] sm:$0xff] %v772
  %901 = vst [vmem:[%s4 + $0x330] sm:$0xff] %v773
  %902 = vst [vmem:[%s4 + $0x338] sm:$0xff] %v774
  %903 = vst [vmem:[%s4 + $0x340] sm:$0xff] %v775
  %904 = vst [vmem:[%s4 + $0x348] sm:$0xff] %v776
  %905 = vst [vmem:[%s4 + $0x350] sm:$0xff] %v777
  %906 = vst [vmem:[%s4 + $0x358] sm:$0xff] %v778
  %907 = vst [vmem:[%s4 + $0x360] sm:$0xff] %v779
  %908 = vst [vmem:[%s4 + $0x368] sm:$0xff] %v780
  %909 = vst [vmem:[%s4 + $0x370] sm:$0xff] %v781
  %910 = vst [vmem:[%s4 + $0x378] sm:$0xff] %v782
  %911 = vst [vmem:[%s4 + $0x380] sm:$0xff] %v783
  %912 = vst [vmem:[%s4 + $0x388] sm:$0xff] %v784
  %913 = vst [vmem:[%s4 + $0x390] sm:$0xff] %v785
  %914 = vst [vmem:[%s4 + $0x398] sm:$0xff] %v786
  %915 = vst [vmem:[%s4 + $0x3a0] sm:$0xff] %v787
  %916 = vst [vmem:[%s4 + $0x3a8] sm:$0xff] %v788
  %917 = vst [vmem:[%s4 + $0x3b0] sm:$0xff] %v789
  %918 = vst [vmem:[%s4 + $0x3b8] sm:$0xff] %v790
  %919 = vst [vmem:[%s4 + $0x3c0] sm:$0xff] %v791
  %920 = vst [vmem:[%s4 + $0x3c8] sm:$0xff] %v792
  %921 = vst [vmem:[%s4 + $0x3d0] sm:$0xff] %v793
  %922 = vst [vmem:[%s4 + $0x3d8] sm:$0xff] %v794
  %923 = vst [vmem:[%s4 + $0x3e0] sm:$0xff] %v795
  %924 = vst [vmem:[%s4 + $0x3e8] sm:$0xff] %v796
  %925 = vst [vmem:[%s4 + $0x3f0] sm:$0xff] %v797
  %926 = vst [vmem:[%s4 + $0x3f8] sm:$0xff] %v798
  // Predicated region
  $region18: #{nonlocal_block.5} parent=0 // pred_check
    _
  $region19: #{nonlocal_block.5} parent=0 // pred_check_branch
    %928 = sbr.rel (0) target = $region21
  $region20: #{nonlocal_block.5} parent=0 // pred_region
    _
  $region21: #{nonlocal_block.5} parent=0 // pred_fallthru
    _
  // Predicated region
  $region22: #{nonlocal_block.5} parent=0 // pred_check
    _
  $region23: #{nonlocal_block.5} parent=0 // pred_check_branch
    %930 = sbr.rel (0) target = $region25
  $region24: #{nonlocal_block.5} parent=0 // pred_region
    _
  $region25: #{nonlocal_block.5} parent=0 // pred_fallthru
    _

// kernel: nonlocal_block.4
$region0: #{nonlocal_block.4}
  #allocation0 [shape = 'u32[]', space=smem, size = 0x4, offset = 0x4, fixed_abs, tag = 'smem constant byte address 0x4 - core index']
  #allocation1 [shape = 'u32[144,128]{1,0:T(1,128)}', space=vmem, size = 0x12000, scoped, tag = 'internal scratch']
  %s0 = inlined_call_operand.vmem [shape: bf16[2,512,128], index: 0, kind: input, shape index: {}]
  %s1 = inlined_call_operand.vmem [shape: bf16[2,128,128], index: 1, kind: input, shape index: {}]
  %s2 = inlined_call_operand.vmem [shape: bf16[2,128,128], index: 2, kind: input, shape index: {}]
  %s3 = inlined_call_operand.vmem [shape: bf16[128,128], index: 3, kind: input, shape index: {}]
  %s4 = inlined_call_operand.vmem [shape: f32[1,128], index: 4, kind: input, shape index: {}]
  %s5 = inlined_call_operand.vmem [shape: bf16[128,128], index: 5, kind: input, shape index: {}]
  %s6 = inlined_call_operand.vmem [shape: f32[1,128], index: 6, kind: input, shape index: {}]
  %s7 = inlined_call_operand.vmem [shape: bf16[2,512,128], index: 7, kind: output, shape index: {0}]
  %s8 = inlined_call_operand.vmem [shape: f32[2,1,128], index: 8, kind: output, shape index: {1}]
  %s9 = inlined_call_operand.vmem [shape: f32[2,1,128], index: 9, kind: output, shape index: {2}]
  %10 = xla_tuple %s7, %s8, %s9
  %s11 = sld [smem:[#allocation0]]
  $region81: #{nonlocal_block.4} parent=0
    _
  %s13 = ssub.s32 1, %s11
  %s14 = scalar_select 0, %s13, %s11
  loop: start=0, step=1, limit=4
  $region2: #{nonlocal_block.4} parent=0 // loop_pre_header
    _
  $region3: #{nonlocal_block.4} parent=0 // loop_header
    %s16 = sphi 0, %s20
    %p17 = scmp.ge.s32.totalorder %s16, 4
    %s23 = sphi 0, %s42
    %s24 = sphi 0, %s38
    %s25 = sphi 0, %s34
    %s26 = sphi 0, %s23
    %s27 = sphi 0, %s24
    %s28 = sphi 0, %s25
    %s29 = sphi 0, %s26
    %s30 = sphi 0, %s27
    %s31 = sphi 0, %s28
    %s49 = sphi 0, %s51
    %s52 = sphi 0, %s49
    %s53 = sphi 0, %s52
    %s69 = sphi 0, %s53
    %s75 = sphi 0, %s77
    %s78 = sphi 0, %s75
    %s79 = sphi 0, %s78
    %s95 = sphi 0, %s79
    %s101 = sphi 0, %s103
    %s104 = sphi 0, %s101
    %s105 = sphi 0, %s104
    %s121 = sphi 0, %s105
    %s125 = sphi 0, %s125
    %s127 = sphi 0, %s125
    %s128 = sphi 0, %s127
    %s142 = sphi 0, %s128
    %s146 = sphi 0, %s146
    %s148 = sphi 0, %s146
    %s149 = sphi 0, %s148
    %s163 = sphi 0, %s149
    %s167 = sphi 0, %s167
    %s169 = sphi 0, %s167
    %s170 = sphi 0, %s169
    %s184 = sphi 0, %s170
    %s188 = sphi 0, %s188
    %s190 = sphi 0, %s188
    %s191 = sphi 0, %s190
    %s205 = sphi 0, %s191
    %s215 = sphi 0, %s217
    %s218 = sphi 0, %s215
    %s219 = sphi 0, %s218
    %s235 = sphi 0, %s219
    %s245 = sphi 0, %s247
    %s248 = sphi 0, %s245
    %s249 = sphi 0, %s248
    %s265 = sphi 0, %s249
    %s275 = sphi 0, %s277
    %s278 = sphi 0, %s275
    %s279 = sphi 0, %s278
    %s295 = sphi 0, %s279
  $region4: #{nonlocal_block.4} parent=0 // loop_header_branch
    %19 = sbr.rel (%p17) target = $region8
  $region5: #{nonlocal_block.4} parent=0 // loop_body
    %s21 = ssub.s32 %s16, 1
    %s22 = ssub.s32 %s16, 2
    %s32 = sadd.s32 1, %s25
    %p33 = scmp.ge.s32.totalorder %s32, 1
    %s34 = scalar_select %p33, 0, %s32
    %s35 = sadd.s32 1, %s24
    %s36 = scalar_select %p33, %s35, %s24
    %p37 = scmp.ge.s32.totalorder %s36, 2
    %s38 = scalar_select %p37, 0, %s36
    %s39 = sadd.s32 1, %s23
    %s40 = scalar_select %p37, %s39, %s23
    %p41 = scmp.ge.s32.totalorder %s40, 1
    %s42 = scalar_select %p41, 0, %s40
    %s43 = sadd.s32 %s23, %s25
    %s44 = sadd.s32 %s42, %s34
    %s45 = ssub.s32 %s24, %s38
    %s46 = ssub.s32 %s43, %s44
    %s47 = sor.u32 %s45, %s46
    %p48 = scmp.eq.s32.totalorder %s47, 0
    %s50 = sadd.s32 %s49, 1
    %s51 = scalar_select %p48, %s49, %s50
    %p54 = pneg %p48
    %p55 = scmp.eq.s32.totalorder %s16, 1
    %p56 = por %p54, %p55
    %p57 = scmp.ne.s32.totalorder %s49, %s52
    %p58 = scmp.eq.s32.totalorder %s16, 0
    %p59 = por %p57, %p58
    %p60 = scmp.ne.s32.totalorder %s49, %s52
    %p61 = scmp.eq.s32.totalorder %s21, 1
    %p62 = por %p60, %p61
    %p63 = scmp.ne.s32.totalorder %s52, %s53
    %p64 = scmp.eq.s32.totalorder %s21, 0
    %p65 = por %p63, %p64
    %p66 = scmp.ne.s32.totalorder %s52, %s53
    %p67 = scmp.eq.s32.totalorder %s22, 1
    %p68 = por %p66, %p67
    %p70 = scmp.ne.s32.totalorder %s53, %s69
    %p71 = scmp.eq.s32.totalorder %s22, 0
    %p72 = por %p70, %p71
    %s73 = ssub.s32 %s24, %s38
    %p74 = scmp.eq.s32.totalorder %s73, 0
    %s76 = sadd.s32 %s75, 1
    %s77 = scalar_select %p74, %s75, %s76
    %p80 = pneg %p74
    %p81 = scmp.eq.s32.totalorder %s16, 1
    %p82 = por %p80, %p81
    %p83 = scmp.ne.s32.totalorder %s75, %s78
    %p84 = scmp.eq.s32.totalorder %s16, 0
    %p85 = por %p83, %p84
    %p86 = scmp.ne.s32.totalorder %s75, %s78
    %p87 = scmp.eq.s32.totalorder %s21, 1
    %p88 = por %p86, %p87
    %p89 = scmp.ne.s32.totalorder %s78, %s79
    %p90 = scmp.eq.s32.totalorder %s21, 0
    %p91 = por %p89, %p90
    %p92 = scmp.ne.s32.totalorder %s78, %s79
    %p93 = scmp.eq.s32.totalorder %s22, 1
    %p94 = por %p92, %p93
    %p96 = scmp.ne.s32.totalorder %s79, %s95
    %p97 = scmp.eq.s32.totalorder %s22, 0
    %p98 = por %p96, %p97
    %s99 = ssub.s32 %s24, %s38
    %p100 = scmp.eq.s32.totalorder %s99, 0
    %s102 = sadd.s32 %s101, 1
    %s103 = scalar_select %p100, %s101, %s102
    %p106 = pneg %p100
    %p107 = scmp.eq.s32.totalorder %s16, 1
    %p108 = por %p106, %p107
    %p109 = scmp.ne.s32.totalorder %s101, %s104
    %p110 = scmp.eq.s32.totalorder %s16, 0
    %p111 = por %p109, %p110
    %p112 = scmp.ne.s32.totalorder %s101, %s104
    %p113 = scmp.eq.s32.totalorder %s21, 1
    %p114 = por %p112, %p113
    %p115 = scmp.ne.s32.totalorder %s104, %s105
    %p116 = scmp.eq.s32.totalorder %s21, 0
    %p117 = por %p115, %p116
    %p118 = scmp.ne.s32.totalorder %s104, %s105
    %p119 = scmp.eq.s32.totalorder %s22, 1
    %p120 = por %p118, %p119
    %p122 = scmp.ne.s32.totalorder %s105, %s121
    %p123 = scmp.eq.s32.totalorder %s22, 0
    %p124 = por %p122, %p123
    %s126 = sadd.s32 %s125, 1
    %p129 = scmp.eq.s32.totalorder %s16, 1
    %p130 = scmp.ne.s32.totalorder %s125, %s127
    %p131 = scmp.eq.s32.totalorder %s16, 0
    %p132 = por %p130, %p131
    %p133 = scmp.ne.s32.totalorder %s125, %s127
    %p134 = scmp.eq.s32.totalorder %s21, 1
    %p135 = por %p133, %p134
    %p136 = scmp.ne.s32.totalorder %s127, %s128
    %p137 = scmp.eq.s32.totalorder %s21, 0
    %p138 = por %p136, %p137
    %p139 = scmp.ne.s32.totalorder %s127, %s128
    %p140 = scmp.eq.s32.totalorder %s22, 1
    %p141 = por %p139, %p140
    %p143 = scmp.ne.s32.totalorder %s128, %s142
    %p144 = scmp.eq.s32.totalorder %s22, 0
    %p145 = por %p143, %p144
    %s147 = sadd.s32 %s146, 1
    %p150 = scmp.eq.s32.totalorder %s16, 1
    %p151 = scmp.ne.s32.totalorder %s146, %s148
    %p152 = scmp.eq.s32.totalorder %s16, 0
    %p153 = por %p151, %p152
    %p154 = scmp.ne.s32.totalorder %s146, %s148
    %p155 = scmp.eq.s32.totalorder %s21, 1
    %p156 = por %p154, %p155
    %p157 = scmp.ne.s32.totalorder %s148, %s149
    %p158 = scmp.eq.s32.totalorder %s21, 0
    %p159 = por %p157, %p158
    %p160 = scmp.ne.s32.totalorder %s148, %s149
    %p161 = scmp.eq.s32.totalorder %s22, 1
    %p162 = por %p160, %p161
    %p164 = scmp.ne.s32.totalorder %s149, %s163
    %p165 = scmp.eq.s32.totalorder %s22, 0
    %p166 = por %p164, %p165
    %s168 = sadd.s32 %s167, 1
    %p171 = scmp.eq.s32.totalorder %s16, 1
    %p172 = scmp.ne.s32.totalorder %s167, %s169
    %p173 = scmp.eq.s32.totalorder %s16, 0
    %p174 = por %p172, %p173
    %p175 = scmp.ne.s32.totalorder %s167, %s169
    %p176 = scmp.eq.s32.totalorder %s21, 1
    %p177 = por %p175, %p176
    %p178 = scmp.ne.s32.totalorder %s169, %s170
    %p179 = scmp.eq.s32.totalorder %s21, 0
    %p180 = por %p178, %p179
    %p181 = scmp.ne.s32.totalorder %s169, %s170
    %p182 = scmp.eq.s32.totalorder %s22, 1
    %p183 = por %p181, %p182
    %p185 = scmp.ne.s32.totalorder %s170, %s184
    %p186 = scmp.eq.s32.totalorder %s22, 0
    %p187 = por %p185, %p186
    %s189 = sadd.s32 %s188, 1
    %p192 = scmp.eq.s32.totalorder %s16, 1
    %p193 = scmp.ne.s32.totalorder %s188, %s190
    %p194 = scmp.eq.s32.totalorder %s16, 0
    %p195 = por %p193, %p194
    %p196 = scmp.ne.s32.totalorder %s188, %s190
    %p197 = scmp.eq.s32.totalorder %s21, 1
    %p198 = por %p196, %p197
    %p199 = scmp.ne.s32.totalorder %s190, %s191
    %p200 = scmp.eq.s32.totalorder %s21, 0
    %p201 = por %p199, %p200
    %p202 = scmp.ne.s32.totalorder %s190, %s191
    %p203 = scmp.eq.s32.totalorder %s22, 1
    %p204 = por %p202, %p203
    %p206 = scmp.ne.s32.totalorder %s191, %s205
    %p207 = scmp.eq.s32.totalorder %s22, 0
    %p208 = por %p206, %p207
    %s209 = sadd.s32 %s23, %s25
    %s210 = sadd.s32 %s42, %s34
    %s211 = ssub.s32 %s24, %s38
    %s212 = ssub.s32 %s209, %s210
    %s213 = sor.u32 %s211, %s212
    %p214 = scmp.eq.s32.totalorder %s213, 0
    %s216 = sadd.s32 %s215, 1
    %s217 = scalar_select %p214, %s215, %s216
    %p220 = pneg %p214
    %p221 = scmp.eq.s32.totalorder %s16, 1
    %p222 = por %p220, %p221
    %p223 = scmp.ne.s32.totalorder %s215, %s218
    %p224 = scmp.eq.s32.totalorder %s16, 0
    %p225 = por %p223, %p224
    %p226 = scmp.ne.s32.totalorder %s215, %s218
    %p227 = scmp.eq.s32.totalorder %s21, 1
    %p228 = por %p226, %p227
    %p229 = scmp.ne.s32.totalorder %s218, %s219
    %p230 = scmp.eq.s32.totalorder %s21, 0
    %p231 = por %p229, %p230
    %p232 = scmp.ne.s32.totalorder %s218, %s219
    %p233 = scmp.eq.s32.totalorder %s22, 1
    %p234 = por %p232, %p233
    %p236 = scmp.ne.s32.totalorder %s219, %s235
    %p237 = scmp.eq.s32.totalorder %s22, 0
    %p238 = por %p236, %p237
    %s239 = smul.u32 %s23, 2
    %s240 = sadd.s32 %s239, %s24
    %s241 = smul.u32 %s42, 2
    %s242 = sadd.s32 %s241, %s38
    %s243 = ssub.s32 %s240, %s242
    %p244 = scmp.eq.s32.totalorder %s243, 0
    %s246 = sadd.s32 %s245, 1
    %s247 = scalar_select %p244, %s245, %s246
    %p250 = pneg %p244
    %p251 = scmp.eq.s32.totalorder %s16, 1
    %p252 = por %p250, %p251
    %p253 = scmp.ne.s32.totalorder %s245, %s248
    %p254 = scmp.eq.s32.totalorder %s16, 0
    %p255 = por %p253, %p254
    %p256 = scmp.ne.s32.totalorder %s245, %s248
    %p257 = scmp.eq.s32.totalorder %s21, 1
    %p258 = por %p256, %p257
    %p259 = scmp.ne.s32.totalorder %s248, %s249
    %p260 = scmp.eq.s32.totalorder %s21, 0
    %p261 = por %p259, %p260
    %p262 = scmp.ne.s32.totalorder %s248, %s249
    %p263 = scmp.eq.s32.totalorder %s22, 1
    %p264 = por %p262, %p263
    %p266 = scmp.ne.s32.totalorder %s249, %s265
    %p267 = scmp.eq.s32.totalorder %s22, 0
    %p268 = por %p266, %p267
    %s269 = smul.u32 %s23, 2
    %s270 = sadd.s32 %s269, %s24
    %s271 = smul.u32 %s42, 2
    %s272 = sadd.s32 %s271, %s38
    %s273 = ssub.s32 %s270, %s272
    %p274 = scmp.eq.s32.totalorder %s273, 0
    %s276 = sadd.s32 %s275, 1
    %s277 = scalar_select %p274, %s275, %s276
    %p280 = pneg %p274
    %p281 = scmp.eq.s32.totalorder %s16, 1
    %p282 = por %p280, %p281
    %p283 = scmp.ne.s32.totalorder %s275, %s278
    %p284 = scmp.eq.s32.totalorder %s16, 0
    %p285 = por %p283, %p284
    %p286 = scmp.ne.s32.totalorder %s275, %s278
    %p287 = scmp.eq.s32.totalorder %s21, 1
    %p288 = por %p286, %p287
    %p289 = scmp.ne.s32.totalorder %s278, %s279
    %p290 = scmp.eq.s32.totalorder %s21, 0
    %p291 = por %p289, %p290
    %p292 = scmp.ne.s32.totalorder %s278, %s279
    %p293 = scmp.eq.s32.totalorder %s22, 1
    %p294 = por %p292, %p293
    %p296 = scmp.ne.s32.totalorder %s279, %s295
    %p297 = scmp.eq.s32.totalorder %s22, 0
    %p298 = por %p296, %p297
    %p299 = scmp.le.s32.totalorder 1, %s16
    %p300 = scmp.lt.s32.totalorder %s16, 3
    %p301 = pnand %p299, %p300
    %p302 = pneg %p301
    // Predicated region
    $region9: #{nonlocal_block.4} parent=5 // pred_check
      _
    $region10: #{nonlocal_block.4} parent=5 // pred_check_branch
      %304 = sbr.rel (%p301) target = $region12
    $region11: #{nonlocal_block.4} parent=5 // pred_region
      %s305 = ssub.s32 %s16, 1
      // Predicated region
      $region13: #{nonlocal_block.4} parent=11 // pred_check
        %p306 = pneg %p138
      $region14: #{nonlocal_block.4} parent=11 // pred_check_branch
        %308 = sbr.rel (%p306) target = $region16
      $region15: #{nonlocal_block.4} parent=11 // pred_region
        _
      $region16: #{nonlocal_block.4} parent=11 // pred_fallthru
        _
      // Predicated region
      $region17: #{nonlocal_block.4} parent=11 // pred_check
        %p309 = pneg %p159
      $region18: #{nonlocal_block.4} parent=11 // pred_check_branch
        %311 = sbr.rel (%p309) target = $region20
      $region19: #{nonlocal_block.4} parent=11 // pred_region
        _
      $region20: #{nonlocal_block.4} parent=11 // pred_fallthru
        _
      // Predicated region
      $region21: #{nonlocal_block.4} parent=11 // pred_check
        %p312 = pneg %p180
      $region22: #{nonlocal_block.4} parent=11 // pred_check_branch
        %314 = sbr.rel (%p312) target = $region24
      $region23: #{nonlocal_block.4} parent=11 // pred_region
        _
      $region24: #{nonlocal_block.4} parent=11 // pred_fallthru
        _
      // Predicated region
      $region25: #{nonlocal_block.4} parent=11 // pred_check
        %p315 = pneg %p201
      $region26: #{nonlocal_block.4} parent=11 // pred_check_branch
        %317 = sbr.rel (%p315) target = $region28
      $region27: #{nonlocal_block.4} parent=11 // pred_region
        _
      $region28: #{nonlocal_block.4} parent=11 // pred_fallthru
        _
    $region12: #{nonlocal_block.4} parent=5 // pred_fallthru
      _
    %p318 = scmp.lt.s32.totalorder %s16, 2
    // Predicated region
    $region29: #{nonlocal_block.4} parent=5 // pred_check
      %p319 = pneg %p318
    $region30: #{nonlocal_block.4} parent=5 // pred_check_branch
      %321 = sbr.rel (%p319) target = $region32
    $region31: #{nonlocal_block.4} parent=5 // pred_region
      // Predicated region
      $region33: #{nonlocal_block.4} parent=31 // pred_check
        %p322 = pneg %p59
      $region34: #{nonlocal_block.4} parent=31 // pred_check_branch
        %324 = sbr.rel (%p322) target = $region36
      $region35: #{nonlocal_block.4} parent=31 // pred_region
        %s325 = sadd.s32 %s23, %s25
        %s326 = smul.u32 64, %s325
        %p327 = scmp.lt.s32.totalorder %s24, 1
        %s328 = scalar_select %p327, %s24, 1
        %p329 = scmp.lt.s32.totalorder %s326, 63
        %s330 = scalar_select %p329, %s326, 63
        %s331 = smul.addr %s328, 64
        %s332 = sadd.s32 %s330, %s331
        %s333 = smul.addr %s332, 4
        %s334 = scalar_lea.vmem %s0, %s333
        %s335 = sadd.s32 %s23, %s25
        %s336 = smul.u32 64, %s335
      $region36: #{nonlocal_block.4} parent=31 // pred_fallthru
        _
      // Predicated region
      $region37: #{nonlocal_block.4} parent=31 // pred_check
        %p337 = pneg %p85
      $region38: #{nonlocal_block.4} parent=31 // pred_check_branch
        %339 = sbr.rel (%p337) target = $region40
      $region39: #{nonlocal_block.4} parent=31 // pred_region
        %p340 = scmp.lt.s32.totalorder %s24, 1
        %s341 = scalar_select %p340, %s24, 1
        %s342 = smul.addr %s341, 16
        %s343 = smul.addr %s342, 4
        %s344 = scalar_lea.vmem %s1, %s343
      $region40: #{nonlocal_block.4} parent=31 // pred_fallthru
        _
      // Predicated region
      $region41: #{nonlocal_block.4} parent=31 // pred_check
        %p345 = pneg %p111
      $region42: #{nonlocal_block.4} parent=31 // pred_check_branch
        %347 = sbr.rel (%p345) target = $region44
      $region43: #{nonlocal_block.4} parent=31 // pred_region
        %p348 = scmp.lt.s32.totalorder %s24, 1
        %s349 = scalar_select %p348, %s24, 1
        %s350 = smul.addr %s349, 16
        %s351 = smul.addr %s350, 4
        %s352 = scalar_lea.vmem %s2, %s351
      $region44: #{nonlocal_block.4} parent=31 // pred_fallthru
        _
    $region32: #{nonlocal_block.4} parent=5 // pred_fallthru
      _
    %p353 = scmp.le.s32.totalorder 1, %s16
    %p354 = scmp.lt.s32.totalorder %s16, 3
    %p355 = pnand %p353, %p354
    %p356 = pneg %p355
    // Predicated region
    $region45: #{nonlocal_block.4} parent=5 // pred_check
      _
    $region46: #{nonlocal_block.4} parent=5 // pred_check_branch
      %358 = sbr.rel (%p355) target = $region48
    $region47: #{nonlocal_block.4} parent=5 // pred_region
      %s359 = ssub.s32 %s16, 1
      %s360 = sadd.s32 %s26, %s28
      %s361 = smul.u32 64, %s360
      %p362 = scmp.lt.s32.totalorder %s27, 1
      %s363 = scalar_select %p362, %s27, 1
      %p364 = scmp.lt.s32.totalorder %s361, 63
      %s365 = scalar_select %p364, %s361, 63
      %s366 = smul.addr %s363, 64
      %s367 = sadd.s32 %s365, %s366
      %s368 = smul.addr %s367, 4
      %s369 = scalar_lea.vmem %s0, %s368
      %p370 = pneg %p65
      %p371 = pneg %p62
      %p372 = scmp.lt.s32.totalorder %s27, 1
      %s373 = scalar_select %p372, %s27, 1
      %s374 = smul.addr %s373, 16
      %s375 = smul.addr %s374, 4
      %s376 = scalar_lea.vmem %s1, %s375
      %p377 = pneg %p91
      %p378 = pneg %p88
      %p379 = scmp.lt.s32.totalorder %s27, 1
      %s380 = scalar_select %p379, %s27, 1
      %s381 = smul.addr %s380, 16
      %s382 = smul.addr %s381, 4
      %s383 = scalar_lea.vmem %s2, %s382
      %p384 = pneg %p117
      %p385 = pneg %p114
      %p386 = pneg %p138
      %p387 = pneg %p135
      %p388 = pneg %p159
      %p389 = pneg %p156
      %p390 = pneg %p180
      %p391 = pneg %p177
      %p392 = pneg %p201
      %p393 = pneg %p198
      %p394 = pneg %p231
      %p395 = pneg %p228
      %s396 = sadd.s32 %s26, %s28
      %s397 = smul.u32 64, %s396
      %p398 = scmp.lt.s32.totalorder %s27, 1
      %s399 = scalar_select %p398, %s27, 1
      %p400 = scmp.lt.s32.totalorder %s397, 63
      %s401 = scalar_select %p400, %s397, 63
      %s402 = smul.addr %s399, 64
      %s403 = sadd.s32 %s401, %s402
      %s404 = smul.addr %s403, 4
      %s405 = scalar_lea.vmem %s7, %s404
      %p406 = pneg %p261
      %p407 = pneg %p258
      %s408 = smul.u32 %s26, 2
      %s409 = sadd.s32 %s408, %s27
      %p410 = scmp.lt.s32.totalorder %s409, 1
      %s411 = scalar_select %p410, %s409, 1
      %s412 = scalar_lea.vmem %s8, %s411
      %p413 = pneg %p291
      %p414 = pneg %p288
      %s415 = smul.u32 %s26, 2
      %s416 = sadd.s32 %s415, %s27
      %p417 = scmp.lt.s32.totalorder %s416, 1
      %s418 = scalar_select %p417, %s416, 1
      %s419 = scalar_lea.vmem %s9, %s418
      %s420 = sadd.s32 %s26, %s28
      %s421 = smul.u32 64, %s420
      %p422 = scmp.lt.s32.totalorder %s27, 1
      %s423 = scalar_select %p422, %s27, 1
      %p424 = scmp.lt.s32.totalorder %s421, 63
      %s425 = scalar_select %p424, %s421, 63
      %s426 = smul.addr %s423, 64
      %s427 = sadd.s32 %s425, %s426
      %s428 = smul.addr %s427, 4
      %s429 = scalar_lea.vmem %s0, %s428
      %s430 = sadd.s32 %s26, %s28
      %s431 = smul.u32 64, %s430
      %p432 = scmp.lt.s32.totalorder %s27, 1
      %s433 = scalar_select %p432, %s27, 1
      %s434 = smul.addr %s433, 16
      %s435 = smul.addr %s434, 4
      %s436 = scalar_lea.vmem %s1, %s435
      %p437 = scmp.lt.s32.totalorder %s27, 1
      %s438 = scalar_select %p437, %s27, 1
      %s439 = smul.addr %s438, 16
      %s440 = smul.addr %s439, 4
      %s441 = scalar_lea.vmem %s2, %s440
      %s442 = sadd.s32 %s26, %s28
      %s443 = smul.u32 64, %s442
      %p444 = scmp.lt.s32.totalorder %s27, 1
      %s445 = scalar_select %p444, %s27, 1
      %p446 = scmp.lt.s32.totalorder %s443, 63
      %s447 = scalar_select %p446, %s443, 63
      %s448 = smul.addr %s445, 64
      %s449 = sadd.s32 %s447, %s448
      %s450 = smul.addr %s449, 4
      %s451 = scalar_lea.vmem %s7, %s450
      %s452 = sadd.s32 %s26, %s28
      %s453 = smul.u32 64, %s452
      %s454 = smul.u32 %s26, 2
      %s455 = sadd.s32 %s454, %s27
      %p456 = scmp.lt.s32.totalorder %s455, 1
      %s457 = scalar_select %p456, %s455, 1
      %s458 = scalar_lea.vmem %s8, %s457
      %s459 = smul.u32 %s26, 2
      %s460 = sadd.s32 %s459, %s27
      %s461 = smul.u32 %s26, 2
      %s462 = sadd.s32 %s461, %s27
      %p463 = scmp.lt.s32.totalorder %s462, 1
      %s464 = scalar_select %p463, %s462, 1
      %s465 = scalar_lea.vmem %s9, %s464
      %s466 = smul.u32 %s26, 2
      %s467 = sadd.s32 %s466, %s27
      %v469 = vld [vmem:[%s429] sm:$0xf]
      %v470 = vld [vmem:[%s429 + $0x4] sm:$0xf]
      %v471 = vld [vmem:[%s429 + $0x8] sm:$0xf]
      %v472 = vld [vmem:[%s429 + $0xc] sm:$0xf]
      %v473 = vld [vmem:[%s429 + $0x10] sm:$0xf]
      %v474 = vld [vmem:[%s429 + $0x14] sm:$0xf]
      %v475 = vld [vmem:[%s429 + $0x18] sm:$0xf]
      %v476 = vld [vmem:[%s429 + $0x1c] sm:$0xf]
      %v477 = vld [vmem:[%s429 + $0x20] sm:$0xf]
      %v478 = vld [vmem:[%s429 + $0x24] sm:$0xf]
      %v479 = vld [vmem:[%s429 + $0x28] sm:$0xf]
      %v480 = vld [vmem:[%s429 + $0x2c] sm:$0xf]
      %v481 = vld [vmem:[%s429 + $0x30] sm:$0xf]
      %v482 = vld [vmem:[%s429 + $0x34] sm:$0xf]
      %v483 = vld [vmem:[%s429 + $0x38] sm:$0xf]
      %v484 = vld [vmem:[%s429 + $0x3c] sm:$0xf]
      %v485 = vld [vmem:[%s429 + $0x40] sm:$0xf]
      %v486 = vld [vmem:[%s429 + $0x44] sm:$0xf]
      %v487 = vld [vmem:[%s429 + $0x48] sm:$0xf]
      %v488 = vld [vmem:[%s429 + $0x4c] sm:$0xf]
      %v489 = vld [vmem:[%s429 + $0x50] sm:$0xf]
      %v490 = vld [vmem:[%s429 + $0x54] sm:$0xf]
      %v491 = vld [vmem:[%s429 + $0x58] sm:$0xf]
      %v492 = vld [vmem:[%s429 + $0x5c] sm:$0xf]
      %v493 = vld [vmem:[%s429 + $0x60] sm:$0xf]
      %v494 = vld [vmem:[%s429 + $0x64] sm:$0xf]
      %v495 = vld [vmem:[%s429 + $0x68] sm:$0xf]
      %v496 = vld [vmem:[%s429 + $0x6c] sm:$0xf]
      %v497 = vld [vmem:[%s429 + $0x70] sm:$0xf]
      %v498 = vld [vmem:[%s429 + $0x74] sm:$0xf]
      %v499 = vld [vmem:[%s429 + $0x78] sm:$0xf]
      %v500 = vld [vmem:[%s429 + $0x7c] sm:$0xf]
      %v501 = vld [vmem:[%s429 + $0x80] sm:$0xf]
      %v502 = vld [vmem:[%s429 + $0x84] sm:$0xf]
      %v503 = vld [vmem:[%s429 + $0x88] sm:$0xf]
      %v504 = vld [vmem:[%s429 + $0x8c] sm:$0xf]
      %v505 = vld [vmem:[%s429 + $0x90] sm:$0xf]
      %v506 = vld [vmem:[%s429 + $0x94] sm:$0xf]
      %v507 = vld [vmem:[%s429 + $0x98] sm:$0xf]
      %v508 = vld [vmem:[%s429 + $0x9c] sm:$0xf]
      %v509 = vld [vmem:[%s429 + $0xa0] sm:$0xf]
      %v510 = vld [vmem:[%s429 + $0xa4] sm:$0xf]
      %v511 = vld [vmem:[%s429 + $0xa8] sm:$0xf]
      %v512 = vld [vmem:[%s429 + $0xac] sm:$0xf]
      %v513 = vld [vmem:[%s429 + $0xb0] sm:$0xf]
      %v514 = vld [vmem:[%s429 + $0xb4] sm:$0xf]
      %v515 = vld [vmem:[%s429 + $0xb8] sm:$0xf]
      %v516 = vld [vmem:[%s429 + $0xbc] sm:$0xf]
      %v517 = vld [vmem:[%s429 + $0xc0] sm:$0xf]
      %v518 = vld [vmem:[%s429 + $0xc4] sm:$0xf]
      %v519 = vld [vmem:[%s429 + $0xc8] sm:$0xf]
      %v520 = vld [vmem:[%s429 + $0xcc] sm:$0xf]
      %v521 = vld [vmem:[%s429 + $0xd0] sm:$0xf]
      %v522 = vld [vmem:[%s429 + $0xd4] sm:$0xf]
      %v523 = vld [vmem:[%s429 + $0xd8] sm:$0xf]
      %v524 = vld [vmem:[%s429 + $0xdc] sm:$0xf]
      %v525 = vld [vmem:[%s429 + $0xe0] sm:$0xf]
      %v526 = vld [vmem:[%s429 + $0xe4] sm:$0xf]
      %v527 = vld [vmem:[%s429 + $0xe8] sm:$0xf]
      %v528 = vld [vmem:[%s429 + $0xec] sm:$0xf]
      %v529 = vld [vmem:[%s429 + $0xf0] sm:$0xf]
      %v530 = vld [vmem:[%s429 + $0xf4] sm:$0xf]
      %v531 = vld [vmem:[%s429 + $0xf8] sm:$0xf]
      %v532 = vld [vmem:[%s429 + $0xfc] sm:$0xf]
      %v533 = vld [vmem:[%s3] sm:$0xf]
      %v534 = vld [vmem:[%s3 + $0x4] sm:$0xf]
      %v535 = vld [vmem:[%s3 + $0x8] sm:$0xf]
      %v536 = vld [vmem:[%s3 + $0xc] sm:$0xf]
      %v537 = vld [vmem:[%s3 + $0x10] sm:$0xf]
      %v538 = vld [vmem:[%s3 + $0x14] sm:$0xf]
      %v539 = vld [vmem:[%s3 + $0x18] sm:$0xf]
      %v540 = vld [vmem:[%s3 + $0x1c] sm:$0xf]
      %v541 = vld [vmem:[%s3 + $0x20] sm:$0xf]
      %v542 = vld [vmem:[%s3 + $0x24] sm:$0xf]
      %v543 = vld [vmem:[%s3 + $0x28] sm:$0xf]
      %v544 = vld [vmem:[%s3 + $0x2c] sm:$0xf]
      %v545 = vld [vmem:[%s3 + $0x30] sm:$0xf]
      %v546 = vld [vmem:[%s3 + $0x34] sm:$0xf]
      %v547 = vld [vmem:[%s3 + $0x38] sm:$0xf]
      %v548 = vld [vmem:[%s3 + $0x3c] sm:$0xf]
      %v549 = vld [vmem:[%s4] sm:$0x1]
      %v551 = vlaneseq
      %v552 = vshrl.u32 %v551, 7
      %v553 = vsub.s32 0, %v552
      %v554 = vrot.slane %v549, %v553
      %v620 = vunpack.c.l.b16 %v469
      %v621 = vunpack.c.l.b16 %v470
      %v622 = vunpack.c.l.b16 %v471
      %v623 = vunpack.c.l.b16 %v472
      %v624 = vunpack.c.l.b16 %v473
      %v625 = vunpack.c.l.b16 %v474
      %v626 = vunpack.c.l.b16 %v475
      %v627 = vunpack.c.l.b16 %v476
      %v628 = vunpack.c.l.b16 %v477
      %v629 = vunpack.c.l.b16 %v478
      %v630 = vunpack.c.l.b16 %v479
      %v631 = vunpack.c.l.b16 %v480
      %v632 = vunpack.c.l.b16 %v481
      %v633 = vunpack.c.l.b16 %v482
      %v634 = vunpack.c.l.b16 %v483
      %v635 = vunpack.c.l.b16 %v484
      %v636 = vunpack.c.l.b16 %v485
      %v637 = vunpack.c.l.b16 %v486
      %v638 = vunpack.c.l.b16 %v487
      %v639 = vunpack.c.l.b16 %v488
      %v640 = vunpack.c.l.b16 %v489
      %v641 = vunpack.c.l.b16 %v490
      %v642 = vunpack.c.l.b16 %v491
      %v643 = vunpack.c.l.b16 %v492
      %v644 = vunpack.c.l.b16 %v493
      %v645 = vunpack.c.l.b16 %v494
      %v646 = vunpack.c.l.b16 %v495
      %v647 = vunpack.c.l.b16 %v496
      %v648 = vunpack.c.l.b16 %v497
      %v649 = vunpack.c.l.b16 %v498
      %v650 = vunpack.c.l.b16 %v499
      %v651 = vunpack.c.l.b16 %v500
      %v652 = vunpack.c.l.b16 %v501
      %v653 = vunpack.c.l.b16 %v502
      %v654 = vunpack.c.l.b16 %v503
      %v655 = vunpack.c.l.b16 %v504
      %v656 = vunpack.c.l.b16 %v505
      %v657 = vunpack.c.l.b16 %v506
      %v658 = vunpack.c.l.b16 %v507
      %v659 = vunpack.c.l.b16 %v508
      %v660 = vunpack.c.l.b16 %v509
      %v661 = vunpack.c.l.b16 %v510
      %v662 = vunpack.c.l.b16 %v511
      %v663 = vunpack.c.l.b16 %v512
      %v664 = vunpack.c.l.b16 %v513
      %v665 = vunpack.c.l.b16 %v514
      %v666 = vunpack.c.l.b16 %v515
      %v667 = vunpack.c.l.b16 %v516
      %v668 = vunpack.c.l.b16 %v517
      %v669 = vunpack.c.l.b16 %v518
      %v670 = vunpack.c.l.b16 %v519
      %v671 = vunpack.c.l.b16 %v520
      %v672 = vunpack.c.l.b16 %v521
      %v673 = vunpack.c.l.b16 %v522
      %v674 = vunpack.c.l.b16 %v523
      %v675 = vunpack.c.l.b16 %v524
      %v676 = vunpack.c.l.b16 %v525
      %v677 = vunpack.c.l.b16 %v526
      %v678 = vunpack.c.l.b16 %v527
      %v679 = vunpack.c.l.b16 %v528
      %v680 = vunpack.c.l.b16 %v529
      %v681 = vunpack.c.l.b16 %v530
      %v682 = vunpack.c.l.b16 %v531
      %v683 = vunpack.c.l.b16 %v532
      %v684 = vpack.c.b16 %v621, %v620
      %v685 = vpack.c.b16 %v623, %v622
      %v686 = vpack.c.b16 %v625, %v624
      %v687 = vpack.c.b16 %v627, %v626
      %v688 = vpack.c.b16 %v629, %v628
      %v689 = vpack.c.b16 %v631, %v630
      %v690 = vpack.c.b16 %v633, %v632
      %v691 = vpack.c.b16 %v635, %v634
      %v692 = vpack.c.b16 %v637, %v636
      %v693 = vpack.c.b16 %v639, %v638
      %v694 = vpack.c.b16 %v641, %v640
      %v695 = vpack.c.b16 %v643, %v642
      %v696 = vpack.c.b16 %v645, %v644
      %v697 = vpack.c.b16 %v647, %v646
      %v698 = vpack.c.b16 %v649, %v648
      %v699 = vpack.c.b16 %v651, %v650
      %v700 = vpack.c.b16 %v653, %v652
      %v701 = vpack.c.b16 %v655, %v654
      %v702 = vpack.c.b16 %v657, %v656
      %v703 = vpack.c.b16 %v659, %v658
      %v704 = vpack.c.b16 %v661, %v660
      %v705 = vpack.c.b16 %v663, %v662
      %v706 = vpack.c.b16 %v665, %v664
      %v707 = vpack.c.b16 %v667, %v666
      %v708 = vpack.c.b16 %v669, %v668
      %v709 = vpack.c.b16 %v671, %v670
      %v710 = vpack.c.b16 %v673, %v672
      %v711 = vpack.c.b16 %v675, %v674
      %v712 = vpack.c.b16 %v677, %v676
      %v713 = vpack.c.b16 %v679, %v678
      %v714 = vpack.c.b16 %v681, %v680
      %v715 = vpack.c.b16 %v683, %v682
      %v764 = vunpack.c.l.b16 %v533
      %v765 = vunpack.c.l.b16 %v534
      %v766 = vunpack.c.l.b16 %v535
      %v767 = vunpack.c.l.b16 %v536
      %v768 = vunpack.c.l.b16 %v537
      %v769 = vunpack.c.l.b16 %v538
      %v770 = vunpack.c.l.b16 %v539
      %v771 = vunpack.c.l.b16 %v540
      %v772 = vunpack.c.l.b16 %v541
      %v773 = vunpack.c.l.b16 %v542
      %v774 = vunpack.c.l.b16 %v543
      %v775 = vunpack.c.l.b16 %v544
      %v776 = vunpack.c.l.b16 %v545
      %v777 = vunpack.c.l.b16 %v546
      %v778 = vunpack.c.l.b16 %v547
      %v779 = vunpack.c.l.b16 %v548
      %v780 = vpack.c.b16 %v765, %v764
      %v781 = vpack.c.b16 %v767, %v766
      %v782 = vpack.c.b16 %v769, %v768
      %v783 = vpack.c.b16 %v771, %v770
      %v784 = vpack.c.b16 %v773, %v772
      %v785 = vpack.c.b16 %v775, %v774
      %v786 = vpack.c.b16 %v777, %v776
      %v787 = vpack.c.b16 %v779, %v778
      %796 = vmatprep.subr.bf16.mxu0 0
      %797 = vmatpush1.bf16.msra.mxu0 %v787
      %798 = vmatprep.subr.bf16.mxu0 0
      %799 = vmatpush1.bf16.msra.mxu0 %v786
      %800 = vmatprep.subr.bf16.mxu0 0
      %801 = vmatpush1.bf16.msra.mxu0 %v785
      %802 = vmatprep.subr.bf16.mxu0 0
      %803 = vmatpush1.bf16.msra.mxu0 %v784
      %804 = vmatprep.subr.bf16.mxu0 0
      %805 = vmatpush1.bf16.msra.mxu0 %v783
      %806 = vmatprep.subr.bf16.mxu0 0
      %807 = vmatpush1.bf16.msra.mxu0 %v782
      %808 = vmatprep.subr.bf16.mxu0 0
      %809 = vmatpush1.bf16.msra.mxu0 %v781
      %810 = vmatprep.subr.bf16.mxu0 0
      %811 = vmatpush1.bf16.msra.mxu0 %v780
      %812 = vmatprep.subr.bf16.mxu0 0
      %813 = vmatpush2.bf16.msra.mxu0 0
      %814 = vmatprep.subr.bf16.mxu0 0
      %815 = vmatpush2.bf16.msra.mxu0 0
      %816 = vmatprep.subr.bf16.mxu0 0
      %817 = vmatpush2.bf16.msra.mxu0 0
      %818 = vmatprep.subr.bf16.mxu0 0
      %819 = vmatpush2.bf16.msra.mxu0 0
      %820 = vmatprep.subr.bf16.mxu0 0
      %821 = vmatpush2.bf16.msra.mxu0 0
      %822 = vmatprep.subr.bf16.mxu0 0
      %823 = vmatpush2.bf16.msra.mxu0 0
      %824 = vmatprep.subr.bf16.mxu0 0
      %825 = vmatpush2.bf16.msra.mxu0 0
      %826 = vmatprep.subr.bf16.mxu0 0
      %827 = vmatpush2.bf16.msra.mxu0 0
      %828 = vmatprep.mubr.bf16.mxu0 0
      %829 = vmatmul.mubr.bf16.gmra.mxu0 %v684
      %v830 = vpop.f32.mrf.mxu0
      %v831 = vadd.f32 %v554, %v830
      %v832 = vpop.f32.mrf.mxu0
      %v833 = vpop.f32.mrf.mxu0
      %v834 = vadd.f32 %v554, %v833
      %v835 = vpop.f32.mrf.mxu0
      %836 = vmatprep.mubr.bf16.mxu0 0
      %837 = vmatmul.mubr.bf16.gmra.mxu0 %v685
      %v838 = vpop.f32.mrf.mxu0
      %v839 = vadd.f32 %v554, %v838
      %v840 = vpop.f32.mrf.mxu0
      %v841 = vpop.f32.mrf.mxu0
      %v842 = vadd.f32 %v554, %v841
      %v843 = vpop.f32.mrf.mxu0
      %844 = vmatprep.mubr.bf16.mxu0 0
      %845 = vmatmul.mubr.bf16.gmra.mxu0 %v686
      %v846 = vpop.f32.mrf.mxu0
      %v847 = vadd.f32 %v554, %v846
      %v848 = vpop.f32.mrf.mxu0
      %v849 = vpop.f32.mrf.mxu0
      %v850 = vadd.f32 %v554, %v849
      %v851 = vpop.f32.mrf.mxu0
      %852 = vmatprep.mubr.bf16.mxu0 0
      %853 = vmatmul.mubr.bf16.gmra.mxu0 %v687
      %v854 = vpop.f32.mrf.mxu0
      %v855 = vadd.f32 %v554, %v854
      %v856 = vpop.f32.mrf.mxu0
      %v857 = vpop.f32.mrf.mxu0
      %v858 = vadd.f32 %v554, %v857
      %v859 = vpop.f32.mrf.mxu0
      %860 = vmatprep.mubr.bf16.mxu0 0
      %861 = vmatmul.mubr.bf16.gmra.mxu0 %v688
      %v862 = vpop.f32.mrf.mxu0
      %v863 = vadd.f32 %v554, %v862
      %v864 = vpop.f32.mrf.mxu0
      %v865 = vpop.f32.mrf.mxu0
      %v866 = vadd.f32 %v554, %v865
      %v867 = vpop.f32.mrf.mxu0
      %868 = vmatprep.mubr.bf16.mxu0 0
      %869 = vmatmul.mubr.bf16.gmra.mxu0 %v689
      %v870 = vpop.f32.mrf.mxu0
      %v871 = vadd.f32 %v554, %v870
      %v872 = vpop.f32.mrf.mxu0
      %v873 = vpop.f32.mrf.mxu0
      %v874 = vadd.f32 %v554, %v873
      %v875 = vpop.f32.mrf.mxu0
      %876 = vmatprep.mubr.bf16.mxu0 0
      %877 = vmatmul.mubr.bf16.gmra.mxu0 %v690
      %v878 = vpop.f32.mrf.mxu0
      %v879 = vadd.f32 %v554, %v878
      %v880 = vpop.f32.mrf.mxu0
      %v881 = vpop.f32.mrf.mxu0
      %v882 = vadd.f32 %v554, %v881
      %v883 = vpop.f32.mrf.mxu0
      %884 = vmatprep.mubr.bf16.mxu0 0
      %885 = vmatmul.mubr.bf16.gmra.mxu0 %v691
      %v886 = vpop.f32.mrf.mxu0
      %v887 = vadd.f32 %v554, %v886
      %v888 = vpop.f32.mrf.mxu0
      %v889 = vpop.f32.mrf.mxu0
      %v890 = vadd.f32 %v554, %v889
      %v891 = vpop.f32.mrf.mxu0
      %892 = vmatprep.mubr.bf16.mxu0 0
      %893 = vmatmul.mubr.bf16.gmra.mxu0 %v692
      %v894 = vpop.f32.mrf.mxu0
      %v895 = vadd.f32 %v554, %v894
      %v896 = vpop.f32.mrf.mxu0
      %v897 = vpop.f32.mrf.mxu0
      %v898 = vadd.f32 %v554, %v897
      %v899 = vpop.f32.mrf.mxu0
      %900 = vmatprep.mubr.bf16.mxu0 0
      %901 = vmatmul.mubr.bf16.gmra.mxu0 %v693
      %v902 = vpop.f32.mrf.mxu0
      %v903 = vadd.f32 %v554, %v902
      %v904 = vpop.f32.mrf.mxu0
      %v905 = vpop.f32.mrf.mxu0
      %v906 = vadd.f32 %v554, %v905
      %v907 = vpop.f32.mrf.mxu0
      %908 = vmatprep.mubr.bf16.mxu0 0
      %909 = vmatmul.mubr.bf16.gmra.mxu0 %v694
      %v910 = vpop.f32.mrf.mxu0
      %v911 = vadd.f32 %v554, %v910
      %v912 = vpop.f32.mrf.mxu0
      %v913 = vpop.f32.mrf.mxu0
      %v914 = vadd.f32 %v554, %v913
      %v915 = vpop.f32.mrf.mxu0
      %916 = vmatprep.mubr.bf16.mxu0 0
      %917 = vmatmul.mubr.bf16.gmra.mxu0 %v695
      %v918 = vpop.f32.mrf.mxu0
      %v919 = vadd.f32 %v554, %v918
      %v920 = vpop.f32.mrf.mxu0
      %v921 = vpop.f32.mrf.mxu0
      %v922 = vadd.f32 %v554, %v921
      %v923 = vpop.f32.mrf.mxu0
      %924 = vmatprep.mubr.bf16.mxu0 0
      %925 = vmatmul.mubr.bf16.gmra.mxu0 %v696
      %v926 = vpop.f32.mrf.mxu0
      %v927 = vadd.f32 %v554, %v926
      %v928 = vpop.f32.mrf.mxu0
      %v929 = vpop.f32.mrf.mxu0
      %v930 = vadd.f32 %v554, %v929
      %v931 = vpop.f32.mrf.mxu0
      %932 = vmatprep.mubr.bf16.mxu0 0
      %933 = vmatmul.mubr.bf16.gmra.mxu0 %v697
      %v934 = vpop.f32.mrf.mxu0
      %v935 = vadd.f32 %v554, %v934
      %v936 = vpop.f32.mrf.mxu0
      %v937 = vpop.f32.mrf.mxu0
      %v938 = vadd.f32 %v554, %v937
      %v939 = vpop.f32.mrf.mxu0
      %940 = vmatprep.mubr.bf16.mxu0 0
      %941 = vmatmul.mubr.bf16.gmra.mxu0 %v698
      %v942 = vpop.f32.mrf.mxu0
      %v943 = vadd.f32 %v554, %v942
      %v944 = vpop.f32.mrf.mxu0
      %v945 = vpop.f32.mrf.mxu0
      %v946 = vadd.f32 %v554, %v945
      %v947 = vpop.f32.mrf.mxu0
      %948 = vmatprep.mubr.bf16.mxu0 0
      %949 = vmatmul.mubr.bf16.gmra.mxu0 %v699
      %v950 = vpop.f32.mrf.mxu0
      %v951 = vadd.f32 %v554, %v950
      %v952 = vpop.f32.mrf.mxu0
      %v953 = vpop.f32.mrf.mxu0
      %v954 = vadd.f32 %v554, %v953
      %v955 = vpop.f32.mrf.mxu0
      %956 = vmatprep.mubr.bf16.mxu0 0
      %957 = vmatmul.mubr.bf16.gmra.mxu0 %v700
      %v958 = vpop.f32.mrf.mxu0
      %v959 = vadd.f32 %v554, %v958
      %v960 = vpop.f32.mrf.mxu0
      %v961 = vpop.f32.mrf.mxu0
      %v962 = vadd.f32 %v554, %v961
      %v963 = vpop.f32.mrf.mxu0
      %964 = vmatprep.mubr.bf16.mxu0 0
      %965 = vmatmul.mubr.bf16.gmra.mxu0 %v701
      %v966 = vpop.f32.mrf.mxu0
      %v967 = vadd.f32 %v554, %v966
      %v968 = vpop.f32.mrf.mxu0
      %v969 = vpop.f32.mrf.mxu0
      %v970 = vadd.f32 %v554, %v969
      %v971 = vpop.f32.mrf.mxu0
      %972 = vmatprep.mubr.bf16.mxu0 0
      %973 = vmatmul.mubr.bf16.gmra.mxu0 %v702
      %v974 = vpop.f32.mrf.mxu0
      %v975 = vadd.f32 %v554, %v974
      %v976 = vpop.f32.mrf.mxu0
      %v977 = vpop.f32.mrf.mxu0
      %v978 = vadd.f32 %v554, %v977
      %v979 = vpop.f32.mrf.mxu0
      %980 = vmatprep.mubr.bf16.mxu0 0
      %981 = vmatmul.mubr.bf16.gmra.mxu0 %v703
      %v982 = vpop.f32.mrf.mxu0
      %v983 = vadd.f32 %v554, %v982
      %v984 = vpop.f32.mrf.mxu0
      %v985 = vpop.f32.mrf.mxu0
      %v986 = vadd.f32 %v554, %v985
      %v987 = vpop.f32.mrf.mxu0
      %988 = vmatprep.mubr.bf16.mxu0 0
      %989 = vmatmul.mubr.bf16.gmra.mxu0 %v704
      %v990 = vpop.f32.mrf.mxu0
      %v991 = vadd.f32 %v554, %v990
      %v992 = vpop.f32.mrf.mxu0
      %v993 = vpop.f32.mrf.mxu0
      %v994 = vadd.f32 %v554, %v993
      %v995 = vpop.f32.mrf.mxu0
      %996 = vmatprep.mubr.bf16.mxu0 0
      %997 = vmatmul.mubr.bf16.gmra.mxu0 %v705
      %v998 = vpop.f32.mrf.mxu0
      %v999 = vadd.f32 %v554, %v998
      %v1000 = vpop.f32.mrf.mxu0
      %v1001 = vpop.f32.mrf.mxu0
      %v1002 = vadd.f32 %v554, %v1001
      %v1003 = vpop.f32.mrf.mxu0
      %1004 = vmatprep.mubr.bf16.mxu0 0
      %1005 = vmatmul.mubr.bf16.gmra.mxu0 %v706
      %v1006 = vpop.f32.mrf.mxu0
      %v1007 = vadd.f32 %v554, %v1006
      %v1008 = vpop.f32.mrf.mxu0
      %v1009 = vpop.f32.mrf.mxu0
      %v1010 = vadd.f32 %v554, %v1009
      %v1011 = vpop.f32.mrf.mxu0
      %1012 = vmatprep.mubr.bf16.mxu0 0
      %1013 = vmatmul.mubr.bf16.gmra.mxu0 %v707
      %v1014 = vpop.f32.mrf.mxu0
      %v1015 = vadd.f32 %v554, %v1014
      %v1016 = vpop.f32.mrf.mxu0
      %v1017 = vpop.f32.mrf.mxu0
      %v1018 = vadd.f32 %v554, %v1017
      %v1019 = vpop.f32.mrf.mxu0
      %1020 = vmatprep.mubr.bf16.mxu0 0
      %1021 = vmatmul.mubr.bf16.gmra.mxu0 %v708
      %v1022 = vpop.f32.mrf.mxu0
      %v1023 = vadd.f32 %v554, %v1022
      %v1024 = vpop.f32.mrf.mxu0
      %v1025 = vpop.f32.mrf.mxu0
      %v1026 = vadd.f32 %v554, %v1025
      %v1027 = vpop.f32.mrf.mxu0
      %1028 = vmatprep.mubr.bf16.mxu0 0
      %1029 = vmatmul.mubr.bf16.gmra.mxu0 %v709
      %v1030 = vpop.f32.mrf.mxu0
      %v1031 = vadd.f32 %v554, %v1030
      %v1032 = vpop.f32.mrf.mxu0
      %v1033 = vpop.f32.mrf.mxu0
      %v1034 = vadd.f32 %v554, %v1033
      %v1035 = vpop.f32.mrf.mxu0
      %1036 = vmatprep.mubr.bf16.mxu0 0
      %1037 = vmatmul.mubr.bf16.gmra.mxu0 %v710
      %v1038 = vpop.f32.mrf.mxu0
      %v1039 = vadd.f32 %v554, %v1038
      %v1040 = vpop.f32.mrf.mxu0
      %v1041 = vpop.f32.mrf.mxu0
      %v1042 = vadd.f32 %v554, %v1041
      %v1043 = vpop.f32.mrf.mxu0
      %1044 = vmatprep.mubr.bf16.mxu0 0
      %1045 = vmatmul.mubr.bf16.gmra.mxu0 %v711
      %v1046 = vpop.f32.mrf.mxu0
      %v1047 = vadd.f32 %v554, %v1046
      %v1048 = vpop.f32.mrf.mxu0
      %v1049 = vpop.f32.mrf.mxu0
      %v1050 = vadd.f32 %v554, %v1049
      %v1051 = vpop.f32.mrf.mxu0
      %1052 = vmatprep.mubr.bf16.mxu0 0
      %1053 = vmatmul.mubr.bf16.gmra.mxu0 %v712
      %v1054 = vpop.f32.mrf.mxu0
      %v1055 = vadd.f32 %v554, %v1054
      %v1056 = vpop.f32.mrf.mxu0
      %v1057 = vpop.f32.mrf.mxu0
      %v1058 = vadd.f32 %v554, %v1057
      %v1059 = vpop.f32.mrf.mxu0
      %1060 = vmatprep.mubr.bf16.mxu0 0
      %1061 = vmatmul.mubr.bf16.gmra.mxu0 %v713
      %v1062 = vpop.f32.mrf.mxu0
      %v1063 = vadd.f32 %v554, %v1062
      %v1064 = vpop.f32.mrf.mxu0
      %v1065 = vpop.f32.mrf.mxu0
      %v1066 = vadd.f32 %v554, %v1065
      %v1067 = vpop.f32.mrf.mxu0
      %1068 = vmatprep.mubr.bf16.mxu0 0
      %1069 = vmatmul.mubr.bf16.gmra.mxu0 %v714
      %v1070 = vpop.f32.mrf.mxu0
      %v1071 = vadd.f32 %v554, %v1070
      %v1072 = vpop.f32.mrf.mxu0
      %v1073 = vpop.f32.mrf.mxu0
      %v1074 = vadd.f32 %v554, %v1073
      %v1075 = vpop.f32.mrf.mxu0
      %1076 = vmatprep.mubr.bf16.mxu0 0
      %1077 = vmatmul.mubr.bf16.gmra.mxu0 %v715
      %v1078 = vpop.f32.mrf.mxu0
      %v1079 = vadd.f32 %v554, %v1078
      %v1080 = vpop.f32.mrf.mxu0
      %v1081 = vpop.f32.mrf.mxu0
      %v1082 = vadd.f32 %v554, %v1081
      %v1083 = vpop.f32.mrf.mxu0
      %1084 = vdwg.mxu0
      %v1085 = vpack.c.bf16 %v834, %v831
      %v1086 = vpack.c.bf16 %v842, %v839
      %v1087 = vpack.c.bf16 %v850, %v847
      %v1088 = vpack.c.bf16 %v858, %v855
      %v1089 = vpack.c.bf16 %v866, %v863
      %v1090 = vpack.c.bf16 %v874, %v871
      %v1091 = vpack.c.bf16 %v882, %v879
      %v1092 = vpack.c.bf16 %v890, %v887
      %v1093 = vpack.c.bf16 %v898, %v895
      %v1094 = vpack.c.bf16 %v906, %v903
      %v1095 = vpack.c.bf16 %v914, %v911
      %v1096 = vpack.c.bf16 %v922, %v919
      %v1097 = vpack.c.bf16 %v930, %v927
      %v1098 = vpack.c.bf16 %v938, %v935
      %v1099 = vpack.c.bf16 %v946, %v943
      %v1100 = vpack.c.bf16 %v954, %v951
      %v1101 = vpack.c.bf16 %v962, %v959
      %v1102 = vpack.c.bf16 %v970, %v967
      %v1103 = vpack.c.bf16 %v978, %v975
      %v1104 = vpack.c.bf16 %v986, %v983
      %v1105 = vpack.c.bf16 %v994, %v991
      %v1106 = vpack.c.bf16 %v1002, %v999
      %v1107 = vpack.c.bf16 %v1010, %v1007
      %v1108 = vpack.c.bf16 %v1018, %v1015
      %v1109 = vpack.c.bf16 %v1026, %v1023
      %v1110 = vpack.c.bf16 %v1034, %v1031
      %v1111 = vpack.c.bf16 %v1042, %v1039
      %v1112 = vpack.c.bf16 %v1050, %v1047
      %v1113 = vpack.c.bf16 %v1058, %v1055
      %v1114 = vpack.c.bf16 %v1066, %v1063
      %v1115 = vpack.c.bf16 %v1074, %v1071
      %v1116 = vpack.c.bf16 %v1082, %v1079
      %v1117 = vld [vmem:[%s436] sm:$0xf]
      %v1118 = vld [vmem:[%s436 + $0x4] sm:$0xf]
      %v1119 = vld [vmem:[%s436 + $0x8] sm:$0xf]
      %v1120 = vld [vmem:[%s436 + $0xc] sm:$0xf]
      %v1121 = vld [vmem:[%s436 + $0x10] sm:$0xf]
      %v1122 = vld [vmem:[%s436 + $0x14] sm:$0xf]
      %v1123 = vld [vmem:[%s436 + $0x18] sm:$0xf]
      %v1124 = vld [vmem:[%s436 + $0x1c] sm:$0xf]
      %v1125 = vld [vmem:[%s436 + $0x20] sm:$0xf]
      %v1126 = vld [vmem:[%s436 + $0x24] sm:$0xf]
      %v1127 = vld [vmem:[%s436 + $0x28] sm:$0xf]
      %v1128 = vld [vmem:[%s436 + $0x2c] sm:$0xf]
      %v1129 = vld [vmem:[%s436 + $0x30] sm:$0xf]
      %v1130 = vld [vmem:[%s436 + $0x34] sm:$0xf]
      %v1131 = vld [vmem:[%s436 + $0x38] sm:$0xf]
      %v1132 = vld [vmem:[%s436 + $0x3c] sm:$0xf]
      %v1149 = vunpack.c.l.b16 %v1117
      %v1150 = vunpack.c.l.b16 %v1118
      %v1151 = vunpack.c.l.b16 %v1119
      %v1152 = vunpack.c.l.b16 %v1120
      %v1153 = vunpack.c.l.b16 %v1121
      %v1154 = vunpack.c.l.b16 %v1122
      %v1155 = vunpack.c.l.b16 %v1123
      %v1156 = vunpack.c.l.b16 %v1124
      %v1157 = vunpack.c.l.b16 %v1125
      %v1158 = vunpack.c.l.b16 %v1126
      %v1159 = vunpack.c.l.b16 %v1127
      %v1160 = vunpack.c.l.b16 %v1128
      %v1161 = vunpack.c.l.b16 %v1129
      %v1162 = vunpack.c.l.b16 %v1130
      %v1163 = vunpack.c.l.b16 %v1131
      %v1164 = vunpack.c.l.b16 %v1132
      %v1165 = vpack.c.b16 %v1150, %v1149
      %v1166 = vpack.c.b16 %v1152, %v1151
      %v1167 = vpack.c.b16 %v1154, %v1153
      %v1168 = vpack.c.b16 %v1156, %v1155
      %v1169 = vpack.c.b16 %v1158, %v1157
      %v1170 = vpack.c.b16 %v1160, %v1159
      %v1171 = vpack.c.b16 %v1162, %v1161
      %v1172 = vpack.c.b16 %v1164, %v1163
      %1181 = vmatprep.subr.bf16.mxu0 0
      %1182 = vmatpush1.bf16.msra.mxu0 %v1172
      %1183 = vmatprep.subr.bf16.mxu0 0
      %1184 = vmatpush1.bf16.msra.mxu0 %v1171
      %1185 = vmatprep.subr.bf16.mxu0 0
      %1186 = vmatpush1.bf16.msra.mxu0 %v1170
      %1187 = vmatprep.subr.bf16.mxu0 0
      %1188 = vmatpush1.bf16.msra.mxu0 %v1169
      %1189 = vmatprep.subr.bf16.mxu0 0
      %1190 = vmatpush1.bf16.msra.mxu0 %v1168
      %1191 = vmatprep.subr.bf16.mxu0 0
      %1192 = vmatpush1.bf16.msra.mxu0 %v1167
      %1193 = vmatprep.subr.bf16.mxu0 0
      %1194 = vmatpush1.bf16.msra.mxu0 %v1166
      %1195 = vmatprep.subr.bf16.mxu0 0
      %1196 = vmatpush1.bf16.msra.mxu0 %v1165
      %1197 = vmatprep.subr.bf16.mxu0 0
      %1198 = vmatpush2.bf16.msra.mxu0 0
      %1199 = vmatprep.subr.bf16.mxu0 0
      %1200 = vmatpush2.bf16.msra.mxu0 0
      %1201 = vmatprep.subr.bf16.mxu0 0
      %1202 = vmatpush2.bf16.msra.mxu0 0
      %1203 = vmatprep.subr.bf16.mxu0 0
      %1204 = vmatpush2.bf16.msra.mxu0 0
      %1205 = vmatprep.subr.bf16.mxu0 0
      %1206 = vmatpush2.bf16.msra.mxu0 0
      %1207 = vmatprep.subr.bf16.mxu0 0
      %1208 = vmatpush2.bf16.msra.mxu0 0
      %1209 = vmatprep.subr.bf16.mxu0 0
      %1210 = vmatpush2.bf16.msra.mxu0 0
      %1211 = vmatprep.subr.bf16.mxu0 0
      %1212 = vmatpush2.bf16.msra.mxu0 0
      %1213 = vmatprep.mubr.bf16.mxu0 0
      %1214 = vmatmul.mubr.bf16.gmra.mxu0 %v1085
      %v1215 = vpop.f32.mrf.mxu0
      %v1216 = vadd.f32 0.0, %v1215
      %v1217 = vpop.f32.mrf.mxu0
      %v1218 = vpop.f32.mrf.mxu0
      %v1219 = vadd.f32 0.0, %v1218
      %v1220 = vpop.f32.mrf.mxu0
      %1221 = vmatprep.mubr.bf16.mxu0 0
      %1222 = vmatmul.mubr.bf16.gmra.mxu0 %v1086
      %v1223 = vpop.f32.mrf.mxu0
      %v1224 = vadd.f32 0.0, %v1223
      %v1225 = vpop.f32.mrf.mxu0
      %v1226 = vpop.f32.mrf.mxu0
      %v1227 = vadd.f32 0.0, %v1226
      %v1228 = vpop.f32.mrf.mxu0
      %1229 = vmatprep.mubr.bf16.mxu0 0
      %1230 = vmatmul.mubr.bf16.gmra.mxu0 %v1087
      %v1231 = vpop.f32.mrf.mxu0
      %v1232 = vadd.f32 0.0, %v1231
      %v1233 = vpop.f32.mrf.mxu0
      %v1234 = vpop.f32.mrf.mxu0
      %v1235 = vadd.f32 0.0, %v1234
      %v1236 = vpop.f32.mrf.mxu0
      %1237 = vmatprep.mubr.bf16.mxu0 0
      %1238 = vmatmul.mubr.bf16.gmra.mxu0 %v1088
      %v1239 = vpop.f32.mrf.mxu0
      %v1240 = vadd.f32 0.0, %v1239
      %v1241 = vpop.f32.mrf.mxu0
      %v1242 = vpop.f32.mrf.mxu0
      %v1243 = vadd.f32 0.0, %v1242
      %v1244 = vpop.f32.mrf.mxu0
      %1245 = vmatprep.mubr.bf16.mxu0 0
      %1246 = vmatmul.mubr.bf16.gmra.mxu0 %v1089
      %v1247 = vpop.f32.mrf.mxu0
      %v1248 = vadd.f32 0.0, %v1247
      %v1249 = vpop.f32.mrf.mxu0
      %v1250 = vpop.f32.mrf.mxu0
      %v1251 = vadd.f32 0.0, %v1250
      %v1252 = vpop.f32.mrf.mxu0
      %1253 = vmatprep.mubr.bf16.mxu0 0
      %1254 = vmatmul.mubr.bf16.gmra.mxu0 %v1090
      %v1255 = vpop.f32.mrf.mxu0
      %v1256 = vadd.f32 0.0, %v1255
      %v1257 = vpop.f32.mrf.mxu0
      %v1258 = vpop.f32.mrf.mxu0
      %v1259 = vadd.f32 0.0, %v1258
      %v1260 = vpop.f32.mrf.mxu0
      %1261 = vmatprep.mubr.bf16.mxu0 0
      %1262 = vmatmul.mubr.bf16.gmra.mxu0 %v1091
      %v1263 = vpop.f32.mrf.mxu0
      %v1264 = vadd.f32 0.0, %v1263
      %v1265 = vpop.f32.mrf.mxu0
      %v1266 = vpop.f32.mrf.mxu0
      %v1267 = vadd.f32 0.0, %v1266
      %v1268 = vpop.f32.mrf.mxu0
      %1269 = vmatprep.mubr.bf16.mxu0 0
      %1270 = vmatmul.mubr.bf16.gmra.mxu0 %v1092
      %v1271 = vpop.f32.mrf.mxu0
      %v1272 = vadd.f32 0.0, %v1271
      %v1273 = vpop.f32.mrf.mxu0
      %v1274 = vpop.f32.mrf.mxu0
      %v1275 = vadd.f32 0.0, %v1274
      %v1276 = vpop.f32.mrf.mxu0
      %1277 = vmatprep.mubr.bf16.mxu0 0
      %1278 = vmatmul.mubr.bf16.gmra.mxu0 %v1093
      %v1279 = vpop.f32.mrf.mxu0
      %v1280 = vadd.f32 0.0, %v1279
      %v1281 = vpop.f32.mrf.mxu0
      %v1282 = vpop.f32.mrf.mxu0
      %v1283 = vadd.f32 0.0, %v1282
      %v1284 = vpop.f32.mrf.mxu0
      %1285 = vmatprep.mubr.bf16.mxu0 0
      %1286 = vmatmul.mubr.bf16.gmra.mxu0 %v1094
      %v1287 = vpop.f32.mrf.mxu0
      %v1288 = vadd.f32 0.0, %v1287
      %v1289 = vpop.f32.mrf.mxu0
      %v1290 = vpop.f32.mrf.mxu0
      %v1291 = vadd.f32 0.0, %v1290
      %v1292 = vpop.f32.mrf.mxu0
      %1293 = vmatprep.mubr.bf16.mxu0 0
      %1294 = vmatmul.mubr.bf16.gmra.mxu0 %v1095
      %v1295 = vpop.f32.mrf.mxu0
      %v1296 = vadd.f32 0.0, %v1295
      %v1297 = vpop.f32.mrf.mxu0
      %v1298 = vpop.f32.mrf.mxu0
      %v1299 = vadd.f32 0.0, %v1298
      %v1300 = vpop.f32.mrf.mxu0
      %1301 = vmatprep.mubr.bf16.mxu0 0
      %1302 = vmatmul.mubr.bf16.gmra.mxu0 %v1096
      %v1303 = vpop.f32.mrf.mxu0
      %v1304 = vadd.f32 0.0, %v1303
      %v1305 = vpop.f32.mrf.mxu0
      %v1306 = vpop.f32.mrf.mxu0
      %v1307 = vadd.f32 0.0, %v1306
      %v1308 = vpop.f32.mrf.mxu0
      %1309 = vmatprep.mubr.bf16.mxu0 0
      %1310 = vmatmul.mubr.bf16.gmra.mxu0 %v1097
      %v1311 = vpop.f32.mrf.mxu0
      %v1312 = vadd.f32 0.0, %v1311
      %v1313 = vpop.f32.mrf.mxu0
      %v1314 = vpop.f32.mrf.mxu0
      %v1315 = vadd.f32 0.0, %v1314
      %v1316 = vpop.f32.mrf.mxu0
      %1317 = vmatprep.mubr.bf16.mxu0 0
      %1318 = vmatmul.mubr.bf16.gmra.mxu0 %v1098
      %v1319 = vpop.f32.mrf.mxu0
      %v1320 = vadd.f32 0.0, %v1319
      %v1321 = vpop.f32.mrf.mxu0
      %v1322 = vpop.f32.mrf.mxu0
      %v1323 = vadd.f32 0.0, %v1322
      %v1324 = vpop.f32.mrf.mxu0
      %1325 = vmatprep.mubr.bf16.mxu0 0
      %1326 = vmatmul.mubr.bf16.gmra.mxu0 %v1099
      %v1327 = vpop.f32.mrf.mxu0
      %v1328 = vadd.f32 0.0, %v1327
      %v1329 = vpop.f32.mrf.mxu0
      %v1330 = vpop.f32.mrf.mxu0
      %v1331 = vadd.f32 0.0, %v1330
      %v1332 = vpop.f32.mrf.mxu0
      %1333 = vmatprep.mubr.bf16.mxu0 0
      %1334 = vmatmul.mubr.bf16.gmra.mxu0 %v1100
      %v1335 = vpop.f32.mrf.mxu0
      %v1336 = vadd.f32 0.0, %v1335
      %v1337 = vpop.f32.mrf.mxu0
      %v1338 = vpop.f32.mrf.mxu0
      %v1339 = vadd.f32 0.0, %v1338
      %v1340 = vpop.f32.mrf.mxu0
      %1341 = vmatprep.mubr.bf16.mxu0 0
      %1342 = vmatmul.mubr.bf16.gmra.mxu0 %v1101
      %v1343 = vpop.f32.mrf.mxu0
      %v1344 = vadd.f32 0.0, %v1343
      %v1345 = vpop.f32.mrf.mxu0
      %v1346 = vpop.f32.mrf.mxu0
      %v1347 = vadd.f32 0.0, %v1346
      %v1348 = vpop.f32.mrf.mxu0
      %1349 = vmatprep.mubr.bf16.mxu0 0
      %1350 = vmatmul.mubr.bf16.gmra.mxu0 %v1102
      %v1351 = vpop.f32.mrf.mxu0
      %v1352 = vadd.f32 0.0, %v1351
      %v1353 = vpop.f32.mrf.mxu0
      %v1354 = vpop.f32.mrf.mxu0
      %v1355 = vadd.f32 0.0, %v1354
      %v1356 = vpop.f32.mrf.mxu0
      %1357 = vmatprep.mubr.bf16.mxu0 0
      %1358 = vmatmul.mubr.bf16.gmra.mxu0 %v1103
      %v1359 = vpop.f32.mrf.mxu0
      %v1360 = vadd.f32 0.0, %v1359
      %v1361 = vpop.f32.mrf.mxu0
      %v1362 = vpop.f32.mrf.mxu0
      %v1363 = vadd.f32 0.0, %v1362
      %v1364 = vpop.f32.mrf.mxu0
      %1365 = vmatprep.mubr.bf16.mxu0 0
      %1366 = vmatmul.mubr.bf16.gmra.mxu0 %v1104
      %v1367 = vpop.f32.mrf.mxu0
      %v1368 = vadd.f32 0.0, %v1367
      %v1369 = vpop.f32.mrf.mxu0
      %v1370 = vpop.f32.mrf.mxu0
      %v1371 = vadd.f32 0.0, %v1370
      %v1372 = vpop.f32.mrf.mxu0
      %1373 = vmatprep.mubr.bf16.mxu0 0
      %1374 = vmatmul.mubr.bf16.gmra.mxu0 %v1105
      %v1375 = vpop.f32.mrf.mxu0
      %v1376 = vadd.f32 0.0, %v1375
      %v1377 = vpop.f32.mrf.mxu0
      %v1378 = vpop.f32.mrf.mxu0
      %v1379 = vadd.f32 0.0, %v1378
      %v1380 = vpop.f32.mrf.mxu0
      %1381 = vmatprep.mubr.bf16.mxu0 0
      %1382 = vmatmul.mubr.bf16.gmra.mxu0 %v1106
      %v1383 = vpop.f32.mrf.mxu0
      %v1384 = vadd.f32 0.0, %v1383
      %v1385 = vpop.f32.mrf.mxu0
      %v1386 = vpop.f32.mrf.mxu0
      %v1387 = vadd.f32 0.0, %v1386
      %v1388 = vpop.f32.mrf.mxu0
      %1389 = vmatprep.mubr.bf16.mxu0 0
      %1390 = vmatmul.mubr.bf16.gmra.mxu0 %v1107
      %v1391 = vpop.f32.mrf.mxu0
      %v1392 = vadd.f32 0.0, %v1391
      %v1393 = vpop.f32.mrf.mxu0
      %v1394 = vpop.f32.mrf.mxu0
      %v1395 = vadd.f32 0.0, %v1394
      %v1396 = vpop.f32.mrf.mxu0
      %1397 = vmatprep.mubr.bf16.mxu0 0
      %1398 = vmatmul.mubr.bf16.gmra.mxu0 %v1108
      %v1399 = vpop.f32.mrf.mxu0
      %v1400 = vadd.f32 0.0, %v1399
      %v1401 = vpop.f32.mrf.mxu0
      %v1402 = vpop.f32.mrf.mxu0
      %v1403 = vadd.f32 0.0, %v1402
      %v1404 = vpop.f32.mrf.mxu0
      %1405 = vmatprep.mubr.bf16.mxu0 0
      %1406 = vmatmul.mubr.bf16.gmra.mxu0 %v1109
      %v1407 = vpop.f32.mrf.mxu0
      %v1408 = vadd.f32 0.0, %v1407
      %v1409 = vpop.f32.mrf.mxu0
      %v1410 = vpop.f32.mrf.mxu0
      %v1411 = vadd.f32 0.0, %v1410
      %v1412 = vpop.f32.mrf.mxu0
      %1413 = vmatprep.mubr.bf16.mxu0 0
      %1414 = vmatmul.mubr.bf16.gmra.mxu0 %v1110
      %v1415 = vpop.f32.mrf.mxu0
      %v1416 = vadd.f32 0.0, %v1415
      %v1417 = vpop.f32.mrf.mxu0
      %v1418 = vpop.f32.mrf.mxu0
      %v1419 = vadd.f32 0.0, %v1418
      %v1420 = vpop.f32.mrf.mxu0
      %1421 = vmatprep.mubr.bf16.mxu0 0
      %1422 = vmatmul.mubr.bf16.gmra.mxu0 %v1111
      %v1423 = vpop.f32.mrf.mxu0
      %v1424 = vadd.f32 0.0, %v1423
      %v1425 = vpop.f32.mrf.mxu0
      %v1426 = vpop.f32.mrf.mxu0
      %v1427 = vadd.f32 0.0, %v1426
      %v1428 = vpop.f32.mrf.mxu0
      %1429 = vmatprep.mubr.bf16.mxu0 0
      %1430 = vmatmul.mubr.bf16.gmra.mxu0 %v1112
      %v1431 = vpop.f32.mrf.mxu0
      %v1432 = vadd.f32 0.0, %v1431
      %v1433 = vpop.f32.mrf.mxu0
      %v1434 = vpop.f32.mrf.mxu0
      %v1435 = vadd.f32 0.0, %v1434
      %v1436 = vpop.f32.mrf.mxu0
      %1437 = vmatprep.mubr.bf16.mxu0 0
      %1438 = vmatmul.mubr.bf16.gmra.mxu0 %v1113
      %v1439 = vpop.f32.mrf.mxu0
      %v1440 = vadd.f32 0.0, %v1439
      %v1441 = vpop.f32.mrf.mxu0
      %v1442 = vpop.f32.mrf.mxu0
      %v1443 = vadd.f32 0.0, %v1442
      %v1444 = vpop.f32.mrf.mxu0
      %1445 = vmatprep.mubr.bf16.mxu0 0
      %1446 = vmatmul.mubr.bf16.gmra.mxu0 %v1114
      %v1447 = vpop.f32.mrf.mxu0
      %v1448 = vadd.f32 0.0, %v1447
      %v1449 = vpop.f32.mrf.mxu0
      %v1450 = vpop.f32.mrf.mxu0
      %v1451 = vadd.f32 0.0, %v1450
      %v1452 = vpop.f32.mrf.mxu0
      %1453 = vmatprep.mubr.bf16.mxu0 0
      %1454 = vmatmul.mubr.bf16.gmra.mxu0 %v1115
      %v1455 = vpop.f32.mrf.mxu0
      %v1456 = vadd.f32 0.0, %v1455
      %v1457 = vpop.f32.mrf.mxu0
      %v1458 = vpop.f32.mrf.mxu0
      %v1459 = vadd.f32 0.0, %v1458
      %v1460 = vpop.f32.mrf.mxu0
      %1461 = vmatprep.mubr.bf16.mxu0 0
      %1462 = vmatmul.mubr.bf16.gmra.mxu0 %v1116
      %v1463 = vpop.f32.mrf.mxu0
      %v1464 = vadd.f32 0.0, %v1463
      %v1465 = vpop.f32.mrf.mxu0
      %v1466 = vpop.f32.mrf.mxu0
      %v1467 = vadd.f32 0.0, %v1466
      %v1468 = vpop.f32.mrf.mxu0
      %1469 = vdwg.mxu0
      %1470 = vmax.xlane.f32.xlu0 %v1216
      %v1471 = vpop.xlane.xlu0 %1470
      %1472 = vmax.xlane.f32.xlu0 %v1219
      %v1473 = vpop.xlane.xlu0 %1472
      %1474 = vmax.xlane.f32.xlu0 %v1224
      %v1475 = vpop.xlane.xlu0 %1474
      %1476 = vmax.xlane.f32.xlu0 %v1227
      %v1477 = vpop.xlane.xlu0 %1476
      %1478 = vmax.xlane.f32.xlu0 %v1232
      %v1479 = vpop.xlane.xlu0 %1478
      %1480 = vmax.xlane.f32.xlu0 %v1235
      %v1481 = vpop.xlane.xlu0 %1480
      %1482 = vmax.xlane.f32.xlu0 %v1240
      %v1483 = vpop.xlane.xlu0 %1482
      %1484 = vmax.xlane.f32.xlu0 %v1243
      %v1485 = vpop.xlane.xlu0 %1484
      %1486 = vmax.xlane.f32.xlu0 %v1248
      %v1487 = vpop.xlane.xlu0 %1486
      %1488 = vmax.xlane.f32.xlu0 %v1251
      %v1489 = vpop.xlane.xlu0 %1488
      %1490 = vmax.xlane.f32.xlu0 %v1256
      %v1491 = vpop.xlane.xlu0 %1490
      %1492 = vmax.xlane.f32.xlu0 %v1259
      %v1493 = vpop.xlane.xlu0 %1492
      %1494 = vmax.xlane.f32.xlu0 %v1264
      %v1495 = vpop.xlane.xlu0 %1494
      %1496 = vmax.xlane.f32.xlu0 %v1267
      %v1497 = vpop.xlane.xlu0 %1496
      %1498 = vmax.xlane.f32.xlu0 %v1272
      %v1499 = vpop.xlane.xlu0 %1498
      %1500 = vmax.xlane.f32.xlu0 %v1275
      %v1501 = vpop.xlane.xlu0 %1500
      %1502 = vmax.xlane.f32.xlu0 %v1280
      %v1503 = vpop.xlane.xlu0 %1502
      %1504 = vmax.xlane.f32.xlu0 %v1283
      %v1505 = vpop.xlane.xlu0 %1504
      %1506 = vmax.xlane.f32.xlu0 %v1288
      %v1507 = vpop.xlane.xlu0 %1506
      %1508 = vmax.xlane.f32.xlu0 %v1291
      %v1509 = vpop.xlane.xlu0 %1508
      %1510 = vmax.xlane.f32.xlu0 %v1296
      %v1511 = vpop.xlane.xlu0 %1510
      %1512 = vmax.xlane.f32.xlu0 %v1299
      %v1513 = vpop.xlane.xlu0 %1512
      %1514 = vmax.xlane.f32.xlu0 %v1304
      %v1515 = vpop.xlane.xlu0 %1514
      %1516 = vmax.xlane.f32.xlu0 %v1307
      %v1517 = vpop.xlane.xlu0 %1516
      %1518 = vmax.xlane.f32.xlu0 %v1312
      %v1519 = vpop.xlane.xlu0 %1518
      %1520 = vmax.xlane.f32.xlu0 %v1315
      %v1521 = vpop.xlane.xlu0 %1520
      %1522 = vmax.xlane.f32.xlu0 %v1320
      %v1523 = vpop.xlane.xlu0 %1522
      %1524 = vmax.xlane.f32.xlu0 %v1323
      %v1525 = vpop.xlane.xlu0 %1524
      %1526 = vmax.xlane.f32.xlu0 %v1328
      %v1527 = vpop.xlane.xlu0 %1526
      %1528 = vmax.xlane.f32.xlu0 %v1331
      %v1529 = vpop.xlane.xlu0 %1528
      %1530 = vmax.xlane.f32.xlu0 %v1336
      %v1531 = vpop.xlane.xlu0 %1530
      %1532 = vmax.xlane.f32.xlu0 %v1339
      %v1533 = vpop.xlane.xlu0 %1532
      %1534 = vmax.xlane.f32.xlu0 %v1344
      %v1535 = vpop.xlane.xlu0 %1534
      %1536 = vmax.xlane.f32.xlu0 %v1347
      %v1537 = vpop.xlane.xlu0 %1536
      %1538 = vmax.xlane.f32.xlu0 %v1352
      %v1539 = vpop.xlane.xlu0 %1538
      %1540 = vmax.xlane.f32.xlu0 %v1355
      %v1541 = vpop.xlane.xlu0 %1540
      %1542 = vmax.xlane.f32.xlu0 %v1360
      %v1543 = vpop.xlane.xlu0 %1542
      %1544 = vmax.xlane.f32.xlu0 %v1363
      %v1545 = vpop.xlane.xlu0 %1544
      %1546 = vmax.xlane.f32.xlu0 %v1368
      %v1547 = vpop.xlane.xlu0 %1546
      %1548 = vmax.xlane.f32.xlu0 %v1371
      %v1549 = vpop.xlane.xlu0 %1548
      %1550 = vmax.xlane.f32.xlu0 %v1376
      %v1551 = vpop.xlane.xlu0 %1550
      %1552 = vmax.xlane.f32.xlu0 %v1379
      %v1553 = vpop.xlane.xlu0 %1552
      %1554 = vmax.xlane.f32.xlu0 %v1384
      %v1555 = vpop.xlane.xlu0 %1554
      %1556 = vmax.xlane.f32.xlu0 %v1387
      %v1557 = vpop.xlane.xlu0 %1556
      %1558 = vmax.xlane.f32.xlu0 %v1392
      %v1559 = vpop.xlane.xlu0 %1558
      %1560 = vmax.xlane.f32.xlu0 %v1395
      %v1561 = vpop.xlane.xlu0 %1560
      %1562 = vmax.xlane.f32.xlu0 %v1400
      %v1563 = vpop.xlane.xlu0 %1562
      %1564 = vmax.xlane.f32.xlu0 %v1403
      %v1565 = vpop.xlane.xlu0 %1564
      %1566 = vmax.xlane.f32.xlu0 %v1408
      %v1567 = vpop.xlane.xlu0 %1566
      %1568 = vmax.xlane.f32.xlu0 %v1411
      %v1569 = vpop.xlane.xlu0 %1568
      %1570 = vmax.xlane.f32.xlu0 %v1416
      %v1571 = vpop.xlane.xlu0 %1570
      %1572 = vmax.xlane.f32.xlu0 %v1419
      %v1573 = vpop.xlane.xlu0 %1572
      %1574 = vmax.xlane.f32.xlu0 %v1424
      %v1575 = vpop.xlane.xlu0 %1574
      %1576 = vmax.xlane.f32.xlu0 %v1427
      %v1577 = vpop.xlane.xlu0 %1576
      %1578 = vmax.xlane.f32.xlu0 %v1432
      %v1579 = vpop.xlane.xlu0 %1578
      %1580 = vmax.xlane.f32.xlu0 %v1435
      %v1581 = vpop.xlane.xlu0 %1580
      %1582 = vmax.xlane.f32.xlu0 %v1440
      %v1583 = vpop.xlane.xlu0 %1582
      %1584 = vmax.xlane.f32.xlu0 %v1443
      %v1585 = vpop.xlane.xlu0 %1584
      %1586 = vmax.xlane.f32.xlu0 %v1448
      %v1587 = vpop.xlane.xlu0 %1586
      %1588 = vmax.xlane.f32.xlu0 %v1451
      %v1589 = vpop.xlane.xlu0 %1588
      %1590 = vmax.xlane.f32.xlu0 %v1456
      %v1591 = vpop.xlane.xlu0 %1590
      %1592 = vmax.xlane.f32.xlu0 %v1459
      %v1593 = vpop.xlane.xlu0 %1592
      %1594 = vmax.xlane.f32.xlu0 %v1464
      %v1595 = vpop.xlane.xlu0 %1594
      %1596 = vmax.xlane.f32.xlu0 %v1467
      %v1597 = vpop.xlane.xlu0 %1596
      %v1598 = vsub.f32 %v1216, %v1471
      %v1599 = vsub.f32 %v1219, %v1473
      %v1600 = vsub.f32 %v1224, %v1475
      %v1601 = vsub.f32 %v1227, %v1477
      %v1602 = vsub.f32 %v1232, %v1479
      %v1603 = vsub.f32 %v1235, %v1481
      %v1604 = vsub.f32 %v1240, %v1483
      %v1605 = vsub.f32 %v1243, %v1485
      %v1606 = vsub.f32 %v1248, %v1487
      %v1607 = vsub.f32 %v1251, %v1489
      %v1608 = vsub.f32 %v1256, %v1491
      %v1609 = vsub.f32 %v1259, %v1493
      %v1610 = vsub.f32 %v1264, %v1495
      %v1611 = vsub.f32 %v1267, %v1497
      %v1612 = vsub.f32 %v1272, %v1499
      %v1613 = vsub.f32 %v1275, %v1501
      %v1614 = vsub.f32 %v1280, %v1503
      %v1615 = vsub.f32 %v1283, %v1505
      %v1616 = vsub.f32 %v1288, %v1507
      %v1617 = vsub.f32 %v1291, %v1509
      %v1618 = vsub.f32 %v1296, %v1511
      %v1619 = vsub.f32 %v1299, %v1513
      %v1620 = vsub.f32 %v1304, %v1515
      %v1621 = vsub.f32 %v1307, %v1517
      %v1622 = vsub.f32 %v1312, %v1519
      %v1623 = vsub.f32 %v1315, %v1521
      %v1624 = vsub.f32 %v1320, %v1523
      %v1625 = vsub.f32 %v1323, %v1525
      %v1626 = vsub.f32 %v1328, %v1527
      %v1627 = vsub.f32 %v1331, %v1529
      %v1628 = vsub.f32 %v1336, %v1531
      %v1629 = vsub.f32 %v1339, %v1533
      %v1630 = vsub.f32 %v1344, %v1535
      %v1631 = vsub.f32 %v1347, %v1537
      %v1632 = vsub.f32 %v1352, %v1539
      %v1633 = vsub.f32 %v1355, %v1541
      %v1634 = vsub.f32 %v1360, %v1543
      %v1635 = vsub.f32 %v1363, %v1545
      %v1636 = vsub.f32 %v1368, %v1547
      %v1637 = vsub.f32 %v1371, %v1549
      %v1638 = vsub.f32 %v1376, %v1551
      %v1639 = vsub.f32 %v1379, %v1553
      %v1640 = vsub.f32 %v1384, %v1555
      %v1641 = vsub.f32 %v1387, %v1557
      %v1642 = vsub.f32 %v1392, %v1559
      %v1643 = vsub.f32 %v1395, %v1561
      %v1644 = vsub.f32 %v1400, %v1563
      %v1645 = vsub.f32 %v1403, %v1565
      %v1646 = vsub.f32 %v1408, %v1567
      %v1647 = vsub.f32 %v1411, %v1569
      %v1648 = vsub.f32 %v1416, %v1571
      %v1649 = vsub.f32 %v1419, %v1573
      %v1650 = vsub.f32 %v1424, %v1575
      %v1651 = vsub.f32 %v1427, %v1577
      %v1652 = vsub.f32 %v1432, %v1579
      %v1653 = vsub.f32 %v1435, %v1581
      %v1654 = vsub.f32 %v1440, %v1583
      %v1655 = vsub.f32 %v1443, %v1585
      %v1656 = vsub.f32 %v1448, %v1587
      %v1657 = vsub.f32 %v1451, %v1589
      %v1658 = vsub.f32 %v1456, %v1591
      %v1659 = vsub.f32 %v1459, %v1593
      %v1660 = vsub.f32 %v1464, %v1595
      %v1661 = vsub.f32 %v1467, %v1597
      %v1662 = vpack.c.bf16 %v1599, %v1598
      %v1663 = vpack.c.bf16 %v1601, %v1600
      %v1664 = vpack.c.bf16 %v1603, %v1602
      %v1665 = vpack.c.bf16 %v1605, %v1604
      %v1666 = vpack.c.bf16 %v1607, %v1606
      %v1667 = vpack.c.bf16 %v1609, %v1608
      %v1668 = vpack.c.bf16 %v1611, %v1610
      %v1669 = vpack.c.bf16 %v1613, %v1612
      %v1670 = vpack.c.bf16 %v1615, %v1614
      %v1671 = vpack.c.bf16 %v1617, %v1616
      %v1672 = vpack.c.bf16 %v1619, %v1618
      %v1673 = vpack.c.bf16 %v1621, %v1620
      %v1674 = vpack.c.bf16 %v1623, %v1622
      %v1675 = vpack.c.bf16 %v1625, %v1624
      %v1676 = vpack.c.bf16 %v1627, %v1626
      %v1677 = vpack.c.bf16 %v1629, %v1628
      %v1678 = vpack.c.bf16 %v1631, %v1630
      %v1679 = vpack.c.bf16 %v1633, %v1632
      %v1680 = vpack.c.bf16 %v1635, %v1634
      %v1681 = vpack.c.bf16 %v1637, %v1636
      %v1682 = vpack.c.bf16 %v1639, %v1638
      %v1683 = vpack.c.bf16 %v1641, %v1640
      %v1684 = vpack.c.bf16 %v1643, %v1642
      %v1685 = vpack.c.bf16 %v1645, %v1644
      %v1686 = vpack.c.bf16 %v1647, %v1646
      %v1687 = vpack.c.bf16 %v1649, %v1648
      %v1688 = vpack.c.bf16 %v1651, %v1650
      %v1689 = vpack.c.bf16 %v1653, %v1652
      %v1690 = vpack.c.bf16 %v1655, %v1654
      %v1691 = vpack.c.bf16 %v1657, %v1656
      %v1692 = vpack.c.bf16 %v1659, %v1658
      %v1693 = vpack.c.bf16 %v1661, %v1660
      %v1695 = vmul.bf16 %v1662, 1069105081
      %v1696 = vpow.bf16.pop %v1695
      %v1698 = vmul.bf16 %v1663, 1069105081
      %v1699 = vpow.bf16.pop %v1698
      %v1701 = vmul.bf16 %v1664, 1069105081
      %v1702 = vpow.bf16.pop %v1701
      %v1704 = vmul.bf16 %v1665, 1069105081
      %v1705 = vpow.bf16.pop %v1704
      %v1707 = vmul.bf16 %v1666, 1069105081
      %v1708 = vpow.bf16.pop %v1707
      %v1710 = vmul.bf16 %v1667, 1069105081
      %v1711 = vpow.bf16.pop %v1710
      %v1713 = vmul.bf16 %v1668, 1069105081
      %v1714 = vpow.bf16.pop %v1713
      %v1716 = vmul.bf16 %v1669, 1069105081
      %v1717 = vpow.bf16.pop %v1716
      %v1719 = vmul.bf16 %v1670, 1069105081
      %v1720 = vpow.bf16.pop %v1719
      %v1722 = vmul.bf16 %v1671, 1069105081
      %v1723 = vpow.bf16.pop %v1722
      %v1725 = vmul.bf16 %v1672, 1069105081
      %v1726 = vpow.bf16.pop %v1725
      %v1728 = vmul.bf16 %v1673, 1069105081
      %v1729 = vpow.bf16.pop %v1728
      %v1731 = vmul.bf16 %v1674, 1069105081
      %v1732 = vpow.bf16.pop %v1731
      %v1734 = vmul.bf16 %v1675, 1069105081
      %v1735 = vpow.bf16.pop %v1734
      %v1737 = vmul.bf16 %v1676, 1069105081
      %v1738 = vpow.bf16.pop %v1737
      %v1740 = vmul.bf16 %v1677, 1069105081
      %v1741 = vpow.bf16.pop %v1740
      %v1743 = vmul.bf16 %v1678, 1069105081
      %v1744 = vpow.bf16.pop %v1743
      %v1746 = vmul.bf16 %v1679, 1069105081
      %v1747 = vpow.bf16.pop %v1746
      %v1749 = vmul.bf16 %v1680, 1069105081
      %v1750 = vpow.bf16.pop %v1749
      %v1752 = vmul.bf16 %v1681, 1069105081
      %v1753 = vpow.bf16.pop %v1752
      %v1755 = vmul.bf16 %v1682, 1069105081
      %v1756 = vpow.bf16.pop %v1755
      %v1758 = vmul.bf16 %v1683, 1069105081
      %v1759 = vpow.bf16.pop %v1758
      %v1761 = vmul.bf16 %v1684, 1069105081
      %v1762 = vpow.bf16.pop %v1761
      %v1764 = vmul.bf16 %v1685, 1069105081
      %v1765 = vpow.bf16.pop %v1764
      %v1767 = vmul.bf16 %v1686, 1069105081
      %v1768 = vpow.bf16.pop %v1767
      %v1770 = vmul.bf16 %v1687, 1069105081
      %v1771 = vpow.bf16.pop %v1770
      %v1773 = vmul.bf16 %v1688, 1069105081
      %v1774 = vpow.bf16.pop %v1773
      %v1776 = vmul.bf16 %v1689, 1069105081
      %v1777 = vpow.bf16.pop %v1776
      %v1779 = vmul.bf16 %v1690, 1069105081
      %v1780 = vpow.bf16.pop %v1779
      %v1782 = vmul.bf16 %v1691, 1069105081
      %v1783 = vpow.bf16.pop %v1782
      %v1785 = vmul.bf16 %v1692, 1069105081
      %v1786 = vpow.bf16.pop %v1785
      %v1788 = vmul.bf16 %v1693, 1069105081
      %v1789 = vpow.bf16.pop %v1788
      %v1790 = vunpack.c.l.bf16 %v1696
      %v1791 = vunpack.c.h.bf16 %v1696
      %v1792 = vunpack.c.l.bf16 %v1699
      %v1793 = vunpack.c.h.bf16 %v1699
      %v1794 = vunpack.c.l.bf16 %v1702
      %v1795 = vunpack.c.h.bf16 %v1702
      %v1796 = vunpack.c.l.bf16 %v1705
      %v1797 = vunpack.c.h.bf16 %v1705
      %v1798 = vunpack.c.l.bf16 %v1708
      %v1799 = vunpack.c.h.bf16 %v1708
      %v1800 = vunpack.c.l.bf16 %v1711
      %v1801 = vunpack.c.h.bf16 %v1711
      %v1802 = vunpack.c.l.bf16 %v1714
      %v1803 = vunpack.c.h.bf16 %v1714
      %v1804 = vunpack.c.l.bf16 %v1717
      %v1805 = vunpack.c.h.bf16 %v1717
      %v1806 = vunpack.c.l.bf16 %v1720
      %v1807 = vunpack.c.h.bf16 %v1720
      %v1808 = vunpack.c.l.bf16 %v1723
      %v1809 = vunpack.c.h.bf16 %v1723
      %v1810 = vunpack.c.l.bf16 %v1726
      %v1811 = vunpack.c.h.bf16 %v1726
      %v1812 = vunpack.c.l.bf16 %v1729
      %v1813 = vunpack.c.h.bf16 %v1729
      %v1814 = vunpack.c.l.bf16 %v1732
      %v1815 = vunpack.c.h.bf16 %v1732
      %v1816 = vunpack.c.l.bf16 %v1735
      %v1817 = vunpack.c.h.bf16 %v1735
      %v1818 = vunpack.c.l.bf16 %v1738
      %v1819 = vunpack.c.h.bf16 %v1738
      %v1820 = vunpack.c.l.bf16 %v1741
      %v1821 = vunpack.c.h.bf16 %v1741
      %v1822 = vunpack.c.l.bf16 %v1744
      %v1823 = vunpack.c.h.bf16 %v1744
      %v1824 = vunpack.c.l.bf16 %v1747
      %v1825 = vunpack.c.h.bf16 %v1747
      %v1826 = vunpack.c.l.bf16 %v1750
      %v1827 = vunpack.c.h.bf16 %v1750
      %v1828 = vunpack.c.l.bf16 %v1753
      %v1829 = vunpack.c.h.bf16 %v1753
      %v1830 = vunpack.c.l.bf16 %v1756
      %v1831 = vunpack.c.h.bf16 %v1756
      %v1832 = vunpack.c.l.bf16 %v1759
      %v1833 = vunpack.c.h.bf16 %v1759
      %v1834 = vunpack.c.l.bf16 %v1762
      %v1835 = vunpack.c.h.bf16 %v1762
      %v1836 = vunpack.c.l.bf16 %v1765
      %v1837 = vunpack.c.h.bf16 %v1765
      %v1838 = vunpack.c.l.bf16 %v1768
      %v1839 = vunpack.c.h.bf16 %v1768
      %v1840 = vunpack.c.l.bf16 %v1771
      %v1841 = vunpack.c.h.bf16 %v1771
      %v1842 = vunpack.c.l.bf16 %v1774
      %v1843 = vunpack.c.h.bf16 %v1774
      %v1844 = vunpack.c.l.bf16 %v1777
      %v1845 = vunpack.c.h.bf16 %v1777
      %v1846 = vunpack.c.l.bf16 %v1780
      %v1847 = vunpack.c.h.bf16 %v1780
      %v1848 = vunpack.c.l.bf16 %v1783
      %v1849 = vunpack.c.h.bf16 %v1783
      %v1850 = vunpack.c.l.bf16 %v1786
      %v1851 = vunpack.c.h.bf16 %v1786
      %v1852 = vunpack.c.l.bf16 %v1789
      %v1853 = vunpack.c.h.bf16 %v1789
      %1854 = vadd.xlane.f32.xlu0 %v1790
      %v1855 = vpop.xlane.xlu0 %1854
      %1856 = vadd.xlane.f32.xlu0 %v1791
      %v1857 = vpop.xlane.xlu0 %1856
      %1858 = vadd.xlane.f32.xlu0 %v1792
      %v1859 = vpop.xlane.xlu0 %1858
      %1860 = vadd.xlane.f32.xlu0 %v1793
      %v1861 = vpop.xlane.xlu0 %1860
      %1862 = vadd.xlane.f32.xlu0 %v1794
      %v1863 = vpop.xlane.xlu0 %1862
      %1864 = vadd.xlane.f32.xlu0 %v1795
      %v1865 = vpop.xlane.xlu0 %1864
      %1866 = vadd.xlane.f32.xlu0 %v1796
      %v1867 = vpop.xlane.xlu0 %1866
      %1868 = vadd.xlane.f32.xlu0 %v1797
      %v1869 = vpop.xlane.xlu0 %1868
      %1870 = vadd.xlane.f32.xlu0 %v1798
      %v1871 = vpop.xlane.xlu0 %1870
      %1872 = vadd.xlane.f32.xlu0 %v1799
      %v1873 = vpop.xlane.xlu0 %1872
      %1874 = vadd.xlane.f32.xlu0 %v1800
      %v1875 = vpop.xlane.xlu0 %1874
      %1876 = vadd.xlane.f32.xlu0 %v1801
      %v1877 = vpop.xlane.xlu0 %1876
      %1878 = vadd.xlane.f32.xlu0 %v1802
      %v1879 = vpop.xlane.xlu0 %1878
      %1880 = vadd.xlane.f32.xlu0 %v1803
      %v1881 = vpop.xlane.xlu0 %1880
      %1882 = vadd.xlane.f32.xlu0 %v1804
      %v1883 = vpop.xlane.xlu0 %1882
      %1884 = vadd.xlane.f32.xlu0 %v1805
      %v1885 = vpop.xlane.xlu0 %1884
      %1886 = vadd.xlane.f32.xlu0 %v1806
      %v1887 = vpop.xlane.xlu0 %1886
      %1888 = vadd.xlane.f32.xlu0 %v1807
      %v1889 = vpop.xlane.xlu0 %1888
      %1890 = vadd.xlane.f32.xlu0 %v1808
      %v1891 = vpop.xlane.xlu0 %1890
      %1892 = vadd.xlane.f32.xlu0 %v1809
      %v1893 = vpop.xlane.xlu0 %1892
      %1894 = vadd.xlane.f32.xlu0 %v1810
      %v1895 = vpop.xlane.xlu0 %1894
      %1896 = vadd.xlane.f32.xlu0 %v1811
      %v1897 = vpop.xlane.xlu0 %1896
      %1898 = vadd.xlane.f32.xlu0 %v1812
      %v1899 = vpop.xlane.xlu0 %1898
      %1900 = vadd.xlane.f32.xlu0 %v1813
      %v1901 = vpop.xlane.xlu0 %1900
      %1902 = vadd.xlane.f32.xlu0 %v1814
      %v1903 = vpop.xlane.xlu0 %1902
      %1904 = vadd.xlane.f32.xlu0 %v1815
      %v1905 = vpop.xlane.xlu0 %1904
      %1906 = vadd.xlane.f32.xlu0 %v1816
      %v1907 = vpop.xlane.xlu0 %1906
      %1908 = vadd.xlane.f32.xlu0 %v1817
      %v1909 = vpop.xlane.xlu0 %1908
      %1910 = vadd.xlane.f32.xlu0 %v1818
      %v1911 = vpop.xlane.xlu0 %1910
      %1912 = vadd.xlane.f32.xlu0 %v1819
      %v1913 = vpop.xlane.xlu0 %1912
      %1914 = vadd.xlane.f32.xlu0 %v1820
      %v1915 = vpop.xlane.xlu0 %1914
      %1916 = vadd.xlane.f32.xlu0 %v1821
      %v1917 = vpop.xlane.xlu0 %1916
      %1918 = vadd.xlane.f32.xlu0 %v1822
      %v1919 = vpop.xlane.xlu0 %1918
      %1920 = vadd.xlane.f32.xlu0 %v1823
      %v1921 = vpop.xlane.xlu0 %1920
      %1922 = vadd.xlane.f32.xlu0 %v1824
      %v1923 = vpop.xlane.xlu0 %1922
      %1924 = vadd.xlane.f32.xlu0 %v1825
      %v1925 = vpop.xlane.xlu0 %1924
      %1926 = vadd.xlane.f32.xlu0 %v1826
      %v1927 = vpop.xlane.xlu0 %1926
      %1928 = vadd.xlane.f32.xlu0 %v1827
      %v1929 = vpop.xlane.xlu0 %1928
      %1930 = vadd.xlane.f32.xlu0 %v1828
      %v1931 = vpop.xlane.xlu0 %1930
      %1932 = vadd.xlane.f32.xlu0 %v1829
      %v1933 = vpop.xlane.xlu0 %1932
      %1934 = vadd.xlane.f32.xlu0 %v1830
      %v1935 = vpop.xlane.xlu0 %1934
      %1936 = vadd.xlane.f32.xlu0 %v1831
      %v1937 = vpop.xlane.xlu0 %1936
      %1938 = vadd.xlane.f32.xlu0 %v1832
      %v1939 = vpop.xlane.xlu0 %1938
      %1940 = vadd.xlane.f32.xlu0 %v1833
      %v1941 = vpop.xlane.xlu0 %1940
      %1942 = vadd.xlane.f32.xlu0 %v1834
      %v1943 = vpop.xlane.xlu0 %1942
      %1944 = vadd.xlane.f32.xlu0 %v1835
      %v1945 = vpop.xlane.xlu0 %1944
      %1946 = vadd.xlane.f32.xlu0 %v1836
      %v1947 = vpop.xlane.xlu0 %1946
      %1948 = vadd.xlane.f32.xlu0 %v1837
      %v1949 = vpop.xlane.xlu0 %1948
      %1950 = vadd.xlane.f32.xlu0 %v1838
      %v1951 = vpop.xlane.xlu0 %1950
      %1952 = vadd.xlane.f32.xlu0 %v1839
      %v1953 = vpop.xlane.xlu0 %1952
      %1954 = vadd.xlane.f32.xlu0 %v1840
      %v1955 = vpop.xlane.xlu0 %1954
      %1956 = vadd.xlane.f32.xlu0 %v1841
      %v1957 = vpop.xlane.xlu0 %1956
      %1958 = vadd.xlane.f32.xlu0 %v1842
      %v1959 = vpop.xlane.xlu0 %1958
      %1960 = vadd.xlane.f32.xlu0 %v1843
      %v1961 = vpop.xlane.xlu0 %1960
      %1962 = vadd.xlane.f32.xlu0 %v1844
      %v1963 = vpop.xlane.xlu0 %1962
      %1964 = vadd.xlane.f32.xlu0 %v1845
      %v1965 = vpop.xlane.xlu0 %1964
      %1966 = vadd.xlane.f32.xlu0 %v1846
      %v1967 = vpop.xlane.xlu0 %1966
      %1968 = vadd.xlane.f32.xlu0 %v1847
      %v1969 = vpop.xlane.xlu0 %1968
      %1970 = vadd.xlane.f32.xlu0 %v1848
      %v1971 = vpop.xlane.xlu0 %1970
      %1972 = vadd.xlane.f32.xlu0 %v1849
      %v1973 = vpop.xlane.xlu0 %1972
      %1974 = vadd.xlane.f32.xlu0 %v1850
      %v1975 = vpop.xlane.xlu0 %1974
      %1976 = vadd.xlane.f32.xlu0 %v1851
      %v1977 = vpop.xlane.xlu0 %1976
      %1978 = vadd.xlane.f32.xlu0 %v1852
      %v1979 = vpop.xlane.xlu0 %1978
      %1980 = vadd.xlane.f32.xlu0 %v1853
      %v1981 = vpop.xlane.xlu0 %1980
      %v1982 = vld [vmem:[%s441] sm:$0xf]
      %v1983 = vld [vmem:[%s441 + $0x4] sm:$0xf]
      %v1984 = vld [vmem:[%s441 + $0x8] sm:$0xf]
      %v1985 = vld [vmem:[%s441 + $0xc] sm:$0xf]
      %v1986 = vld [vmem:[%s441 + $0x10] sm:$0xf]
      %v1987 = vld [vmem:[%s441 + $0x14] sm:$0xf]
      %v1988 = vld [vmem:[%s441 + $0x18] sm:$0xf]
      %v1989 = vld [vmem:[%s441 + $0x1c] sm:$0xf]
      %v1990 = vld [vmem:[%s441 + $0x20] sm:$0xf]
      %v1991 = vld [vmem:[%s441 + $0x24] sm:$0xf]
      %v1992 = vld [vmem:[%s441 + $0x28] sm:$0xf]
      %v1993 = vld [vmem:[%s441 + $0x2c] sm:$0xf]
      %v1994 = vld [vmem:[%s441 + $0x30] sm:$0xf]
      %v1995 = vld [vmem:[%s441 + $0x34] sm:$0xf]
      %v1996 = vld [vmem:[%s441 + $0x38] sm:$0xf]
      %v1997 = vld [vmem:[%s441 + $0x3c] sm:$0xf]
      %v2014 = vunpack.c.l.b16 %v1982
      %v2015 = vunpack.c.l.b16 %v1983
      %v2016 = vunpack.c.l.b16 %v1984
      %v2017 = vunpack.c.l.b16 %v1985
      %v2018 = vunpack.c.l.b16 %v1986
      %v2019 = vunpack.c.l.b16 %v1987
      %v2020 = vunpack.c.l.b16 %v1988
      %v2021 = vunpack.c.l.b16 %v1989
      %v2022 = vunpack.c.l.b16 %v1990
      %v2023 = vunpack.c.l.b16 %v1991
      %v2024 = vunpack.c.l.b16 %v1992
      %v2025 = vunpack.c.l.b16 %v1993
      %v2026 = vunpack.c.l.b16 %v1994
      %v2027 = vunpack.c.l.b16 %v1995
      %v2028 = vunpack.c.l.b16 %v1996
      %v2029 = vunpack.c.l.b16 %v1997
      %v2030 = vpack.c.b16 %v2015, %v2014
      %v2031 = vpack.c.b16 %v2017, %v2016
      %v2032 = vpack.c.b16 %v2019, %v2018
      %v2033 = vpack.c.b16 %v2021, %v2020
      %v2034 = vpack.c.b16 %v2023, %v2022
      %v2035 = vpack.c.b16 %v2025, %v2024
      %v2036 = vpack.c.b16 %v2027, %v2026
      %v2037 = vpack.c.b16 %v2029, %v2028
      %2046 = vmatprep.subr.bf16.mxu0 0
      %2047 = vmatpush1.bf16.msra.mxu0 %v2037
      %2048 = vmatprep.subr.bf16.mxu0 0
      %2049 = vmatpush1.bf16.msra.mxu0 %v2036
      %2050 = vmatprep.subr.bf16.mxu0 0
      %2051 = vmatpush1.bf16.msra.mxu0 %v2035
      %2052 = vmatprep.subr.bf16.mxu0 0
      %2053 = vmatpush1.bf16.msra.mxu0 %v2034
      %2054 = vmatprep.subr.bf16.mxu0 0
      %2055 = vmatpush1.bf16.msra.mxu0 %v2033
      %2056 = vmatprep.subr.bf16.mxu0 0
      %2057 = vmatpush1.bf16.msra.mxu0 %v2032
      %2058 = vmatprep.subr.bf16.mxu0 0
      %2059 = vmatpush1.bf16.msra.mxu0 %v2031
      %2060 = vmatprep.subr.bf16.mxu0 0
      %2061 = vmatpush1.bf16.msra.mxu0 %v2030
      %2062 = vmatprep.subr.bf16.mxu0 0
      %2063 = vmatpush2.bf16.msra.mxu0 0
      %2064 = vmatprep.subr.bf16.mxu0 0
      %2065 = vmatpush2.bf16.msra.mxu0 0
      %2066 = vmatprep.subr.bf16.mxu0 0
      %2067 = vmatpush2.bf16.msra.mxu0 0
      %2068 = vmatprep.subr.bf16.mxu0 0
      %2069 = vmatpush2.bf16.msra.mxu0 0
      %2070 = vmatprep.subr.bf16.mxu0 0
      %2071 = vmatpush2.bf16.msra.mxu0 0
      %2072 = vmatprep.subr.bf16.mxu0 0
      %2073 = vmatpush2.bf16.msra.mxu0 0
      %2074 = vmatprep.subr.bf16.mxu0 0
      %2075 = vmatpush2.bf16.msra.mxu0 0
      %2076 = vmatprep.subr.bf16.mxu0 0
      %2077 = vmatpush2.bf16.msra.mxu0 0
      %2078 = vmatprep.mubr.bf16.mxu0 0
      %2079 = vmatmul.mubr.bf16.gmra.mxu0 %v1696
      %v2080 = vpop.f32.mrf.mxu0
      %v2081 = vadd.f32 0.0, %v2080
      %v2082 = vpop.f32.mrf.mxu0
      %v2083 = vpop.f32.mrf.mxu0
      %v2084 = vadd.f32 0.0, %v2083
      %v2085 = vpop.f32.mrf.mxu0
      %2086 = vmatprep.mubr.bf16.mxu0 0
      %2087 = vmatmul.mubr.bf16.gmra.mxu0 %v1699
      %v2088 = vpop.f32.mrf.mxu0
      %v2089 = vadd.f32 0.0, %v2088
      %v2090 = vpop.f32.mrf.mxu0
      %v2091 = vpop.f32.mrf.mxu0
      %v2092 = vadd.f32 0.0, %v2091
      %v2093 = vpop.f32.mrf.mxu0
      %2094 = vmatprep.mubr.bf16.mxu0 0
      %2095 = vmatmul.mubr.bf16.gmra.mxu0 %v1702
      %v2096 = vpop.f32.mrf.mxu0
      %v2097 = vadd.f32 0.0, %v2096
      %v2098 = vpop.f32.mrf.mxu0
      %v2099 = vpop.f32.mrf.mxu0
      %v2100 = vadd.f32 0.0, %v2099
      %v2101 = vpop.f32.mrf.mxu0
      %2102 = vmatprep.mubr.bf16.mxu0 0
      %2103 = vmatmul.mubr.bf16.gmra.mxu0 %v1705
      %v2104 = vpop.f32.mrf.mxu0
      %v2105 = vadd.f32 0.0, %v2104
      %v2106 = vpop.f32.mrf.mxu0
      %v2107 = vpop.f32.mrf.mxu0
      %v2108 = vadd.f32 0.0, %v2107
      %v2109 = vpop.f32.mrf.mxu0
      %2110 = vmatprep.mubr.bf16.mxu0 0
      %2111 = vmatmul.mubr.bf16.gmra.mxu0 %v1708
      %v2112 = vpop.f32.mrf.mxu0
      %v2113 = vadd.f32 0.0, %v2112
      %v2114 = vpop.f32.mrf.mxu0
      %v2115 = vpop.f32.mrf.mxu0
      %v2116 = vadd.f32 0.0, %v2115
      %v2117 = vpop.f32.mrf.mxu0
      %2118 = vmatprep.mubr.bf16.mxu0 0
      %2119 = vmatmul.mubr.bf16.gmra.mxu0 %v1711
      %v2120 = vpop.f32.mrf.mxu0
      %v2121 = vadd.f32 0.0, %v2120
      %v2122 = vpop.f32.mrf.mxu0
      %v2123 = vpop.f32.mrf.mxu0
      %v2124 = vadd.f32 0.0, %v2123
      %v2125 = vpop.f32.mrf.mxu0
      %2126 = vmatprep.mubr.bf16.mxu0 0
      %2127 = vmatmul.mubr.bf16.gmra.mxu0 %v1714
      %v2128 = vpop.f32.mrf.mxu0
      %v2129 = vadd.f32 0.0, %v2128
      %v2130 = vpop.f32.mrf.mxu0
      %v2131 = vpop.f32.mrf.mxu0
      %v2132 = vadd.f32 0.0, %v2131
      %v2133 = vpop.f32.mrf.mxu0
      %2134 = vmatprep.mubr.bf16.mxu0 0
      %2135 = vmatmul.mubr.bf16.gmra.mxu0 %v1717
      %v2136 = vpop.f32.mrf.mxu0
      %v2137 = vadd.f32 0.0, %v2136
      %v2138 = vpop.f32.mrf.mxu0
      %v2139 = vpop.f32.mrf.mxu0
      %v2140 = vadd.f32 0.0, %v2139
      %v2141 = vpop.f32.mrf.mxu0
      %2142 = vmatprep.mubr.bf16.mxu0 0
      %2143 = vmatmul.mubr.bf16.gmra.mxu0 %v1720
      %v2144 = vpop.f32.mrf.mxu0
      %v2145 = vadd.f32 0.0, %v2144
      %v2146 = vpop.f32.mrf.mxu0
      %v2147 = vpop.f32.mrf.mxu0
      %v2148 = vadd.f32 0.0, %v2147
      %v2149 = vpop.f32.mrf.mxu0
      %2150 = vmatprep.mubr.bf16.mxu0 0
      %2151 = vmatmul.mubr.bf16.gmra.mxu0 %v1723
      %v2152 = vpop.f32.mrf.mxu0
      %v2153 = vadd.f32 0.0, %v2152
      %v2154 = vpop.f32.mrf.mxu0
      %v2155 = vpop.f32.mrf.mxu0
      %v2156 = vadd.f32 0.0, %v2155
      %v2157 = vpop.f32.mrf.mxu0
      %2158 = vmatprep.mubr.bf16.mxu0 0
      %2159 = vmatmul.mubr.bf16.gmra.mxu0 %v1726
      %v2160 = vpop.f32.mrf.mxu0
      %v2161 = vadd.f32 0.0, %v2160
      %v2162 = vpop.f32.mrf.mxu0
      %v2163 = vpop.f32.mrf.mxu0
      %v2164 = vadd.f32 0.0, %v2163
      %v2165 = vpop.f32.mrf.mxu0
      %2166 = vmatprep.mubr.bf16.mxu0 0
      %2167 = vmatmul.mubr.bf16.gmra.mxu0 %v1729
      %v2168 = vpop.f32.mrf.mxu0
      %v2169 = vadd.f32 0.0, %v2168
      %v2170 = vpop.f32.mrf.mxu0
      %v2171 = vpop.f32.mrf.mxu0
      %v2172 = vadd.f32 0.0, %v2171
      %v2173 = vpop.f32.mrf.mxu0
      %2174 = vmatprep.mubr.bf16.mxu0 0
      %2175 = vmatmul.mubr.bf16.gmra.mxu0 %v1732
      %v2176 = vpop.f32.mrf.mxu0
      %v2177 = vadd.f32 0.0, %v2176
      %v2178 = vpop.f32.mrf.mxu0
      %v2179 = vpop.f32.mrf.mxu0
      %v2180 = vadd.f32 0.0, %v2179
      %v2181 = vpop.f32.mrf.mxu0
      %2182 = vmatprep.mubr.bf16.mxu0 0
      %2183 = vmatmul.mubr.bf16.gmra.mxu0 %v1735
      %v2184 = vpop.f32.mrf.mxu0
      %v2185 = vadd.f32 0.0, %v2184
      %v2186 = vpop.f32.mrf.mxu0
      %v2187 = vpop.f32.mrf.mxu0
      %v2188 = vadd.f32 0.0, %v2187
      %v2189 = vpop.f32.mrf.mxu0
      %2190 = vmatprep.mubr.bf16.mxu0 0
      %2191 = vmatmul.mubr.bf16.gmra.mxu0 %v1738
      %v2192 = vpop.f32.mrf.mxu0
      %v2193 = vadd.f32 0.0, %v2192
      %v2194 = vpop.f32.mrf.mxu0
      %v2195 = vpop.f32.mrf.mxu0
      %v2196 = vadd.f32 0.0, %v2195
      %v2197 = vpop.f32.mrf.mxu0
      %2198 = vmatprep.mubr.bf16.mxu0 0
      %2199 = vmatmul.mubr.bf16.gmra.mxu0 %v1741
      %v2200 = vpop.f32.mrf.mxu0
      %v2201 = vadd.f32 0.0, %v2200
      %v2202 = vpop.f32.mrf.mxu0
      %v2203 = vpop.f32.mrf.mxu0
      %v2204 = vadd.f32 0.0, %v2203
      %v2205 = vpop.f32.mrf.mxu0
      %2206 = vmatprep.mubr.bf16.mxu0 0
      %2207 = vmatmul.mubr.bf16.gmra.mxu0 %v1744
      %v2208 = vpop.f32.mrf.mxu0
      %v2209 = vadd.f32 0.0, %v2208
      %v2210 = vpop.f32.mrf.mxu0
      %v2211 = vpop.f32.mrf.mxu0
      %v2212 = vadd.f32 0.0, %v2211
      %v2213 = vpop.f32.mrf.mxu0
      %2214 = vmatprep.mubr.bf16.mxu0 0
      %2215 = vmatmul.mubr.bf16.gmra.mxu0 %v1747
      %v2216 = vpop.f32.mrf.mxu0
      %v2217 = vadd.f32 0.0, %v2216
      %v2218 = vpop.f32.mrf.mxu0
      %v2219 = vpop.f32.mrf.mxu0
      %v2220 = vadd.f32 0.0, %v2219
      %v2221 = vpop.f32.mrf.mxu0
      %2222 = vmatprep.mubr.bf16.mxu0 0
      %2223 = vmatmul.mubr.bf16.gmra.mxu0 %v1750
      %v2224 = vpop.f32.mrf.mxu0
      %v2225 = vadd.f32 0.0, %v2224
      %v2226 = vpop.f32.mrf.mxu0
      %v2227 = vpop.f32.mrf.mxu0
      %v2228 = vadd.f32 0.0, %v2227
      %v2229 = vpop.f32.mrf.mxu0
      %2230 = vmatprep.mubr.bf16.mxu0 0
      %2231 = vmatmul.mubr.bf16.gmra.mxu0 %v1753
      %v2232 = vpop.f32.mrf.mxu0
      %v2233 = vadd.f32 0.0, %v2232
      %v2234 = vpop.f32.mrf.mxu0
      %v2235 = vpop.f32.mrf.mxu0
      %v2236 = vadd.f32 0.0, %v2235
      %v2237 = vpop.f32.mrf.mxu0
      %2238 = vmatprep.mubr.bf16.mxu0 0
      %2239 = vmatmul.mubr.bf16.gmra.mxu0 %v1756
      %v2240 = vpop.f32.mrf.mxu0
      %v2241 = vadd.f32 0.0, %v2240
      %v2242 = vpop.f32.mrf.mxu0
      %v2243 = vpop.f32.mrf.mxu0
      %v2244 = vadd.f32 0.0, %v2243
      %v2245 = vpop.f32.mrf.mxu0
      %2246 = vmatprep.mubr.bf16.mxu0 0
      %2247 = vmatmul.mubr.bf16.gmra.mxu0 %v1759
      %v2248 = vpop.f32.mrf.mxu0
      %v2249 = vadd.f32 0.0, %v2248
      %v2250 = vpop.f32.mrf.mxu0
      %v2251 = vpop.f32.mrf.mxu0
      %v2252 = vadd.f32 0.0, %v2251
      %v2253 = vpop.f32.mrf.mxu0
      %2254 = vmatprep.mubr.bf16.mxu0 0
      %2255 = vmatmul.mubr.bf16.gmra.mxu0 %v1762
      %v2256 = vpop.f32.mrf.mxu0
      %v2257 = vadd.f32 0.0, %v2256
      %v2258 = vpop.f32.mrf.mxu0
      %v2259 = vpop.f32.mrf.mxu0
      %v2260 = vadd.f32 0.0, %v2259
      %v2261 = vpop.f32.mrf.mxu0
      %2262 = vmatprep.mubr.bf16.mxu0 0
      %2263 = vmatmul.mubr.bf16.gmra.mxu0 %v1765
      %v2264 = vpop.f32.mrf.mxu0
      %v2265 = vadd.f32 0.0, %v2264
      %v2266 = vpop.f32.mrf.mxu0
      %v2267 = vpop.f32.mrf.mxu0
      %v2268 = vadd.f32 0.0, %v2267
      %v2269 = vpop.f32.mrf.mxu0
      %2270 = vmatprep.mubr.bf16.mxu0 0
      %2271 = vmatmul.mubr.bf16.gmra.mxu0 %v1768
      %v2272 = vpop.f32.mrf.mxu0
      %v2273 = vadd.f32 0.0, %v2272
      %v2274 = vpop.f32.mrf.mxu0
      %v2275 = vpop.f32.mrf.mxu0
      %v2276 = vadd.f32 0.0, %v2275
      %v2277 = vpop.f32.mrf.mxu0
      %2278 = vmatprep.mubr.bf16.mxu0 0
      %2279 = vmatmul.mubr.bf16.gmra.mxu0 %v1771
      %v2280 = vpop.f32.mrf.mxu0
      %v2281 = vadd.f32 0.0, %v2280
      %v2282 = vpop.f32.mrf.mxu0
      %v2283 = vpop.f32.mrf.mxu0
      %v2284 = vadd.f32 0.0, %v2283
      %v2285 = vpop.f32.mrf.mxu0
      %2286 = vmatprep.mubr.bf16.mxu0 0
      %2287 = vmatmul.mubr.bf16.gmra.mxu0 %v1774
      %v2288 = vpop.f32.mrf.mxu0
      %v2289 = vadd.f32 0.0, %v2288
      %v2290 = vpop.f32.mrf.mxu0
      %v2291 = vpop.f32.mrf.mxu0
      %v2292 = vadd.f32 0.0, %v2291
      %v2293 = vpop.f32.mrf.mxu0
      %2294 = vmatprep.mubr.bf16.mxu0 0
      %2295 = vmatmul.mubr.bf16.gmra.mxu0 %v1777
      %v2296 = vpop.f32.mrf.mxu0
      %v2297 = vadd.f32 0.0, %v2296
      %v2298 = vpop.f32.mrf.mxu0
      %v2299 = vpop.f32.mrf.mxu0
      %v2300 = vadd.f32 0.0, %v2299
      %v2301 = vpop.f32.mrf.mxu0
      %2302 = vmatprep.mubr.bf16.mxu0 0
      %2303 = vmatmul.mubr.bf16.gmra.mxu0 %v1780
      %v2304 = vpop.f32.mrf.mxu0
      %v2305 = vadd.f32 0.0, %v2304
      %v2306 = vpop.f32.mrf.mxu0
      %v2307 = vpop.f32.mrf.mxu0
      %v2308 = vadd.f32 0.0, %v2307
      %v2309 = vpop.f32.mrf.mxu0
      %2310 = vmatprep.mubr.bf16.mxu0 0
      %2311 = vmatmul.mubr.bf16.gmra.mxu0 %v1783
      %v2312 = vpop.f32.mrf.mxu0
      %v2313 = vadd.f32 0.0, %v2312
      %v2314 = vpop.f32.mrf.mxu0
      %v2315 = vpop.f32.mrf.mxu0
      %v2316 = vadd.f32 0.0, %v2315
      %v2317 = vpop.f32.mrf.mxu0
      %2318 = vmatprep.mubr.bf16.mxu0 0
      %2319 = vmatmul.mubr.bf16.gmra.mxu0 %v1786
      %v2320 = vpop.f32.mrf.mxu0
      %v2321 = vadd.f32 0.0, %v2320
      %v2322 = vpop.f32.mrf.mxu0
      %v2323 = vpop.f32.mrf.mxu0
      %v2324 = vadd.f32 0.0, %v2323
      %v2325 = vpop.f32.mrf.mxu0
      %2326 = vmatprep.mubr.bf16.mxu0 0
      %2327 = vmatmul.mubr.bf16.gmra.mxu0 %v1789
      %v2328 = vpop.f32.mrf.mxu0
      %v2329 = vadd.f32 0.0, %v2328
      %v2330 = vpop.f32.mrf.mxu0
      %v2331 = vpop.f32.mrf.mxu0
      %v2332 = vadd.f32 0.0, %v2331
      %v2333 = vpop.f32.mrf.mxu0
      %2334 = vdwg.mxu0
      %v2335 = vrcp.pop %v1855
      %v2336 = vrcp.pop %v1857
      %v2337 = vrcp.pop %v1859
      %v2338 = vrcp.pop %v1861
      %v2339 = vrcp.pop %v1863
      %v2340 = vrcp.pop %v1865
      %v2341 = vrcp.pop %v1867
      %v2342 = vrcp.pop %v1869
      %v2343 = vrcp.pop %v1871
      %v2344 = vrcp.pop %v1873
      %v2345 = vrcp.pop %v1875
      %v2346 = vrcp.pop %v1877
      %v2347 = vrcp.pop %v1879
      %v2348 = vrcp.pop %v1881
      %v2349 = vrcp.pop %v1883
      %v2350 = vrcp.pop %v1885
      %v2351 = vrcp.pop %v1887
      %v2352 = vrcp.pop %v1889
      %v2353 = vrcp.pop %v1891
      %v2354 = vrcp.pop %v1893
      %v2355 = vrcp.pop %v1895
      %v2356 = vrcp.pop %v1897
      %v2357 = vrcp.pop %v1899
      %v2358 = vrcp.pop %v1901
      %v2359 = vrcp.pop %v1903
      %v2360 = vrcp.pop %v1905
      %v2361 = vrcp.pop %v1907
      %v2362 = vrcp.pop %v1909
      %v2363 = vrcp.pop %v1911
      %v2364 = vrcp.pop %v1913
      %v2365 = vrcp.pop %v1915
      %v2366 = vrcp.pop %v1917
      %v2367 = vrcp.pop %v1919
      %v2368 = vrcp.pop %v1921
      %v2369 = vrcp.pop %v1923
      %v2370 = vrcp.pop %v1925
      %v2371 = vrcp.pop %v1927
      %v2372 = vrcp.pop %v1929
      %v2373 = vrcp.pop %v1931
      %v2374 = vrcp.pop %v1933
      %v2375 = vrcp.pop %v1935
      %v2376 = vrcp.pop %v1937
      %v2377 = vrcp.pop %v1939
      %v2378 = vrcp.pop %v1941
      %v2379 = vrcp.pop %v1943
      %v2380 = vrcp.pop %v1945
      %v2381 = vrcp.pop %v1947
      %v2382 = vrcp.pop %v1949
      %v2383 = vrcp.pop %v1951
      %v2384 = vrcp.pop %v1953
      %v2385 = vrcp.pop %v1955
      %v2386 = vrcp.pop %v1957
      %v2387 = vrcp.pop %v1959
      %v2388 = vrcp.pop %v1961
      %v2389 = vrcp.pop %v1963
      %v2390 = vrcp.pop %v1965
      %v2391 = vrcp.pop %v1967
      %v2392 = vrcp.pop %v1969
      %v2393 = vrcp.pop %v1971
      %v2394 = vrcp.pop %v1973
      %v2395 = vrcp.pop %v1975
      %v2396 = vrcp.pop %v1977
      %v2397 = vrcp.pop %v1979
      %v2398 = vrcp.pop %v1981
      %v2399 = vmul.f32 %v2081, %v2335
      %v2400 = vmul.f32 %v2084, %v2336
      %v2401 = vmul.f32 %v2089, %v2337
      %v2402 = vmul.f32 %v2092, %v2338
      %v2403 = vmul.f32 %v2097, %v2339
      %v2404 = vmul.f32 %v2100, %v2340
      %v2405 = vmul.f32 %v2105, %v2341
      %v2406 = vmul.f32 %v2108, %v2342
      %v2407 = vmul.f32 %v2113, %v2343
      %v2408 = vmul.f32 %v2116, %v2344
      %v2409 = vmul.f32 %v2121, %v2345
      %v2410 = vmul.f32 %v2124, %v2346
      %v2411 = vmul.f32 %v2129, %v2347
      %v2412 = vmul.f32 %v2132, %v2348
      %v2413 = vmul.f32 %v2137, %v2349
      %v2414 = vmul.f32 %v2140, %v2350
      %v2415 = vmul.f32 %v2145, %v2351
      %v2416 = vmul.f32 %v2148, %v2352
      %v2417 = vmul.f32 %v2153, %v2353
      %v2418 = vmul.f32 %v2156, %v2354
      %v2419 = vmul.f32 %v2161, %v2355
      %v2420 = vmul.f32 %v2164, %v2356
      %v2421 = vmul.f32 %v2169, %v2357
      %v2422 = vmul.f32 %v2172, %v2358
      %v2423 = vmul.f32 %v2177, %v2359
      %v2424 = vmul.f32 %v2180, %v2360
      %v2425 = vmul.f32 %v2185, %v2361
      %v2426 = vmul.f32 %v2188, %v2362
      %v2427 = vmul.f32 %v2193, %v2363
      %v2428 = vmul.f32 %v2196, %v2364
      %v2429 = vmul.f32 %v2201, %v2365
      %v2430 = vmul.f32 %v2204, %v2366
      %v2431 = vmul.f32 %v2209, %v2367
      %v2432 = vmul.f32 %v2212, %v2368
      %v2433 = vmul.f32 %v2217, %v2369
      %v2434 = vmul.f32 %v2220, %v2370
      %v2435 = vmul.f32 %v2225, %v2371
      %v2436 = vmul.f32 %v2228, %v2372
      %v2437 = vmul.f32 %v2233, %v2373
      %v2438 = vmul.f32 %v2236, %v2374
      %v2439 = vmul.f32 %v2241, %v2375
      %v2440 = vmul.f32 %v2244, %v2376
      %v2441 = vmul.f32 %v2249, %v2377
      %v2442 = vmul.f32 %v2252, %v2378
      %v2443 = vmul.f32 %v2257, %v2379
      %v2444 = vmul.f32 %v2260, %v2380
      %v2445 = vmul.f32 %v2265, %v2381
      %v2446 = vmul.f32 %v2268, %v2382
      %v2447 = vmul.f32 %v2273, %v2383
      %v2448 = vmul.f32 %v2276, %v2384
      %v2449 = vmul.f32 %v2281, %v2385
      %v2450 = vmul.f32 %v2284, %v2386
      %v2451 = vmul.f32 %v2289, %v2387
      %v2452 = vmul.f32 %v2292, %v2388
      %v2453 = vmul.f32 %v2297, %v2389
      %v2454 = vmul.f32 %v2300, %v2390
      %v2455 = vmul.f32 %v2305, %v2391
      %v2456 = vmul.f32 %v2308, %v2392
      %v2457 = vmul.f32 %v2313, %v2393
      %v2458 = vmul.f32 %v2316, %v2394
      %v2459 = vmul.f32 %v2321, %v2395
      %v2460 = vmul.f32 %v2324, %v2396
      %v2461 = vmul.f32 %v2329, %v2397
      %v2462 = vmul.f32 %v2332, %v2398
      %v2463 = vpack.c.bf16 %v2400, %v2399
      %v2464 = vpack.c.bf16 %v2402, %v2401
      %v2465 = vpack.c.bf16 %v2404, %v2403
      %v2466 = vpack.c.bf16 %v2406, %v2405
      %v2467 = vpack.c.bf16 %v2408, %v2407
      %v2468 = vpack.c.bf16 %v2410, %v2409
      %v2469 = vpack.c.bf16 %v2412, %v2411
      %v2470 = vpack.c.bf16 %v2414, %v2413
      %v2471 = vpack.c.bf16 %v2416, %v2415
      %v2472 = vpack.c.bf16 %v2418, %v2417
      %v2473 = vpack.c.bf16 %v2420, %v2419
      %v2474 = vpack.c.bf16 %v2422, %v2421
      %v2475 = vpack.c.bf16 %v2424, %v2423
      %v2476 = vpack.c.bf16 %v2426, %v2425
      %v2477 = vpack.c.bf16 %v2428, %v2427
      %v2478 = vpack.c.bf16 %v2430, %v2429
      %v2479 = vpack.c.bf16 %v2432, %v2431
      %v2480 = vpack.c.bf16 %v2434, %v2433
      %v2481 = vpack.c.bf16 %v2436, %v2435
      %v2482 = vpack.c.bf16 %v2438, %v2437
      %v2483 = vpack.c.bf16 %v2440, %v2439
      %v2484 = vpack.c.bf16 %v2442, %v2441
      %v2485 = vpack.c.bf16 %v2444, %v2443
      %v2486 = vpack.c.bf16 %v2446, %v2445
      %v2487 = vpack.c.bf16 %v2448, %v2447
      %v2488 = vpack.c.bf16 %v2450, %v2449
      %v2489 = vpack.c.bf16 %v2452, %v2451
      %v2490 = vpack.c.bf16 %v2454, %v2453
      %v2491 = vpack.c.bf16 %v2456, %v2455
      %v2492 = vpack.c.bf16 %v2458, %v2457
      %v2493 = vpack.c.bf16 %v2460, %v2459
      %v2494 = vpack.c.bf16 %v2462, %v2461
      %v2495 = vld [vmem:[%s5] sm:$0xf]
      %v2496 = vld [vmem:[%s5 + $0x4] sm:$0xf]
      %v2497 = vld [vmem:[%s5 + $0x8] sm:$0xf]
      %v2498 = vld [vmem:[%s5 + $0xc] sm:$0xf]
      %v2499 = vld [vmem:[%s5 + $0x10] sm:$0xf]
      %v2500 = vld [vmem:[%s5 + $0x14] sm:$0xf]
      %v2501 = vld [vmem:[%s5 + $0x18] sm:$0xf]
      %v2502 = vld [vmem:[%s5 + $0x1c] sm:$0xf]
      %v2503 = vld [vmem:[%s5 + $0x20] sm:$0xf]
      %v2504 = vld [vmem:[%s5 + $0x24] sm:$0xf]
      %v2505 = vld [vmem:[%s5 + $0x28] sm:$0xf]
      %v2506 = vld [vmem:[%s5 + $0x2c] sm:$0xf]
      %v2507 = vld [vmem:[%s5 + $0x30] sm:$0xf]
      %v2508 = vld [vmem:[%s5 + $0x34] sm:$0xf]
      %v2509 = vld [vmem:[%s5 + $0x38] sm:$0xf]
      %v2510 = vld [vmem:[%s5 + $0x3c] sm:$0xf]
      %v2511 = vld [vmem:[%s6] sm:$0x1]
      %v2513 = vlaneseq
      %v2514 = vshrl.u32 %v2513, 7
      %v2515 = vsub.s32 0, %v2514
      %v2516 = vrot.slane %v2511, %v2515
      %v2534 = vunpack.c.l.b16 %v2495
      %v2535 = vunpack.c.l.b16 %v2496
      %v2536 = vunpack.c.l.b16 %v2497
      %v2537 = vunpack.c.l.b16 %v2498
      %v2538 = vunpack.c.l.b16 %v2499
      %v2539 = vunpack.c.l.b16 %v2500
      %v2540 = vunpack.c.l.b16 %v2501
      %v2541 = vunpack.c.l.b16 %v2502
      %v2542 = vunpack.c.l.b16 %v2503
      %v2543 = vunpack.c.l.b16 %v2504
      %v2544 = vunpack.c.l.b16 %v2505
      %v2545 = vunpack.c.l.b16 %v2506
      %v2546 = vunpack.c.l.b16 %v2507
      %v2547 = vunpack.c.l.b16 %v2508
      %v2548 = vunpack.c.l.b16 %v2509
      %v2549 = vunpack.c.l.b16 %v2510
      %v2550 = vpack.c.b16 %v2535, %v2534
      %v2551 = vpack.c.b16 %v2537, %v2536
      %v2552 = vpack.c.b16 %v2539, %v2538
      %v2553 = vpack.c.b16 %v2541, %v2540
      %v2554 = vpack.c.b16 %v2543, %v2542
      %v2555 = vpack.c.b16 %v2545, %v2544
      %v2556 = vpack.c.b16 %v2547, %v2546
      %v2557 = vpack.c.b16 %v2549, %v2548
      %2566 = vmatprep.subr.bf16.mxu0 0
      %2567 = vmatpush1.bf16.msra.mxu0 %v2557
      %2568 = vmatprep.subr.bf16.mxu0 0
      %2569 = vmatpush1.bf16.msra.mxu0 %v2556
      %2570 = vmatprep.subr.bf16.mxu0 0
      %2571 = vmatpush1.bf16.msra.mxu0 %v2555
      %2572 = vmatprep.subr.bf16.mxu0 0
      %2573 = vmatpush1.bf16.msra.mxu0 %v2554
      %2574 = vmatprep.subr.bf16.mxu0 0
      %2575 = vmatpush1.bf16.msra.mxu0 %v2553
      %2576 = vmatprep.subr.bf16.mxu0 0
      %2577 = vmatpush1.bf16.msra.mxu0 %v2552
      %2578 = vmatprep.subr.bf16.mxu0 0
      %2579 = vmatpush1.bf16.msra.mxu0 %v2551
      %2580 = vmatprep.subr.bf16.mxu0 0
      %2581 = vmatpush1.bf16.msra.mxu0 %v2550
      %2582 = vmatprep.subr.bf16.mxu0 0
      %2583 = vmatpush2.bf16.msra.mxu0 0
      %2584 = vmatprep.subr.bf16.mxu0 0
      %2585 = vmatpush2.bf16.msra.mxu0 0
      %2586 = vmatprep.subr.bf16.mxu0 0
      %2587 = vmatpush2.bf16.msra.mxu0 0
      %2588 = vmatprep.subr.bf16.mxu0 0
      %2589 = vmatpush2.bf16.msra.mxu0 0
      %2590 = vmatprep.subr.bf16.mxu0 0
      %2591 = vmatpush2.bf16.msra.mxu0 0
      %2592 = vmatprep.subr.bf16.mxu0 0
      %2593 = vmatpush2.bf16.msra.mxu0 0
      %2594 = vmatprep.subr.bf16.mxu0 0
      %2595 = vmatpush2.bf16.msra.mxu0 0
      %2596 = vmatprep.subr.bf16.mxu0 0
      %2597 = vmatpush2.bf16.msra.mxu0 0
      %2598 = vmatprep.mubr.bf16.mxu0 0
      %2599 = vmatmul.mubr.bf16.gmra.mxu0 %v2463
      %v2600 = vpop.f32.mrf.mxu0
      %v2601 = vadd.f32 %v2516, %v2600
      %v2602 = vpop.f32.mrf.mxu0
      %v2603 = vpop.f32.mrf.mxu0
      %v2604 = vadd.f32 %v2516, %v2603
      %v2605 = vpop.f32.mrf.mxu0
      %2606 = vmatprep.mubr.bf16.mxu0 0
      %2607 = vmatmul.mubr.bf16.gmra.mxu0 %v2464
      %v2608 = vpop.f32.mrf.mxu0
      %v2609 = vadd.f32 %v2516, %v2608
      %v2610 = vpop.f32.mrf.mxu0
      %v2611 = vpop.f32.mrf.mxu0
      %v2612 = vadd.f32 %v2516, %v2611
      %v2613 = vpop.f32.mrf.mxu0
      %2614 = vmatprep.mubr.bf16.mxu0 0
      %2615 = vmatmul.mubr.bf16.gmra.mxu0 %v2465
      %v2616 = vpop.f32.mrf.mxu0
      %v2617 = vadd.f32 %v2516, %v2616
      %v2618 = vpop.f32.mrf.mxu0
      %v2619 = vpop.f32.mrf.mxu0
      %v2620 = vadd.f32 %v2516, %v2619
      %v2621 = vpop.f32.mrf.mxu0
      %2622 = vmatprep.mubr.bf16.mxu0 0
      %2623 = vmatmul.mubr.bf16.gmra.mxu0 %v2466
      %v2624 = vpop.f32.mrf.mxu0
      %v2625 = vadd.f32 %v2516, %v2624
      %v2626 = vpop.f32.mrf.mxu0
      %v2627 = vpop.f32.mrf.mxu0
      %v2628 = vadd.f32 %v2516, %v2627
      %v2629 = vpop.f32.mrf.mxu0
      %2630 = vmatprep.mubr.bf16.mxu0 0
      %2631 = vmatmul.mubr.bf16.gmra.mxu0 %v2467
      %v2632 = vpop.f32.mrf.mxu0
      %v2633 = vadd.f32 %v2516, %v2632
      %v2634 = vpop.f32.mrf.mxu0
      %v2635 = vpop.f32.mrf.mxu0
      %v2636 = vadd.f32 %v2516, %v2635
      %v2637 = vpop.f32.mrf.mxu0
      %2638 = vmatprep.mubr.bf16.mxu0 0
      %2639 = vmatmul.mubr.bf16.gmra.mxu0 %v2468
      %v2640 = vpop.f32.mrf.mxu0
      %v2641 = vadd.f32 %v2516, %v2640
      %v2642 = vpop.f32.mrf.mxu0
      %v2643 = vpop.f32.mrf.mxu0
      %v2644 = vadd.f32 %v2516, %v2643
      %v2645 = vpop.f32.mrf.mxu0
      %2646 = vmatprep.mubr.bf16.mxu0 0
      %2647 = vmatmul.mubr.bf16.gmra.mxu0 %v2469
      %v2648 = vpop.f32.mrf.mxu0
      %v2649 = vadd.f32 %v2516, %v2648
      %v2650 = vpop.f32.mrf.mxu0
      %v2651 = vpop.f32.mrf.mxu0
      %v2652 = vadd.f32 %v2516, %v2651
      %v2653 = vpop.f32.mrf.mxu0
      %2654 = vmatprep.mubr.bf16.mxu0 0
      %2655 = vmatmul.mubr.bf16.gmra.mxu0 %v2470
      %v2656 = vpop.f32.mrf.mxu0
      %v2657 = vadd.f32 %v2516, %v2656
      %v2658 = vpop.f32.mrf.mxu0
      %v2659 = vpop.f32.mrf.mxu0
      %v2660 = vadd.f32 %v2516, %v2659
      %v2661 = vpop.f32.mrf.mxu0
      %2662 = vmatprep.mubr.bf16.mxu0 0
      %2663 = vmatmul.mubr.bf16.gmra.mxu0 %v2471
      %v2664 = vpop.f32.mrf.mxu0
      %v2665 = vadd.f32 %v2516, %v2664
      %v2666 = vpop.f32.mrf.mxu0
      %v2667 = vpop.f32.mrf.mxu0
      %v2668 = vadd.f32 %v2516, %v2667
      %v2669 = vpop.f32.mrf.mxu0
      %2670 = vmatprep.mubr.bf16.mxu0 0
      %2671 = vmatmul.mubr.bf16.gmra.mxu0 %v2472
      %v2672 = vpop.f32.mrf.mxu0
      %v2673 = vadd.f32 %v2516, %v2672
      %v2674 = vpop.f32.mrf.mxu0
      %v2675 = vpop.f32.mrf.mxu0
      %v2676 = vadd.f32 %v2516, %v2675
      %v2677 = vpop.f32.mrf.mxu0
      %2678 = vmatprep.mubr.bf16.mxu0 0
      %2679 = vmatmul.mubr.bf16.gmra.mxu0 %v2473
      %v2680 = vpop.f32.mrf.mxu0
      %v2681 = vadd.f32 %v2516, %v2680
      %v2682 = vpop.f32.mrf.mxu0
      %v2683 = vpop.f32.mrf.mxu0
      %v2684 = vadd.f32 %v2516, %v2683
      %v2685 = vpop.f32.mrf.mxu0
      %2686 = vmatprep.mubr.bf16.mxu0 0
      %2687 = vmatmul.mubr.bf16.gmra.mxu0 %v2474
      %v2688 = vpop.f32.mrf.mxu0
      %v2689 = vadd.f32 %v2516, %v2688
      %v2690 = vpop.f32.mrf.mxu0
      %v2691 = vpop.f32.mrf.mxu0
      %v2692 = vadd.f32 %v2516, %v2691
      %v2693 = vpop.f32.mrf.mxu0
      %2694 = vmatprep.mubr.bf16.mxu0 0
      %2695 = vmatmul.mubr.bf16.gmra.mxu0 %v2475
      %v2696 = vpop.f32.mrf.mxu0
      %v2697 = vadd.f32 %v2516, %v2696
      %v2698 = vpop.f32.mrf.mxu0
      %v2699 = vpop.f32.mrf.mxu0
      %v2700 = vadd.f32 %v2516, %v2699
      %v2701 = vpop.f32.mrf.mxu0
      %2702 = vmatprep.mubr.bf16.mxu0 0
      %2703 = vmatmul.mubr.bf16.gmra.mxu0 %v2476
      %v2704 = vpop.f32.mrf.mxu0
      %v2705 = vadd.f32 %v2516, %v2704
      %v2706 = vpop.f32.mrf.mxu0
      %v2707 = vpop.f32.mrf.mxu0
      %v2708 = vadd.f32 %v2516, %v2707
      %v2709 = vpop.f32.mrf.mxu0
      %2710 = vmatprep.mubr.bf16.mxu0 0
      %2711 = vmatmul.mubr.bf16.gmra.mxu0 %v2477
      %v2712 = vpop.f32.mrf.mxu0
      %v2713 = vadd.f32 %v2516, %v2712
      %v2714 = vpop.f32.mrf.mxu0
      %v2715 = vpop.f32.mrf.mxu0
      %v2716 = vadd.f32 %v2516, %v2715
      %v2717 = vpop.f32.mrf.mxu0
      %2718 = vmatprep.mubr.bf16.mxu0 0
      %2719 = vmatmul.mubr.bf16.gmra.mxu0 %v2478
      %v2720 = vpop.f32.mrf.mxu0
      %v2721 = vadd.f32 %v2516, %v2720
      %v2722 = vpop.f32.mrf.mxu0
      %v2723 = vpop.f32.mrf.mxu0
      %v2724 = vadd.f32 %v2516, %v2723
      %v2725 = vpop.f32.mrf.mxu0
      %2726 = vmatprep.mubr.bf16.mxu0 0
      %2727 = vmatmul.mubr.bf16.gmra.mxu0 %v2479
      %v2728 = vpop.f32.mrf.mxu0
      %v2729 = vadd.f32 %v2516, %v2728
      %v2730 = vpop.f32.mrf.mxu0
      %v2731 = vpop.f32.mrf.mxu0
      %v2732 = vadd.f32 %v2516, %v2731
      %v2733 = vpop.f32.mrf.mxu0
      %2734 = vmatprep.mubr.bf16.mxu0 0
      %2735 = vmatmul.mubr.bf16.gmra.mxu0 %v2480
      %v2736 = vpop.f32.mrf.mxu0
      %v2737 = vadd.f32 %v2516, %v2736
      %v2738 = vpop.f32.mrf.mxu0
      %v2739 = vpop.f32.mrf.mxu0
      %v2740 = vadd.f32 %v2516, %v2739
      %v2741 = vpop.f32.mrf.mxu0
      %2742 = vmatprep.mubr.bf16.mxu0 0
      %2743 = vmatmul.mubr.bf16.gmra.mxu0 %v2481
      %v2744 = vpop.f32.mrf.mxu0
      %v2745 = vadd.f32 %v2516, %v2744
      %v2746 = vpop.f32.mrf.mxu0
      %v2747 = vpop.f32.mrf.mxu0
      %v2748 = vadd.f32 %v2516, %v2747
      %v2749 = vpop.f32.mrf.mxu0
      %2750 = vmatprep.mubr.bf16.mxu0 0
      %2751 = vmatmul.mubr.bf16.gmra.mxu0 %v2482
      %v2752 = vpop.f32.mrf.mxu0
      %v2753 = vadd.f32 %v2516, %v2752
      %v2754 = vpop.f32.mrf.mxu0
      %v2755 = vpop.f32.mrf.mxu0
      %v2756 = vadd.f32 %v2516, %v2755
      %v2757 = vpop.f32.mrf.mxu0
      %2758 = vmatprep.mubr.bf16.mxu0 0
      %2759 = vmatmul.mubr.bf16.gmra.mxu0 %v2483
      %v2760 = vpop.f32.mrf.mxu0
      %v2761 = vadd.f32 %v2516, %v2760
      %v2762 = vpop.f32.mrf.mxu0
      %v2763 = vpop.f32.mrf.mxu0
      %v2764 = vadd.f32 %v2516, %v2763
      %v2765 = vpop.f32.mrf.mxu0
      %2766 = vmatprep.mubr.bf16.mxu0 0
      %2767 = vmatmul.mubr.bf16.gmra.mxu0 %v2484
      %v2768 = vpop.f32.mrf.mxu0
      %v2769 = vadd.f32 %v2516, %v2768
      %v2770 = vpop.f32.mrf.mxu0
      %v2771 = vpop.f32.mrf.mxu0
      %v2772 = vadd.f32 %v2516, %v2771
      %v2773 = vpop.f32.mrf.mxu0
      %2774 = vmatprep.mubr.bf16.mxu0 0
      %2775 = vmatmul.mubr.bf16.gmra.mxu0 %v2485
      %v2776 = vpop.f32.mrf.mxu0
      %v2777 = vadd.f32 %v2516, %v2776
      %v2778 = vpop.f32.mrf.mxu0
      %v2779 = vpop.f32.mrf.mxu0
      %v2780 = vadd.f32 %v2516, %v2779
      %v2781 = vpop.f32.mrf.mxu0
      %2782 = vmatprep.mubr.bf16.mxu0 0
      %2783 = vmatmul.mubr.bf16.gmra.mxu0 %v2486
      %v2784 = vpop.f32.mrf.mxu0
      %v2785 = vadd.f32 %v2516, %v2784
      %v2786 = vpop.f32.mrf.mxu0
      %v2787 = vpop.f32.mrf.mxu0
      %v2788 = vadd.f32 %v2516, %v2787
      %v2789 = vpop.f32.mrf.mxu0
      %2790 = vmatprep.mubr.bf16.mxu0 0
      %2791 = vmatmul.mubr.bf16.gmra.mxu0 %v2487
      %v2792 = vpop.f32.mrf.mxu0
      %v2793 = vadd.f32 %v2516, %v2792
      %v2794 = vpop.f32.mrf.mxu0
      %v2795 = vpop.f32.mrf.mxu0
      %v2796 = vadd.f32 %v2516, %v2795
      %v2797 = vpop.f32.mrf.mxu0
      %2798 = vmatprep.mubr.bf16.mxu0 0
      %2799 = vmatmul.mubr.bf16.gmra.mxu0 %v2488
      %v2800 = vpop.f32.mrf.mxu0
      %v2801 = vadd.f32 %v2516, %v2800
      %v2802 = vpop.f32.mrf.mxu0
      %v2803 = vpop.f32.mrf.mxu0
      %v2804 = vadd.f32 %v2516, %v2803
      %v2805 = vpop.f32.mrf.mxu0
      %2806 = vmatprep.mubr.bf16.mxu0 0
      %2807 = vmatmul.mubr.bf16.gmra.mxu0 %v2489
      %v2808 = vpop.f32.mrf.mxu0
      %v2809 = vadd.f32 %v2516, %v2808
      %v2810 = vpop.f32.mrf.mxu0
      %v2811 = vpop.f32.mrf.mxu0
      %v2812 = vadd.f32 %v2516, %v2811
      %v2813 = vpop.f32.mrf.mxu0
      %2814 = vmatprep.mubr.bf16.mxu0 0
      %2815 = vmatmul.mubr.bf16.gmra.mxu0 %v2490
      %v2816 = vpop.f32.mrf.mxu0
      %v2817 = vadd.f32 %v2516, %v2816
      %v2818 = vpop.f32.mrf.mxu0
      %v2819 = vpop.f32.mrf.mxu0
      %v2820 = vadd.f32 %v2516, %v2819
      %v2821 = vpop.f32.mrf.mxu0
      %2822 = vmatprep.mubr.bf16.mxu0 0
      %2823 = vmatmul.mubr.bf16.gmra.mxu0 %v2491
      %v2824 = vpop.f32.mrf.mxu0
      %v2825 = vadd.f32 %v2516, %v2824
      %v2826 = vpop.f32.mrf.mxu0
      %v2827 = vpop.f32.mrf.mxu0
      %v2828 = vadd.f32 %v2516, %v2827
      %v2829 = vpop.f32.mrf.mxu0
      %2830 = vmatprep.mubr.bf16.mxu0 0
      %2831 = vmatmul.mubr.bf16.gmra.mxu0 %v2492
      %v2832 = vpop.f32.mrf.mxu0
      %v2833 = vadd.f32 %v2516, %v2832
      %v2834 = vpop.f32.mrf.mxu0
      %v2835 = vpop.f32.mrf.mxu0
      %v2836 = vadd.f32 %v2516, %v2835
      %v2837 = vpop.f32.mrf.mxu0
      %2838 = vmatprep.mubr.bf16.mxu0 0
      %2839 = vmatmul.mubr.bf16.gmra.mxu0 %v2493
      %v2840 = vpop.f32.mrf.mxu0
      %v2841 = vadd.f32 %v2516, %v2840
      %v2842 = vpop.f32.mrf.mxu0
      %v2843 = vpop.f32.mrf.mxu0
      %v2844 = vadd.f32 %v2516, %v2843
      %v2845 = vpop.f32.mrf.mxu0
      %2846 = vmatprep.mubr.bf16.mxu0 0
      %2847 = vmatmul.mubr.bf16.gmra.mxu0 %v2494
      %v2848 = vpop.f32.mrf.mxu0
      %v2849 = vadd.f32 %v2516, %v2848
      %v2850 = vpop.f32.mrf.mxu0
      %v2851 = vpop.f32.mrf.mxu0
      %v2852 = vadd.f32 %v2516, %v2851
      %v2853 = vpop.f32.mrf.mxu0
      %2854 = vdwg.mxu0
      %v2855 = vpack.c.bf16 %v2604, %v2601
      %v2856 = vpack.c.bf16 %v2612, %v2609
      %v2857 = vpack.c.bf16 %v2620, %v2617
      %v2858 = vpack.c.bf16 %v2628, %v2625
      %v2859 = vpack.c.bf16 %v2636, %v2633
      %v2860 = vpack.c.bf16 %v2644, %v2641
      %v2861 = vpack.c.bf16 %v2652, %v2649
      %v2862 = vpack.c.bf16 %v2660, %v2657
      %v2863 = vpack.c.bf16 %v2668, %v2665
      %v2864 = vpack.c.bf16 %v2676, %v2673
      %v2865 = vpack.c.bf16 %v2684, %v2681
      %v2866 = vpack.c.bf16 %v2692, %v2689
      %v2867 = vpack.c.bf16 %v2700, %v2697
      %v2868 = vpack.c.bf16 %v2708, %v2705
      %v2869 = vpack.c.bf16 %v2716, %v2713
      %v2870 = vpack.c.bf16 %v2724, %v2721
      %v2871 = vpack.c.bf16 %v2732, %v2729
      %v2872 = vpack.c.bf16 %v2740, %v2737
      %v2873 = vpack.c.bf16 %v2748, %v2745
      %v2874 = vpack.c.bf16 %v2756, %v2753
      %v2875 = vpack.c.bf16 %v2764, %v2761
      %v2876 = vpack.c.bf16 %v2772, %v2769
      %v2877 = vpack.c.bf16 %v2780, %v2777
      %v2878 = vpack.c.bf16 %v2788, %v2785
      %v2879 = vpack.c.bf16 %v2796, %v2793
      %v2880 = vpack.c.bf16 %v2804, %v2801
      %v2881 = vpack.c.bf16 %v2812, %v2809
      %v2882 = vpack.c.bf16 %v2820, %v2817
      %v2883 = vpack.c.bf16 %v2828, %v2825
      %v2884 = vpack.c.bf16 %v2836, %v2833
      %v2885 = vpack.c.bf16 %v2844, %v2841
      %v2886 = vpack.c.bf16 %v2852, %v2849
      %v2919 = vunpack.c.l.b16 %v2855
      %v2920 = vunpack.c.h.b16 %v2855
      %v2921 = vunpack.c.l.b16 %v2856
      %v2922 = vunpack.c.h.b16 %v2856
      %v2923 = vunpack.c.l.b16 %v2857
      %v2924 = vunpack.c.h.b16 %v2857
      %v2925 = vunpack.c.l.b16 %v2858
      %v2926 = vunpack.c.h.b16 %v2858
      %v2927 = vunpack.c.l.b16 %v2859
      %v2928 = vunpack.c.h.b16 %v2859
      %v2929 = vunpack.c.l.b16 %v2860
      %v2930 = vunpack.c.h.b16 %v2860
      %v2931 = vunpack.c.l.b16 %v2861
      %v2932 = vunpack.c.h.b16 %v2861
      %v2933 = vunpack.c.l.b16 %v2862
      %v2934 = vunpack.c.h.b16 %v2862
      %v2935 = vunpack.c.l.b16 %v2863
      %v2936 = vunpack.c.h.b16 %v2863
      %v2937 = vunpack.c.l.b16 %v2864
      %v2938 = vunpack.c.h.b16 %v2864
      %v2939 = vunpack.c.l.b16 %v2865
      %v2940 = vunpack.c.h.b16 %v2865
      %v2941 = vunpack.c.l.b16 %v2866
      %v2942 = vunpack.c.h.b16 %v2866
      %v2943 = vunpack.c.l.b16 %v2867
      %v2944 = vunpack.c.h.b16 %v2867
      %v2945 = vunpack.c.l.b16 %v2868
      %v2946 = vunpack.c.h.b16 %v2868
      %v2947 = vunpack.c.l.b16 %v2869
      %v2948 = vunpack.c.h.b16 %v2869
      %v2949 = vunpack.c.l.b16 %v2870
      %v2950 = vunpack.c.h.b16 %v2870
      %v2951 = vunpack.c.l.b16 %v2871
      %v2952 = vunpack.c.h.b16 %v2871
      %v2953 = vunpack.c.l.b16 %v2872
      %v2954 = vunpack.c.h.b16 %v2872
      %v2955 = vunpack.c.l.b16 %v2873
      %v2956 = vunpack.c.h.b16 %v2873
      %v2957 = vunpack.c.l.b16 %v2874
      %v2958 = vunpack.c.h.b16 %v2874
      %v2959 = vunpack.c.l.b16 %v2875
      %v2960 = vunpack.c.h.b16 %v2875
      %v2961 = vunpack.c.l.b16 %v2876
      %v2962 = vunpack.c.h.b16 %v2876
      %v2963 = vunpack.c.l.b16 %v2877
      %v2964 = vunpack.c.h.b16 %v2877
      %v2965 = vunpack.c.l.b16 %v2878
      %v2966 = vunpack.c.h.b16 %v2878
      %v2967 = vunpack.c.l.b16 %v2879
      %v2968 = vunpack.c.h.b16 %v2879
      %v2969 = vunpack.c.l.b16 %v2880
      %v2970 = vunpack.c.h.b16 %v2880
      %v2971 = vunpack.c.l.b16 %v2881
      %v2972 = vunpack.c.h.b16 %v2881
      %v2973 = vunpack.c.l.b16 %v2882
      %v2974 = vunpack.c.h.b16 %v2882
      %v2975 = vunpack.c.l.b16 %v2883
      %v2976 = vunpack.c.h.b16 %v2883
      %v2977 = vunpack.c.l.b16 %v2884
      %v2978 = vunpack.c.h.b16 %v2884
      %v2979 = vunpack.c.l.b16 %v2885
      %v2980 = vunpack.c.h.b16 %v2885
      %v2981 = vunpack.c.l.b16 %v2886
      %v2982 = vunpack.c.h.b16 %v2886
      %v2983 = vpack.c.b16 %v2919, %v2919
      %v2984 = vpack.c.b16 %v2920, %v2920
      %v2985 = vpack.c.b16 %v2921, %v2921
      %v2986 = vpack.c.b16 %v2922, %v2922
      %v2987 = vpack.c.b16 %v2923, %v2923
      %v2988 = vpack.c.b16 %v2924, %v2924
      %v2989 = vpack.c.b16 %v2925, %v2925
      %v2990 = vpack.c.b16 %v2926, %v2926
      %v2991 = vpack.c.b16 %v2927, %v2927
      %v2992 = vpack.c.b16 %v2928, %v2928
      %v2993 = vpack.c.b16 %v2929, %v2929
      %v2994 = vpack.c.b16 %v2930, %v2930
      %v2995 = vpack.c.b16 %v2931, %v2931
      %v2996 = vpack.c.b16 %v2932, %v2932
      %v2997 = vpack.c.b16 %v2933, %v2933
      %v2998 = vpack.c.b16 %v2934, %v2934
      %v2999 = vpack.c.b16 %v2935, %v2935
      %v3000 = vpack.c.b16 %v2936, %v2936
      %v3001 = vpack.c.b16 %v2937, %v2937
      %v3002 = vpack.c.b16 %v2938, %v2938
      %v3003 = vpack.c.b16 %v2939, %v2939
      %v3004 = vpack.c.b16 %v2940, %v2940
      %v3005 = vpack.c.b16 %v2941, %v2941
      %v3006 = vpack.c.b16 %v2942, %v2942
      %v3007 = vpack.c.b16 %v2943, %v2943
      %v3008 = vpack.c.b16 %v2944, %v2944
      %v3009 = vpack.c.b16 %v2945, %v2945
      %v3010 = vpack.c.b16 %v2946, %v2946
      %v3011 = vpack.c.b16 %v2947, %v2947
      %v3012 = vpack.c.b16 %v2948, %v2948
      %v3013 = vpack.c.b16 %v2949, %v2949
      %v3014 = vpack.c.b16 %v2950, %v2950
      %v3015 = vpack.c.b16 %v2951, %v2951
      %v3016 = vpack.c.b16 %v2952, %v2952
      %v3017 = vpack.c.b16 %v2953, %v2953
      %v3018 = vpack.c.b16 %v2954, %v2954
      %v3019 = vpack.c.b16 %v2955, %v2955
      %v3020 = vpack.c.b16 %v2956, %v2956
      %v3021 = vpack.c.b16 %v2957, %v2957
      %v3022 = vpack.c.b16 %v2958, %v2958
      %v3023 = vpack.c.b16 %v2959, %v2959
      %v3024 = vpack.c.b16 %v2960, %v2960
      %v3025 = vpack.c.b16 %v2961, %v2961
      %v3026 = vpack.c.b16 %v2962, %v2962
      %v3027 = vpack.c.b16 %v2963, %v2963
      %v3028 = vpack.c.b16 %v2964, %v2964
      %v3029 = vpack.c.b16 %v2965, %v2965
      %v3030 = vpack.c.b16 %v2966, %v2966
      %v3031 = vpack.c.b16 %v2967, %v2967
      %v3032 = vpack.c.b16 %v2968, %v2968
      %v3033 = vpack.c.b16 %v2969, %v2969
      %v3034 = vpack.c.b16 %v2970, %v2970
      %v3035 = vpack.c.b16 %v2971, %v2971
      %v3036 = vpack.c.b16 %v2972, %v2972
      %v3037 = vpack.c.b16 %v2973, %v2973
      %v3038 = vpack.c.b16 %v2974, %v2974
      %v3039 = vpack.c.b16 %v2975, %v2975
      %v3040 = vpack.c.b16 %v2976, %v2976
      %v3041 = vpack.c.b16 %v2977, %v2977
      %v3042 = vpack.c.b16 %v2978, %v2978
      %v3043 = vpack.c.b16 %v2979, %v2979
      %v3044 = vpack.c.b16 %v2980, %v2980
      %v3045 = vpack.c.b16 %v2981, %v2981
      %v3046 = vpack.c.b16 %v2982, %v2982
      %3111 = vst [vmem:[%s451] sm:$0xf] %v2983
      %3112 = vst [vmem:[%s451 + $0x4] sm:$0xf] %v2984
      %3113 = vst [vmem:[%s451 + $0x8] sm:$0xf] %v2985
      %3114 = vst [vmem:[%s451 + $0xc] sm:$0xf] %v2986
      %3115 = vst [vmem:[%s451 + $0x10] sm:$0xf] %v2987
      %3116 = vst [vmem:[%s451 + $0x14] sm:$0xf] %v2988
      %3117 = vst [vmem:[%s451 + $0x18] sm:$0xf] %v2989
      %3118 = vst [vmem:[%s451 + $0x1c] sm:$0xf] %v2990
      %3119 = vst [vmem:[%s451 + $0x20] sm:$0xf] %v2991
      %3120 = vst [vmem:[%s451 + $0x24] sm:$0xf] %v2992
      %3121 = vst [vmem:[%s451 + $0x28] sm:$0xf] %v2993
      %3122 = vst [vmem:[%s451 + $0x2c] sm:$0xf] %v2994
      %3123 = vst [vmem:[%s451 + $0x30] sm:$0xf] %v2995
      %3124 = vst [vmem:[%s451 + $0x34] sm:$0xf] %v2996
      %3125 = vst [vmem:[%s451 + $0x38] sm:$0xf] %v2997
      %3126 = vst [vmem:[%s451 + $0x3c] sm:$0xf] %v2998
      %3127 = vst [vmem:[%s451 + $0x40] sm:$0xf] %v2999
      %3128 = vst [vmem:[%s451 + $0x44] sm:$0xf] %v3000
      %3129 = vst [vmem:[%s451 + $0x48] sm:$0xf] %v3001
      %3130 = vst [vmem:[%s451 + $0x4c] sm:$0xf] %v3002
      %3131 = vst [vmem:[%s451 + $0x50] sm:$0xf] %v3003
      %3132 = vst [vmem:[%s451 + $0x54] sm:$0xf] %v3004
      %3133 = vst [vmem:[%s451 + $0x58] sm:$0xf] %v3005
      %3134 = vst [vmem:[%s451 + $0x5c] sm:$0xf] %v3006
      %3135 = vst [vmem:[%s451 + $0x60] sm:$0xf] %v3007
      %3136 = vst [vmem:[%s451 + $0x64] sm:$0xf] %v3008
      %3137 = vst [vmem:[%s451 + $0x68] sm:$0xf] %v3009
      %3138 = vst [vmem:[%s451 + $0x6c] sm:$0xf] %v3010
      %3139 = vst [vmem:[%s451 + $0x70] sm:$0xf] %v3011
      %3140 = vst [vmem:[%s451 + $0x74] sm:$0xf] %v3012
      %3141 = vst [vmem:[%s451 + $0x78] sm:$0xf] %v3013
      %3142 = vst [vmem:[%s451 + $0x7c] sm:$0xf] %v3014
      %3143 = vst [vmem:[%s451 + $0x80] sm:$0xf] %v3015
      %3144 = vst [vmem:[%s451 + $0x84] sm:$0xf] %v3016
      %3145 = vst [vmem:[%s451 + $0x88] sm:$0xf] %v3017
      %3146 = vst [vmem:[%s451 + $0x8c] sm:$0xf] %v3018
      %3147 = vst [vmem:[%s451 + $0x90] sm:$0xf] %v3019
      %3148 = vst [vmem:[%s451 + $0x94] sm:$0xf] %v3020
      %3149 = vst [vmem:[%s451 + $0x98] sm:$0xf] %v3021
      %3150 = vst [vmem:[%s451 + $0x9c] sm:$0xf] %v3022
      %3151 = vst [vmem:[%s451 + $0xa0] sm:$0xf] %v3023
      %3152 = vst [vmem:[%s451 + $0xa4] sm:$0xf] %v3024
      %3153 = vst [vmem:[%s451 + $0xa8] sm:$0xf] %v3025
      %3154 = vst [vmem:[%s451 + $0xac] sm:$0xf] %v3026
      %3155 = vst [vmem:[%s451 + $0xb0] sm:$0xf] %v3027
      %3156 = vst [vmem:[%s451 + $0xb4] sm:$0xf] %v3028
      %3157 = vst [vmem:[%s451 + $0xb8] sm:$0xf] %v3029
      %3158 = vst [vmem:[%s451 + $0xbc] sm:$0xf] %v3030
      %3159 = vst [vmem:[%s451 + $0xc0] sm:$0xf] %v3031
      %3160 = vst [vmem:[%s451 + $0xc4] sm:$0xf] %v3032
      %3161 = vst [vmem:[%s451 + $0xc8] sm:$0xf] %v3033
      %3162 = vst [vmem:[%s451 + $0xcc] sm:$0xf] %v3034
      %3163 = vst [vmem:[%s451 + $0xd0] sm:$0xf] %v3035
      %3164 = vst [vmem:[%s451 + $0xd4] sm:$0xf] %v3036
      %3165 = vst [vmem:[%s451 + $0xd8] sm:$0xf] %v3037
      %3166 = vst [vmem:[%s451 + $0xdc] sm:$0xf] %v3038
      %3167 = vst [vmem:[%s451 + $0xe0] sm:$0xf] %v3039
      %3168 = vst [vmem:[%s451 + $0xe4] sm:$0xf] %v3040
      %3169 = vst [vmem:[%s451 + $0xe8] sm:$0xf] %v3041
      %3170 = vst [vmem:[%s451 + $0xec] sm:$0xf] %v3042
      %3171 = vst [vmem:[%s451 + $0xf0] sm:$0xf] %v3043
      %3172 = vst [vmem:[%s451 + $0xf4] sm:$0xf] %v3044
      %3173 = vst [vmem:[%s451 + $0xf8] sm:$0xf] %v3045
      %3174 = vst [vmem:[%s451 + $0xfc] sm:$0xf] %v3046
      %p3175 = scmp.eq.s32.totalorder %s28, 0
      // Predicated region
      $region49: #{nonlocal_block.4} parent=47 // pred_check
        %p3176 = pneg %p3175
      $region50: #{nonlocal_block.4} parent=47 // pred_check_branch
        %3178 = sbr.rel (%p3176) target = $region52
      $region51: #{nonlocal_block.4} parent=47 // pred_region
        %3179 = vst [vmem:[%s458] sm:$0x1] 0.0
        %3180 = vst [vmem:[%s465] sm:$0x1] 0.0
      $region52: #{nonlocal_block.4} parent=47 // pred_fallthru
        _
      %v3181 = vld [vmem:[%s458] sm:$0x1]
      %v3182 = vadd.f32 %v2601, %v2604
      %v3183 = vadd.f32 %v3182, %v2609
      %v3184 = vadd.f32 %v3183, %v2612
      %v3185 = vadd.f32 %v3184, %v2617
      %v3186 = vadd.f32 %v3185, %v2620
      %v3187 = vadd.f32 %v3186, %v2625
      %v3188 = vadd.f32 %v3187, %v2628
      %v3189 = vadd.f32 %v3188, %v2633
      %v3190 = vadd.f32 %v3189, %v2636
      %v3191 = vadd.f32 %v3190, %v2641
      %v3192 = vadd.f32 %v3191, %v2644
      %v3193 = vadd.f32 %v3192, %v2649
      %v3194 = vadd.f32 %v3193, %v2652
      %v3195 = vadd.f32 %v3194, %v2657
      %v3196 = vadd.f32 %v3195, %v2660
      %v3197 = vadd.f32 %v3196, %v2665
      %v3198 = vadd.f32 %v3197, %v2668
      %v3199 = vadd.f32 %v3198, %v2673
      %v3200 = vadd.f32 %v3199, %v2676
      %v3201 = vadd.f32 %v3200, %v2681
      %v3202 = vadd.f32 %v3201, %v2684
      %v3203 = vadd.f32 %v3202, %v2689
      %v3204 = vadd.f32 %v3203, %v2692
      %v3205 = vadd.f32 %v3204, %v2697
      %v3206 = vadd.f32 %v3205, %v2700
      %v3207 = vadd.f32 %v3206, %v2705
      %v3208 = vadd.f32 %v3207, %v2708
      %v3209 = vadd.f32 %v3208, %v2713
      %v3210 = vadd.f32 %v3209, %v2716
      %v3211 = vadd.f32 %v3210, %v2721
      %v3212 = vadd.f32 %v3211, %v2724
      %v3213 = vadd.f32 %v3212, %v2729
      %v3214 = vadd.f32 %v3213, %v2732
      %v3215 = vadd.f32 %v3214, %v2737
      %v3216 = vadd.f32 %v3215, %v2740
      %v3217 = vadd.f32 %v3216, %v2745
      %v3218 = vadd.f32 %v3217, %v2748
      %v3219 = vadd.f32 %v3218, %v2753
      %v3220 = vadd.f32 %v3219, %v2756
      %v3221 = vadd.f32 %v3220, %v2761
      %v3222 = vadd.f32 %v3221, %v2764
      %v3223 = vadd.f32 %v3222, %v2769
      %v3224 = vadd.f32 %v3223, %v2772
      %v3225 = vadd.f32 %v3224, %v2777
      %v3226 = vadd.f32 %v3225, %v2780
      %v3227 = vadd.f32 %v3226, %v2785
      %v3228 = vadd.f32 %v3227, %v2788
      %v3229 = vadd.f32 %v3228, %v2793
      %v3230 = vadd.f32 %v3229, %v2796
      %v3231 = vadd.f32 %v3230, %v2801
      %v3232 = vadd.f32 %v3231, %v2804
      %v3233 = vadd.f32 %v3232, %v2809
      %v3234 = vadd.f32 %v3233, %v2812
      %v3235 = vadd.f32 %v3234, %v2817
      %v3236 = vadd.f32 %v3235, %v2820
      %v3237 = vadd.f32 %v3236, %v2825
      %v3238 = vadd.f32 %v3237, %v2828
      %v3239 = vadd.f32 %v3238, %v2833
      %v3240 = vadd.f32 %v3239, %v2836
      %v3241 = vadd.f32 %v3240, %v2841
      %v3242 = vadd.f32 %v3241, %v2844
      %v3243 = vadd.f32 %v3242, %v2849
      %v3244 = vadd.f32 %v3243, %v2852
      %v3245 = vrot.slane %v3244, 4
      %v3246 = vadd.f32 %v3244, %v3245
      %v3247 = vrot.slane %v3246, 2
      %v3248 = vadd.f32 %v3246, %v3247
      %v3249 = vrot.slane %v3248, 1
      %v3250 = vadd.f32 %v3248, %v3249
      %v3251 = vadd.f32 %v3181, %v3250
      %3252 = vst [vmem:[%s458] sm:$0x1] %v3251
      %v3253 = vld [vmem:[%s465] sm:$0x1]
      %v3254 = vmul.f32 %v2601, %v2601
      %v3255 = vmul.f32 %v2604, %v2604
      %v3256 = vmul.f32 %v2609, %v2609
      %v3257 = vmul.f32 %v2612, %v2612
      %v3258 = vmul.f32 %v2617, %v2617
      %v3259 = vmul.f32 %v2620, %v2620
      %v3260 = vmul.f32 %v2625, %v2625
      %v3261 = vmul.f32 %v2628, %v2628
      %v3262 = vmul.f32 %v2633, %v2633
      %v3263 = vmul.f32 %v2636, %v2636
      %v3264 = vmul.f32 %v2641, %v2641
      %v3265 = vmul.f32 %v2644, %v2644
      %v3266 = vmul.f32 %v2649, %v2649
      %v3267 = vmul.f32 %v2652, %v2652
      %v3268 = vmul.f32 %v2657, %v2657
      %v3269 = vmul.f32 %v2660, %v2660
      %v3270 = vmul.f32 %v2665, %v2665
      %v3271 = vmul.f32 %v2668, %v2668
      %v3272 = vmul.f32 %v2673, %v2673
      %v3273 = vmul.f32 %v2676, %v2676
      %v3274 = vmul.f32 %v2681, %v2681
      %v3275 = vmul.f32 %v2684, %v2684
      %v3276 = vmul.f32 %v2689, %v2689
      %v3277 = vmul.f32 %v2692, %v2692
      %v3278 = vmul.f32 %v2697, %v2697
      %v3279 = vmul.f32 %v2700, %v2700
      %v3280 = vmul.f32 %v2705, %v2705
      %v3281 = vmul.f32 %v2708, %v2708
      %v3282 = vmul.f32 %v2713, %v2713
      %v3283 = vmul.f32 %v2716, %v2716
      %v3284 = vmul.f32 %v2721, %v2721
      %v3285 = vmul.f32 %v2724, %v2724
      %v3286 = vmul.f32 %v2729, %v2729
      %v3287 = vmul.f32 %v2732, %v2732
      %v3288 = vmul.f32 %v2737, %v2737
      %v3289 = vmul.f32 %v2740, %v2740
      %v3290 = vmul.f32 %v2745, %v2745
      %v3291 = vmul.f32 %v2748, %v2748
      %v3292 = vmul.f32 %v2753, %v2753
      %v3293 = vmul.f32 %v2756, %v2756
      %v3294 = vmul.f32 %v2761, %v2761
      %v3295 = vmul.f32 %v2764, %v2764
      %v3296 = vmul.f32 %v2769, %v2769
      %v3297 = vmul.f32 %v2772, %v2772
      %v3298 = vmul.f32 %v2777, %v2777
      %v3299 = vmul.f32 %v2780, %v2780
      %v3300 = vmul.f32 %v2785, %v2785
      %v3301 = vmul.f32 %v2788, %v2788
      %v3302 = vmul.f32 %v2793, %v2793
      %v3303 = vmul.f32 %v2796, %v2796
      %v3304 = vmul.f32 %v2801, %v2801
      %v3305 = vmul.f32 %v2804, %v2804
      %v3306 = vmul.f32 %v2809, %v2809
      %v3307 = vmul.f32 %v2812, %v2812
      %v3308 = vmul.f32 %v2817, %v2817
      %v3309 = vmul.f32 %v2820, %v2820
      %v3310 = vmul.f32 %v2825, %v2825
      %v3311 = vmul.f32 %v2828, %v2828
      %v3312 = vmul.f32 %v2833, %v2833
      %v3313 = vmul.f32 %v2836, %v2836
      %v3314 = vmul.f32 %v2841, %v2841
      %v3315 = vmul.f32 %v2844, %v2844
      %v3316 = vmul.f32 %v2849, %v2849
      %v3317 = vmul.f32 %v2852, %v2852
      %v3318 = vadd.f32 %v3254, %v3255
      %v3319 = vadd.f32 %v3318, %v3256
      %v3320 = vadd.f32 %v3319, %v3257
      %v3321 = vadd.f32 %v3320, %v3258
      %v3322 = vadd.f32 %v3321, %v3259
      %v3323 = vadd.f32 %v3322, %v3260
      %v3324 = vadd.f32 %v3323, %v3261
      %v3325 = vadd.f32 %v3324, %v3262
      %v3326 = vadd.f32 %v3325, %v3263
      %v3327 = vadd.f32 %v3326, %v3264
      %v3328 = vadd.f32 %v3327, %v3265
      %v3329 = vadd.f32 %v3328, %v3266
      %v3330 = vadd.f32 %v3329, %v3267
      %v3331 = vadd.f32 %v3330, %v3268
      %v3332 = vadd.f32 %v3331, %v3269
      %v3333 = vadd.f32 %v3332, %v3270
      %v3334 = vadd.f32 %v3333, %v3271
      %v3335 = vadd.f32 %v3334, %v3272
      %v3336 = vadd.f32 %v3335, %v3273
      %v3337 = vadd.f32 %v3336, %v3274
      %v3338 = vadd.f32 %v3337, %v3275
      %v3339 = vadd.f32 %v3338, %v3276
      %v3340 = vadd.f32 %v3339, %v3277
      %v3341 = vadd.f32 %v3340, %v3278
      %v3342 = vadd.f32 %v3341, %v3279
      %v3343 = vadd.f32 %v3342, %v3280
      %v3344 = vadd.f32 %v3343, %v3281
      %v3345 = vadd.f32 %v3344, %v3282
      %v3346 = vadd.f32 %v3345, %v3283
      %v3347 = vadd.f32 %v3346, %v3284
      %v3348 = vadd.f32 %v3347, %v3285
      %v3349 = vadd.f32 %v3348, %v3286
      %v3350 = vadd.f32 %v3349, %v3287
      %v3351 = vadd.f32 %v3350, %v3288
      %v3352 = vadd.f32 %v3351, %v3289
      %v3353 = vadd.f32 %v3352, %v3290
      %v3354 = vadd.f32 %v3353, %v3291
      %v3355 = vadd.f32 %v3354, %v3292
      %v3356 = vadd.f32 %v3355, %v3293
      %v3357 = vadd.f32 %v3356, %v3294
      %v3358 = vadd.f32 %v3357, %v3295
      %v3359 = vadd.f32 %v3358, %v3296
      %v3360 = vadd.f32 %v3359, %v3297
      %v3361 = vadd.f32 %v3360, %v3298
      %v3362 = vadd.f32 %v3361, %v3299
      %v3363 = vadd.f32 %v3362, %v3300
      %v3364 = vadd.f32 %v3363, %v3301
      %v3365 = vadd.f32 %v3364, %v3302
      %v3366 = vadd.f32 %v3365, %v3303
      %v3367 = vadd.f32 %v3366, %v3304
      %v3368 = vadd.f32 %v3367, %v3305
      %v3369 = vadd.f32 %v3368, %v3306
      %v3370 = vadd.f32 %v3369, %v3307
      %v3371 = vadd.f32 %v3370, %v3308
      %v3372 = vadd.f32 %v3371, %v3309
      %v3373 = vadd.f32 %v3372, %v3310
      %v3374 = vadd.f32 %v3373, %v3311
      %v3375 = vadd.f32 %v3374, %v3312
      %v3376 = vadd.f32 %v3375, %v3313
      %v3377 = vadd.f32 %v3376, %v3314
      %v3378 = vadd.f32 %v3377, %v3315
      %v3379 = vadd.f32 %v3378, %v3316
      %v3380 = vadd.f32 %v3379, %v3317
      %v3381 = vrot.slane %v3380, 4
      %v3382 = vadd.f32 %v3380, %v3381
      %v3383 = vrot.slane %v3382, 2
      %v3384 = vadd.f32 %v3382, %v3383
      %v3385 = vrot.slane %v3384, 1
      %v3386 = vadd.f32 %v3384, %v3385
      %v3387 = vadd.f32 %v3253, %v3386
      %3388 = vst [vmem:[%s465] sm:$0x1] %v3387
      %s3389 = sadd.s32 %s26, %s28
      %s3390 = smul.u32 64, %s3389
      %p3391 = scmp.lt.s32.totalorder %s27, 1
      %s3392 = scalar_select %p3391, %s27, 1
      %p3393 = scmp.lt.s32.totalorder %s3390, 63
      %s3394 = scalar_select %p3393, %s3390, 63
      %s3395 = smul.addr %s3392, 64
      %s3396 = sadd.s32 %s3394, %s3395
      %s3397 = smul.addr %s3396, 4
      %s3398 = scalar_lea.vmem %s7, %s3397
      %s3399 = smul.u32 %s26, 2
      %s3400 = sadd.s32 %s3399, %s27
      %p3401 = scmp.lt.s32.totalorder %s3400, 1
      %s3402 = scalar_select %p3401, %s3400, 1
      %s3403 = scalar_lea.vmem %s8, %s3402
      %s3404 = smul.u32 %s26, 2
      %s3405 = sadd.s32 %s3404, %s27
      %p3406 = scmp.lt.s32.totalorder %s3405, 1
      %s3407 = scalar_select %p3406, %s3405, 1
      %s3408 = scalar_lea.vmem %s9, %s3407
      // Predicated region
      $region53: #{nonlocal_block.4} parent=47 // pred_check
        %p3409 = pneg %p228
      $region54: #{nonlocal_block.4} parent=47 // pred_check_branch
        %3411 = sbr.rel (%p3409) target = $region56
      $region55: #{nonlocal_block.4} parent=47 // pred_region
        %s3412 = sadd.s32 %s26, %s28
        %s3413 = smul.u32 64, %s3412
      $region56: #{nonlocal_block.4} parent=47 // pred_fallthru
        _
      // Predicated region
      $region57: #{nonlocal_block.4} parent=47 // pred_check
        %p3414 = pneg %p258
      $region58: #{nonlocal_block.4} parent=47 // pred_check_branch
        %3416 = sbr.rel (%p3414) target = $region60
      $region59: #{nonlocal_block.4} parent=47 // pred_region
        %s3417 = smul.u32 %s26, 2
        %s3418 = sadd.s32 %s3417, %s27
      $region60: #{nonlocal_block.4} parent=47 // pred_fallthru
        _
      // Predicated region
      $region61: #{nonlocal_block.4} parent=47 // pred_check
        %p3419 = pneg %p288
      $region62: #{nonlocal_block.4} parent=47 // pred_check_branch
        %3421 = sbr.rel (%p3419) target = $region64
      $region63: #{nonlocal_block.4} parent=47 // pred_region
        %s3422 = smul.u32 %s26, 2
        %s3423 = sadd.s32 %s3422, %s27
      $region64: #{nonlocal_block.4} parent=47 // pred_fallthru
        _
    $region48: #{nonlocal_block.4} parent=5 // pred_fallthru
      _
    %p3424 = scmp.le.s32.totalorder 2, %s16
    // Predicated region
    $region65: #{nonlocal_block.4} parent=5 // pred_check
      %p3425 = pneg %p3424
    $region66: #{nonlocal_block.4} parent=5 // pred_check_branch
      %3427 = sbr.rel (%p3425) target = $region68
    $region67: #{nonlocal_block.4} parent=5 // pred_region
      %s3428 = ssub.s32 %s16, 2
      // Predicated region
      $region69: #{nonlocal_block.4} parent=67 // pred_check
        %p3429 = pneg %p234
      $region70: #{nonlocal_block.4} parent=67 // pred_check_branch
        %3431 = sbr.rel (%p3429) target = $region72
      $region71: #{nonlocal_block.4} parent=67 // pred_region
        %s3432 = sadd.s32 %s29, %s31
        %s3433 = smul.u32 64, %s3432
        %p3434 = scmp.lt.s32.totalorder %s30, 1
        %s3435 = scalar_select %p3434, %s30, 1
        %p3436 = scmp.lt.s32.totalorder %s3433, 63
        %s3437 = scalar_select %p3436, %s3433, 63
        %s3438 = smul.addr %s3435, 64
        %s3439 = sadd.s32 %s3437, %s3438
        %s3440 = smul.addr %s3439, 4
        %s3441 = scalar_lea.vmem %s7, %s3440
      $region72: #{nonlocal_block.4} parent=67 // pred_fallthru
        _
      // Predicated region
      $region73: #{nonlocal_block.4} parent=67 // pred_check
        %p3442 = pneg %p264
      $region74: #{nonlocal_block.4} parent=67 // pred_check_branch
        %3444 = sbr.rel (%p3442) target = $region76
      $region75: #{nonlocal_block.4} parent=67 // pred_region
        %s3445 = smul.u32 %s29, 2
        %s3446 = sadd.s32 %s3445, %s30
        %p3447 = scmp.lt.s32.totalorder %s3446, 1
        %s3448 = scalar_select %p3447, %s3446, 1
        %s3449 = scalar_lea.vmem %s8, %s3448
      $region76: #{nonlocal_block.4} parent=67 // pred_fallthru
        _
      // Predicated region
      $region77: #{nonlocal_block.4} parent=67 // pred_check
        %p3450 = pneg %p294
      $region78: #{nonlocal_block.4} parent=67 // pred_check_branch
        %3452 = sbr.rel (%p3450) target = $region80
      $region79: #{nonlocal_block.4} parent=67 // pred_region
        %s3453 = smul.u32 %s29, 2
        %s3454 = sadd.s32 %s3453, %s30
        %p3455 = scmp.lt.s32.totalorder %s3454, 1
        %s3456 = scalar_select %p3455, %s3454, 1
        %s3457 = scalar_lea.vmem %s9, %s3456
      $region80: #{nonlocal_block.4} parent=67 // pred_fallthru
        _
    $region68: #{nonlocal_block.4} parent=5 // pred_fallthru
      _
  $region6: #{nonlocal_block.4} parent=0 // loop_footer
    %s20 = sadd.s32 1, %s16
  $region7: #{nonlocal_block.4} parent=0 // loop_footer_branch
    %15 = sbr.rel target = $region3
  $region8: #{nonlocal_block.4} parent=0 // loop_exit
    _

</llo_original>
